<compile_context>
chip_gen: v6e
topology: v6e:2x2x1
jax: 0.10.0
libtpu: 0.0.40
codegen_flags: <defaults>
</compile_context>

<pallas_src>
import functools
import math

import jax
import jax.numpy as jnp
from jax.experimental import pallas as pl
from jax.experimental.pallas import tpu as pltpu


_LN_EPS = 1e-6
_MXU_DTYPE = jnp.bfloat16          # matmul operand dtype (f32 accumulation)


# ---------------------------------------------------------------------------
# Shared in-kernel helpers
# ---------------------------------------------------------------------------

def _layernorm_modulate(x, scale_row, bias_row):
    """LayerNorm(elementwise_affine=False, eps=1e-6) then x*(1+s)+b.

    x: (N, D) f32; scale_row / bias_row: (1, D), broadcast over tokens.
    Statistics stay in f32.
    """
    mu = jnp.mean(x, axis=-1, keepdims=True)
    var = jnp.mean((x - mu) ** 2, axis=-1, keepdims=True)
    xn = (x - mu) * jax.lax.rsqrt(var + _LN_EPS)
    return xn * (1.0 + scale_row) + bias_row


def _gelu_exact(x):
    # exact (erf) GELU, matching nn.GELU() default.
    # (tanh-approx would move this to the EUP slot; kept exact for numerics.)
    return 0.5 * x * (1.0 + jax.lax.erf(x * 0.7071067811865475))


def _vmem_limit(*arrays):
    """Explicit scoped-VMEM request: generous estimate from the resident
    operands, clamped so it is never below the default limits that the
    previous version compiled with (32 MiB) and never above v7x physical
    VMEM (64 MiB)."""
    est = 4 * sum(int(a.size) * a.dtype.itemsize for a in arrays) + (4 << 20)
    return int(min(max(est, 32 << 20), 64 << 20))


# ---------------------------------------------------------------------------
# Pallas kernels
# ---------------------------------------------------------------------------

def _patch_embed_kernel(p_ref, w_ref, b_ref, pos_ref, o_ref):
    # (patches @ W + bias + pos_emb) fused in one epilogue; bf16 operands,
    # f32 accumulation.
    y = jnp.dot(p_ref[0], w_ref[...], preferred_element_type=jnp.float32)
    o_ref[...] = (y + b_ref[...] + pos_ref[...])[None]


def patch_embed(patches, w, b, pos):
    B, N, CKK = patches.shape
    D = w.shape[1]
    return pl.pallas_call(
        _patch_embed_kernel,
        out_shape=jax.ShapeDtypeStruct((B, N, D), jnp.float32),
        grid=(B,),
        in_specs=[
            pl.BlockSpec((1, N, CKK), lambda bi: (bi, 0, 0)),
            pl.BlockSpec((CKK, D), lambda bi: (0, 0)),
            pl.BlockSpec((1, D), lambda bi: (0, 0)),
            pl.BlockSpec((N, D), lambda bi: (0, 0)),
        ],
        out_specs=pl.BlockSpec((1, N, D), lambda bi: (bi, 0, 0)),
        compiler_params=pltpu.CompilerParams(
            dimension_semantics=("parallel",),
            vmem_limit_bytes=_vmem_limit(patches, w, pos)),
    )(patches, w, b, pos)


def _time_mlp_kernel(t_ref, w1_ref, b1_ref, w2_ref, b2_ref, o_ref):
    h = jnp.dot(t_ref[...], w1_ref[...], preferred_element_type=jnp.float32) + b1_ref[...]
    h = h * jax.nn.sigmoid(h)                     # SiLU
    o_ref[...] = jnp.dot(h, w2_ref[...], preferred_element_type=jnp.float32) + b2_ref[...]


def time_mlp(t, w1, b1, w2, b2):
    B, D = t.shape
    H = w1.shape[1]
    return pl.pallas_call(
        _time_mlp_kernel,
        out_shape=jax.ShapeDtypeStruct((B, D), jnp.float32),
        grid=(1,),
        in_specs=[
            pl.BlockSpec((B, D), lambda i: (0, 0)),
            pl.BlockSpec((D, H), lambda i: (0, 0)),
            pl.BlockSpec((1, H), lambda i: (0, 0)),
            pl.BlockSpec((H, D), lambda i: (0, 0)),
            pl.BlockSpec((1, D), lambda i: (0, 0)),
        ],
        out_specs=pl.BlockSpec((B, D), lambda i: (0, 0)),
    )(t, w1, b1.reshape(1, H), w2, b2.reshape(1, D))


def _cond_kernel(c_ref, w_ref, b_ref, o_ref):
    # silu(c) computed ONCE, then one wide matmul covering every layer's
    # cond_mlp + gate_mlp plus the final out_mod.  Tiny kernel, kept f32 to
    # keep the modulation/gate parameters crisp.
    c = c_ref[...]
    c = c * jax.nn.sigmoid(c)
    o_ref[...] = jnp.dot(c, w_ref[...], preferred_element_type=jnp.float32) + b_ref[...]


def conditioning(c, w, b):
    B, D = c.shape
    T = w.shape[1]
    return pl.pallas_call(
        _cond_kernel,
        out_shape=jax.ShapeDtypeStruct((B, T), jnp.float32),
        grid=(1,),
        in_specs=[
            pl.BlockSpec((B, D), lambda i: (0, 0)),
            pl.BlockSpec((D, T), lambda i: (0, 0)),
            pl.BlockSpec((1, T), lambda i: (0, 0)),
        ],
        out_specs=pl.BlockSpec((B, T), lambda i: (0, 0)),
    )(c, w, b.reshape(1, T))


def _dit_block_kernel(x_ref, cond_ref, wqkv_ref, bqkv_ref, pw_ref, pb_ref,
                      w1_ref, b1_ref, w2_ref, b2_ref, o_ref,
                      *, n_heads, head_dim):
    """One fused DiT block (attention branch + FFW branch) per batch element.

    Attention branch: LN+mod -> ONE wide QKV matmul -> per-head softmax(QK^T)V
    -> head concat -> ONE wide output-proj matmul -> gated residual.
    FFW branch:       LN+mod -> Linear(4D)+GELU -> Linear(D) -> gated residual.
    The (N, D) activation never leaves VMEM between the two branches.
    """
    x = x_ref[0]                       # (N, D) f32
    cond = cond_ref[0]                 # (6, D) f32: s1,b1,s2,b2,g1,g2
    s1, b1 = cond[0:1, :], cond[1:2, :]
    s2, b2 = cond[2:3, :], cond[3:4, :]
    g1, g2 = cond[4:5, :], cond[5:6, :]

    d = n_heads * head_dim
    scale = head_dim ** -0.5

    # ---- attention branch --------------------------------------------------
    xm = _layernorm_modulate(x, s1, b1).astype(_MXU_DTYPE)
    qkv = jnp.dot(xm, wqkv_ref[...],
                  preferred_element_type=jnp.float32) + bqkv_ref[...]   # (N, 3D)

    # Per-head split only for the score / PV matmuls.  Static unroll: n_heads
    # is small here; at large H this should become a head-major layout +
    # fori_loop (or a grid axis) to bound live ranges.
    heads = []
    for h in range(n_heads):
        lo = h * head_dim
        qh = (qkv[:, lo:lo + head_dim] * scale).astype(_MXU_DTYPE)          # scale folded into Q
        kh = qkv[:, d + lo:d + lo + head_dim].astype(_MXU_DTYPE)
        vh = qkv[:, 2 * d + lo:2 * d + lo + head_dim].astype(_MXU_DTYPE)
        sc = jax.lax.dot_general(qh, kh, (((1,), (1,)), ((), ())),
                                 preferred_element_type=jnp.float32)        # (N, N) f32
        m = jnp.max(sc, axis=-1, keepdims=True)
        p = jnp.exp(sc - m)
        p = p * pl.reciprocal(jnp.sum(p, axis=-1, keepdims=True), approx=True)
        heads.append(jnp.dot(p.astype(_MXU_DTYPE), vh,
                             preferred_element_type=jnp.float32))            # (N, Dh) f32

    attn = jnp.concatenate(heads, axis=-1).astype(_MXU_DTYPE)                # (N, D)
    y = jnp.dot(attn, pw_ref[...],
                preferred_element_type=jnp.float32) + pb_ref[...]
    x = x + y * g1

    # ---- FFW branch ----------------------------------------------------------
    xm = _layernorm_modulate(x, s2, b2).astype(_MXU_DTYPE)
    hdn = jnp.dot(xm, w1_ref[...],
                  preferred_element_type=jnp.float32) + b1_ref[...]
    hdn = _gelu_exact(hdn).astype(_MXU_DTYPE)
    y = jnp.dot(hdn, w2_ref[...],
                preferred_element_type=jnp.float32) + b2_ref[...]
    o_ref[...] = (x + y * g2)[None]


def dit_block(x, cond6, lp, n_heads, head_dim):
    B, N, D = x.shape
    kernel = functools.partial(_dit_block_kernel, n_heads=n_heads, head_dim=head_dim)
    tok = lambda bi: (bi, 0, 0)
    wmap = lambda bi: (0, 0)
    return pl.pallas_call(
        kernel,
        out_shape=jax.ShapeDtypeStruct((B, N, D), jnp.float32),
        grid=(B,),
        in_specs=[
            pl.BlockSpec((1, N, D), tok),            # x
            pl.BlockSpec((1, 6, D), tok),            # s1,b1,s2,b2,g1,g2
            pl.BlockSpec((D, 3 * D), wmap),          # wqkv (bf16)
            pl.BlockSpec((1, 3 * D), wmap),          # qkv bias (f32)
            pl.BlockSpec((D, D), wmap),              # proj weight (bf16)
            pl.BlockSpec((1, D), wmap),              # proj bias (f32)
            pl.BlockSpec((D, 4 * D), wmap),          # ffw1 weight (bf16)
            pl.BlockSpec((1, 4 * D), wmap),          # ffw1 bias (f32)
            pl.BlockSpec((4 * D, D), wmap),          # ffw2 weight (bf16)
            pl.BlockSpec((1, D), wmap),              # ffw2 bias (f32)
        ],
        out_specs=pl.BlockSpec((1, N, D), tok),
        compiler_params=pltpu.CompilerParams(
            dimension_semantics=("parallel",),
            vmem_limit_bytes=_vmem_limit(
                x, lp["wqkv"], lp["pw"], lp["ffw1_w"], lp["ffw2_w"])),
    )(x, cond6, lp["wqkv"], lp["bqkv"], lp["pw"], lp["pb"],
      lp["ffw1_w"], lp["ffw1_b"], lp["ffw2_w"], lp["ffw2_b"])


def _out_kernel(x_ref, cond_ref, w_ref, bias_ref, o_ref):
    """Fused final LN + modulation + out_proj matmul (lane-padded output)."""
    x = x_ref[0]
    cond = cond_ref[0]
    s, b = cond[0:1, :], cond[1:2, :]
    xm = _layernorm_modulate(x, s, b).astype(_MXU_DTYPE)
    y = jnp.dot(xm, w_ref[...], preferred_element_type=jnp.float32) + bias_ref[...]
    o_ref[...] = y[None]


def out_project(x, cond2, w_pad, b_pad, out_dim):
    B, N, D = x.shape
    Opad = w_pad.shape[1]
    out = pl.pallas_call(
        _out_kernel,
        out_shape=jax.ShapeDtypeStruct((B, N, Opad), jnp.float32),
        grid=(B,),
        in_specs=[
            pl.BlockSpec((1, N, D), lambda bi: (bi, 0, 0)),
            pl.BlockSpec((1, 2, D), lambda bi: (bi, 0, 0)),
            pl.BlockSpec((D, Opad), lambda bi: (0, 0)),
            pl.BlockSpec((1, Opad), lambda bi: (0, 0)),
        ],
        out_specs=pl.BlockSpec((1, N, Opad), lambda bi: (bi, 0, 0)),
        compiler_params=pltpu.CompilerParams(
            dimension_semantics=("parallel",),
            vmem_limit_bytes=_vmem_limit(x, w_pad)),
    )(x, cond2, w_pad, b_pad)
    # drop the lane padding outside the kernel (kernel stores stay unmasked)
    return out[:, :, :out_dim]


# ---------------------------------------------------------------------------
# Plain-JAX glue: positional-embedding constant
# ---------------------------------------------------------------------------

def sincos_embedding_2d(h, w, d):
    f_max = d // 4
    freqs = (jnp.arange(f_max) * 2 + 1).astype(jnp.float32)            # (f_max,)
    xs = jnp.linspace(0.0, 1.0, w).astype(jnp.float32)[:, None]
    ax = xs * freqs[None, :] * math.pi                                  # (w, f_max)
    xe = jnp.concatenate([jnp.sin(ax), jnp.cos(ax)], axis=-1)           # (w, d/2)
    xe = jnp.broadcast_to(xe[None, :, :], (h, w, d // 2))
    ys = jnp.linspace(0.0, 1.0, h).astype(jnp.float32)[:, None]
    ay = ys * freqs[None, :] * math.pi
    ye = jnp.concatenate([jnp.sin(ay), jnp.cos(ay)], axis=-1)           # (h, d/2)
    ye = jnp.broadcast_to(ye[:, None, :], (h, w, d // 2))
    return jnp.concatenate([xe, ye], axis=-1)                           # (h, w, d)


# ---------------------------------------------------------------------------
# Model
# ---------------------------------------------------------------------------

class ClassConditionalDiTPallas:
    def __init__(self, input_dim, n_classes, n_timesteps, im_size, kernel_size,
                 dim, n_layers, n_heads, key):
        self.input_dim = input_dim
        self.n_classes = n_classes
        self.n_timesteps = n_timesteps
        self.im_size = im_size
        self.kernel_size = kernel_size
        self.dim = dim
        self.n_layers = n_layers
        self.n_heads = n_heads
        self.head_dim = dim // n_heads
        self.n_patches = im_size // kernel_size
        self.out_dim = kernel_size * kernel_size * input_dim
        self.out_pad = ((self.out_dim + 127) // 128) * 128   # lane-dense out store

        # Deterministic synthetic initialization (not a checkpoint load).
        # NOTE: the PyTorch module zero-inits gate/cond/out_proj weights; here
        # we use small random values so the kernels do non-trivial compute,
        # while the forward-pass math is identical.
        def nrm(k, shape, std=0.02):
            return (std * jax.random.normal(k, shape)).astype(jnp.float32)

        ks = iter(jax.random.split(key, 16 + 16 * n_layers))
        d = dim
        bf16 = lambda a: a.astype(_MXU_DTYPE)

        p = {}
        p["classes_emb"] = nrm(next(ks), (n_classes + 1, d))
        p["freqs"] = jnp.exp(
            -2.0 * math.log(n_timesteps) * jnp.arange(d // 2) / d).astype(jnp.float32)
        p["time_w1"] = nrm(next(ks), (d, 4 * d)); p["time_b1"] = nrm(next(ks), (4 * d,))
        p["time_w2"] = nrm(next(ks), (4 * d, d)); p["time_b2"] = nrm(next(ks), (d,))
        # in_conv (dim, C, k, k) stored as matmul weight (C*k*k, dim), bf16
        p["in_w"] = bf16(nrm(next(ks), (input_dim * kernel_size * kernel_size, d)))
        p["in_b"] = nrm(next(ks), (d,)).reshape(1, d)
        # out_proj, zero-padded to a 128-lane-multiple output width
        ow = nrm(next(ks), (d, self.out_dim)); ob = nrm(next(ks), (self.out_dim,))
        p["out_proj_w"] = bf16(jnp.pad(ow, ((0, 0), (0, self.out_pad - self.out_dim))))
        p["out_proj_b"] = jnp.pad(ob, (0, self.out_pad - self.out_dim)).reshape(1, self.out_pad)
        out_mod_w = nrm(next(ks), (d, 2 * d)); out_mod_b = nrm(next(ks), (2 * d,))

        p["layers"] = []
        cond_cols, cond_biases = [], []
        for _ in range(n_layers):
            qkv_w = nrm(next(ks), (d, 3 * d)); qkv_b = nrm(next(ks), (3 * d,))
            proj_w = nrm(next(ks), (d, d));    proj_b = nrm(next(ks), (d,))
            ffw1_w = nrm(next(ks), (d, 4 * d)); ffw1_b = nrm(next(ks), (4 * d,))
            ffw2_w = nrm(next(ks), (4 * d, d)); ffw2_b = nrm(next(ks), (d,))
            cond_w = nrm(next(ks), (d, 4 * d)); cond_b = nrm(next(ks), (4 * d,))
            gate_w = nrm(next(ks), (d, 2 * d)); gate_b = nrm(next(ks), (2 * d,))
            lp = {
                # wide weights stored in bf16 (f32 accumulation in-kernel);
                # biases kept f32 and pre-reshaped to (1, K) broadcast rows.
                "wqkv": bf16(qkv_w), "bqkv": qkv_b.reshape(1, 3 * d),
                "pw": bf16(proj_w),  "pb": proj_b.reshape(1, d),
                "ffw1_w": bf16(ffw1_w), "ffw1_b": ffw1_b.reshape(1, 4 * d),
                "ffw2_w": bf16(ffw2_w), "ffw2_b": ffw2_b.reshape(1, d),
            }
            cond_cols += [cond_w, gate_w]
            cond_biases += [cond_b, gate_b]
            p["layers"].append(lp)

        # Consolidated conditioning weight: every layer's cond (4D) + gate (2D)
        # plus the final out_mod (2D), applied to silu(c) in a single matmul.
        cond_cols.append(out_mod_w)
        cond_biases.append(out_mod_b)
        p["cond_all_w"] = jnp.concatenate(cond_cols, axis=1)
        p["cond_all_b"] = jnp.concatenate(cond_biases, axis=0)
        self.params = p

        # positional-embedding constant (folded into the patch-embed epilogue)
        self.pos_emb = sincos_embedding_2d(
            self.n_patches, self.n_patches, dim).reshape(self.n_patches ** 2, dim)

    # ---- full forward ------------------------------------------------------
    def forward(self, img, time, cls):
        p = self.params
        B, C, Him, Wim = img.shape
        kp, P, D = self.kernel_size, self.n_patches, self.dim
        N = P * P

        # patch-embedding conv (stride == kernel) as matmul over unfolded
        # patches, with bias + positional embedding fused into the epilogue
        patches = img.reshape(B, C, P, kp, P, kp)
        patches = patches.transpose(0, 2, 4, 1, 3, 5).reshape(B, N, C * kp * kp)
        x = patch_embed(patches.astype(_MXU_DTYPE), p["in_w"], p["in_b"],
                        self.pos_emb)                                    # (B, N, D)

        # timestep embedding (fused 2-layer MLP)
        ang = time[:, None] * p["freqs"][None, :]                        # (B, D/2)
        t = jnp.concatenate([jnp.cos(ang), jnp.sin(ang)], axis=1)        # (B, D)
        t = time_mlp(t, p["time_w1"], p["time_b1"], p["time_w2"], p["time_b2"])

        # class conditioning (embedding lookup kept as plain-JAX glue)
        c = p["classes_emb"][cls] + t                                    # (B, D)

        # all layers' cond/gate + final out_mod in ONE tiny matmul
        cond_all = conditioning(c, p["cond_all_w"], p["cond_all_b"])     # (B, 6D*L + 2D)

        for l, lp in enumerate(p["layers"]):
            off = l * 6 * D
            cond6 = cond_all[:, off:off + 6 * D].reshape(B, 6, D)        # s1,b1,s2,b2,g1,g2
            x = dit_block(x, cond6, lp, self.n_heads, self.head_dim)

        off = self.n_layers * 6 * D
        cond2 = cond_all[:, off:off + 2 * D].reshape(B, 2, D)            # s, b
        out = out_project(x, cond2, p["out_proj_w"], p["out_proj_b"],
                          self.out_dim)                                  # (B, N, k*k*C)

        # 'b (h w) (k s c) -> b c (h k) (w s)'
        out = out.reshape(B, P, P, kp, kp, C)
        out = out.transpose(0, 5, 1, 3, 2, 4).reshape(B, C, P * kp, P * kp)
        return out


# ---------------------------------------------------------------------------
# Main
# ---------------------------------------------------------------------------

if __name__ == "__main__":
    input_dim, n_classes, n_timesteps = 3, 10, 1000
    im_size, kernel_size, dim, n_layers, n_heads = 16, 4, 32, 2, 4
    B = 2

    key = jax.random.PRNGKey(0)
    pkey, ikey, tkey, ckey = jax.random.split(key, 4)

    model = ClassConditionalDiTPallas(
        input_dim, n_classes, n_timesteps, im_size, kernel_size,
        dim, n_layers, n_heads, key=pkey)

    img = jax.random.normal(ikey, (B, input_dim, im_size, im_size), jnp.float32)
    time = jax.random.uniform(tkey, (B,), jnp.float32, 0.0, float(n_timesteps))
    cls = jax.random.randint(ckey, (B,), 0, n_classes + 1)

    fwd = jax.jit(model.forward)
    out = fwd(img, time, cls)
    out = jax.block_until_ready(out)

    assert out.shape == (B, input_dim, im_size, im_size), out.shape
    assert jnp.all(jnp.isfinite(out))
    print("KERNEL_OK")
</pallas_src>

<mosaic_0001>
module attributes {stable_mosaic.version = 11 : i64} {
  func.func @_time_mlp_kernel(%arg0: i32, %arg1: memref<2x32xf32, #tpu.memory_space<vmem>>, %arg2: memref<32x128xf32, #tpu.memory_space<vmem>>, %arg3: memref<1x128xf32, #tpu.memory_space<vmem>>, %arg4: memref<128x32xf32, #tpu.memory_space<vmem>>, %arg5: memref<1x32xf32, #tpu.memory_space<vmem>>, %arg6: memref<2x32xf32, #tpu.memory_space<vmem>>) attributes {dimension_semantics = [#tpu.dimension_semantics<arbitrary>], iteration_bounds = array<i64: 1>, scalar_prefetch = 0 : i64, scratch_operands = 0 : i64, tpu.core_type = #tpu.core_type<tc>, window_params = [{pipeline_mode = #tpu.pipeline_mode<synchronous>, transform_indices = @transform_0, window_bounds = array<i64: 2, 32>}, {pipeline_mode = #tpu.pipeline_mode<synchronous>, transform_indices = @transform_1, window_bounds = array<i64: 32, 128>}, {pipeline_mode = #tpu.pipeline_mode<synchronous>, transform_indices = @transform_2, window_bounds = array<i64: 1, 128>}, {pipeline_mode = #tpu.pipeline_mode<synchronous>, transform_indices = @transform_3, window_bounds = array<i64: 128, 32>}, {pipeline_mode = #tpu.pipeline_mode<synchronous>, transform_indices = @transform_4, window_bounds = array<i64: 1, 32>}, {pipeline_mode = #tpu.pipeline_mode<synchronous>, transform_indices = @transform_5, window_bounds = array<i64: 2, 32>}]} {
    %c0 = arith.constant 0 : index
    %c0_0 = arith.constant 0 : index
    %0 = vector.load %arg1[%c0, %c0_0] : memref<2x32xf32, #tpu.memory_space<vmem>>, vector<2x32xf32>
    %c0_1 = arith.constant 0 : index
    %c0_2 = arith.constant 0 : index
    %1 = vector.load %arg2[%c0_1, %c0_2] : memref<32x128xf32, #tpu.memory_space<vmem>>, vector<32x128xf32>
    %cst = arith.constant dense<0.000000e+00> : vector<2x128xf32>
    %2 = tpu.matmul %0, %1, %cst {dimension_numbers = #tpu.dot_dimension_numbers<[1], [0], [0], [1], [0, 0, 1, 1], [], []>} : vector<2x32xf32>, vector<32x128xf32>, vector<2x128xf32> -> vector<2x128xf32>
    %c0_3 = arith.constant 0 : index
    %c0_4 = arith.constant 0 : index
    %3 = vector.load %arg3[%c0_3, %c0_4] : memref<1x128xf32, #tpu.memory_space<vmem>>, vector<1x128xf32>
    %4 = vector.broadcast %3 : vector<1x128xf32> to vector<2x128xf32>
    %5 = arith.addf %2, %4 : vector<2x128xf32>
    %6 = arith.negf %5 : vector<2x128xf32>
    %7 = math.exp %6 : vector<2x128xf32>
    %cst_5 = arith.constant 1.000000e+00 : f32
    %8 = vector.broadcast %cst_5 : f32 to vector<2x128xf32>
    %9 = arith.addf %8, %7 : vector<2x128xf32>
    %10 = arith.divf %8, %9 : vector<2x128xf32>
    %11 = arith.mulf %5, %10 : vector<2x128xf32>
    %c0_6 = arith.constant 0 : index
    %c0_7 = arith.constant 0 : index
    %12 = vector.load %arg4[%c0_6, %c0_7] : memref<128x32xf32, #tpu.memory_space<vmem>>, vector<128x32xf32>
    %cst_8 = arith.constant dense<0.000000e+00> : vector<2x32xf32>
    %13 = tpu.matmul %11, %12, %cst_8 {dimension_numbers = #tpu.dot_dimension_numbers<[1], [0], [0], [1], [0, 0, 1, 1], [], []>} : vector<2x128xf32>, vector<128x32xf32>, vector<2x32xf32> -> vector<2x32xf32>
    %c0_9 = arith.constant 0 : index
    %c0_10 = arith.constant 0 : index
    %14 = vector.load %arg5[%c0_9, %c0_10] : memref<1x32xf32, #tpu.memory_space<vmem>>, vector<1x32xf32>
    %15 = vector.broadcast %14 : vector<1x32xf32> to vector<2x32xf32>
    %16 = arith.addf %13, %15 : vector<2x32xf32>
    %c0_11 = arith.constant 0 : index
    %c0_12 = arith.constant 0 : index
    %17 = vector.load %arg6[%c0_11, %c0_12] : memref<2x32xf32, #tpu.memory_space<vmem>>, vector<2x32xf32>
    tpu.vector_store %arg6[%c0_11, %c0_12], %16 {strides = array<i32>} : memref<2x32xf32, #tpu.memory_space<vmem>>, vector<2x32xf32>,
    return
  }
  func.func @transform_0(%arg0: i32) -> (i32, i32) {
    %c0_i32 = arith.constant 0 : i32
    %c0_i32_0 = arith.constant 0 : i32
    %c0_i32_1 = arith.constant 0 : i32
    return %c0_i32, %c0_i32_0 : i32, i32
  }
  func.func @transform_1(%arg0: i32) -> (i32, i32) {
    %c0_i32 = arith.constant 0 : i32
    %c0_i32_0 = arith.constant 0 : i32
    %c0_i32_1 = arith.constant 0 : i32
    return %c0_i32, %c0_i32_0 : i32, i32
  }
  func.func @transform_2(%arg0: i32) -> (i32, i32) {
    %c0_i32 = arith.constant 0 : i32
    %c0_i32_0 = arith.constant 0 : i32
    %c0_i32_1 = arith.constant 0 : i32
    return %c0_i32, %c0_i32_0 : i32, i32
  }
  func.func @transform_3(%arg0: i32) -> (i32, i32) {
    %c0_i32 = arith.constant 0 : i32
    %c0_i32_0 = arith.constant 0 : i32
    %c0_i32_1 = arith.constant 0 : i32
    return %c0_i32, %c0_i32_0 : i32, i32
  }
  func.func @transform_4(%arg0: i32) -> (i32, i32) {
    %c0_i32 = arith.constant 0 : i32
    %c0_i32_0 = arith.constant 0 : i32
    %c0_i32_1 = arith.constant 0 : i32
    return %c0_i32, %c0_i32_0 : i32, i32
  }
  func.func @transform_5(%arg0: i32) -> (i32, i32) {
    %c0_i32 = arith.constant 0 : i32
    %c0_i32_0 = arith.constant 0 : i32
    %c0_i32_1 = arith.constant 0 : i32
    return %c0_i32, %c0_i32_0 : i32, i32
  }
}

module attributes {stable_mosaic.version = 11 : i64} {
  func.func @_cond_kernel(%arg0: i32, %arg1: memref<2x32xf32, #tpu.memory_space<vmem>>, %arg2: memref<32x448xf32, #tpu.memory_space<vmem>>, %arg3: memref<1x448xf32, #tpu.memory_space<vmem>>, %arg4: memref<2x448xf32, #tpu.memory_space<vmem>>) attributes {dimension_semantics = [#tpu.dimension_semantics<arbitrary>], iteration_bounds = array<i64: 1>, scalar_prefetch = 0 : i64, scratch_operands = 0 : i64, tpu.core_type = #tpu.core_type<tc>, window_params = [{pipeline_mode = #tpu.pipeline_mode<synchronous>, transform_indices = @transform_0, window_bounds = array<i64: 2, 32>}, {pipeline_mode = #tpu.pipeline_mode<synchronous>, transform_indices = @transform_1, window_bounds = array<i64: 32, 448>}, {pipeline_mode = #tpu.pipeline_mode<synchronous>, transform_indices = @transform_2, window_bounds = array<i64: 1, 448>}, {pipeline_mode = #tpu.pipeline_mode<synchronous>, transform_indices = @transform_3, window_bounds = array<i64: 2, 448>}]} {
    %c0 = arith.constant 0 : index
    %c0_0 = arith.constant 0 : index
    %0 = vector.load %arg1[%c0, %c0_0] : memref<2x32xf32, #tpu.memory_space<vmem>>, vector<2x32xf32>
    %1 = arith.negf %0 : vector<2x32xf32>
    %2 = math.exp %1 : vector<2x32xf32>
    %cst = arith.constant 1.000000e+00 : f32
    %3 = vector.broadcast %cst : f32 to vector<2x32xf32>
    %4 = arith.addf %3, %2 : vector<2x32xf32>
    %5 = arith.divf %3, %4 : vector<2x32xf32>
    %6 = arith.mulf %0, %5 : vector<2x32xf32>
    %c0_1 = arith.constant 0 : index
    %c0_2 = arith.constant 0 : index
    %7 = vector.load %arg2[%c0_1, %c0_2] : memref<32x448xf32, #tpu.memory_space<vmem>>, vector<32x448xf32>
    %cst_3 = arith.constant dense<0.000000e+00> : vector<2x448xf32>
    %8 = tpu.matmul %6, %7, %cst_3 {dimension_numbers = #tpu.dot_dimension_numbers<[1], [0], [0], [1], [0, 0, 1, 1], [], []>} : vector<2x32xf32>, vector<32x448xf32>, vector<2x448xf32> -> vector<2x448xf32>
    %c0_4 = arith.constant 0 : index
    %c0_5 = arith.constant 0 : index
    %9 = vector.load %arg3[%c0_4, %c0_5] : memref<1x448xf32, #tpu.memory_space<vmem>>, vector<1x448xf32>
    %10 = vector.broadcast %9 : vector<1x448xf32> to vector<2x448xf32>
    %11 = arith.addf %8, %10 : vector<2x448xf32>
    %c0_6 = arith.constant 0 : index
    %c0_7 = arith.constant 0 : index
    %12 = vector.load %arg4[%c0_6, %c0_7] : memref<2x448xf32, #tpu.memory_space<vmem>>, vector<2x448xf32>
    tpu.vector_store %arg4[%c0_6, %c0_7], %11 {strides = array<i32>} : memref<2x448xf32, #tpu.memory_space<vmem>>, vector<2x448xf32>,
    return
  }
  func.func @transform_0(%arg0: i32) -> (i32, i32) {
    %c0_i32 = arith.constant 0 : i32
    %c0_i32_0 = arith.constant 0 : i32
    %c0_i32_1 = arith.constant 0 : i32
    return %c0_i32, %c0_i32_0 : i32, i32
  }
  func.func @transform_1(%arg0: i32) -> (i32, i32) {
    %c0_i32 = arith.constant 0 : i32
    %c0_i32_0 = arith.constant 0 : i32
    %c0_i32_1 = arith.constant 0 : i32
    return %c0_i32, %c0_i32_0 : i32, i32
  }
  func.func @transform_2(%arg0: i32) -> (i32, i32) {
    %c0_i32 = arith.constant 0 : i32
    %c0_i32_0 = arith.constant 0 : i32
    %c0_i32_1 = arith.constant 0 : i32
    return %c0_i32, %c0_i32_0 : i32, i32
  }
  func.func @transform_3(%arg0: i32) -> (i32, i32) {
    %c0_i32 = arith.constant 0 : i32
    %c0_i32_0 = arith.constant 0 : i32
    %c0_i32_1 = arith.constant 0 : i32
    return %c0_i32, %c0_i32_0 : i32, i32
  }
}

module attributes {stable_mosaic.version = 11 : i64} {
  func.func @_out_kernel(%arg0: i32, %arg1: memref<1x16x32xf32, #tpu.memory_space<vmem>>, %arg2: memref<1x2x32xf32, #tpu.memory_space<vmem>>, %arg3: memref<32x128xbf16, #tpu.memory_space<vmem>>, %arg4: memref<1x128xf32, #tpu.memory_space<vmem>>, %arg5: memref<1x16x128xf32, #tpu.memory_space<vmem>>) attributes {dimension_semantics = [#tpu.dimension_semantics<parallel>], iteration_bounds = array<i64: 2>, scalar_prefetch = 0 : i64, scratch_operands = 0 : i64, tpu.core_type = #tpu.core_type<tc>, window_params = [{transform_indices = @transform_0, window_bounds = array<i64: 1, 16, 32>}, {transform_indices = @transform_1, window_bounds = array<i64: 1, 2, 32>}, {pipeline_mode = #tpu.pipeline_mode<synchronous>, transform_indices = @transform_2, window_bounds = array<i64: 32, 128>}, {pipeline_mode = #tpu.pipeline_mode<synchronous>, transform_indices = @transform_3, window_bounds = array<i64: 1, 128>}, {transform_indices = @transform_4, window_bounds = array<i64: 1, 16, 128>}]} {
    %c0 = arith.constant 0 : index
    %c0_0 = arith.constant 0 : index
    %c0_1 = arith.constant 0 : index
    %0 = vector.load %arg1[%c0, %c0_0, %c0_1] : memref<1x16x32xf32, #tpu.memory_space<vmem>>, vector<1x16x32xf32>
    %1 = vector.shape_cast %0 : vector<1x16x32xf32> to vector<16x32xf32>
    %c0_2 = arith.constant 0 : index
    %c0_3 = arith.constant 0 : index
    %c0_4 = arith.constant 0 : index
    %2 = vector.load %arg2[%c0_2, %c0_3, %c0_4] : memref<1x2x32xf32, #tpu.memory_space<vmem>>, vector<1x2x32xf32>
    %3 = vector.shape_cast %2 : vector<1x2x32xf32> to vector<2x32xf32>
    %4 = vector.extract_strided_slice %3 {offsets = [0, 0], sizes = [1, 32], strides = [1, 1]} : vector<2x32xf32> to vector<1x32xf32>
    %5 = vector.extract_strided_slice %3 {offsets = [1, 0], sizes = [1, 32], strides = [1, 1]} : vector<2x32xf32> to vector<1x32xf32>
    %cst = arith.constant dense<0.000000e+00> : vector<16xf32>
    %6 = vector.multi_reduction <add>, %1, %cst [1] : vector<16x32xf32> to vector<16xf32>
    %7 = vector.shape_cast %6 : vector<16xf32> to vector<16x1xf32>
    %cst_5 = arith.constant 3.200000e+01 : f32
    %8 = vector.broadcast %cst_5 : f32 to vector<16x1xf32>
    %9 = arith.divf %7, %8 : vector<16x1xf32>
    %10 = vector.broadcast %9 : vector<16x1xf32> to vector<16x32xf32>
    %11 = arith.subf %1, %10 : vector<16x32xf32>
    %12 = arith.mulf %11, %11 : vector<16x32xf32>
    %cst_6 = arith.constant dense<0.000000e+00> : vector<16xf32>
    %13 = vector.multi_reduction <add>, %12, %cst_6 [1] : vector<16x32xf32> to vector<16xf32>
    %14 = vector.shape_cast %13 : vector<16xf32> to vector<16x1xf32>
    %cst_7 = arith.constant 3.200000e+01 : f32
    %15 = vector.broadcast %cst_7 : f32 to vector<16x1xf32>
    %16 = arith.divf %14, %15 : vector<16x1xf32>
    %17 = vector.broadcast %9 : vector<16x1xf32> to vector<16x32xf32>
    %18 = arith.subf %1, %17 : vector<16x32xf32>
    %cst_8 = arith.constant 9.99999997E-7 : f32
    %19 = vector.broadcast %cst_8 : f32 to vector<16x1xf32>
    %20 = arith.addf %16, %19 : vector<16x1xf32>
    %21 = math.rsqrt %20 : vector<16x1xf32>
    %22 = vector.broadcast %21 : vector<16x1xf32> to vector<16x32xf32>
    %23 = arith.mulf %18, %22 : vector<16x32xf32>
    %cst_9 = arith.constant 1.000000e+00 : f32
    %24 = vector.broadcast %cst_9 : f32 to vector<1x32xf32>
    %25 = arith.addf %24, %4 : vector<1x32xf32>
    %26 = vector.broadcast %25 : vector<1x32xf32> to vector<16x32xf32>
    %27 = arith.mulf %23, %26 : vector<16x32xf32>
    %28 = vector.broadcast %5 : vector<1x32xf32> to vector<16x32xf32>
    %29 = arith.addf %27, %28 : vector<16x32xf32>
    %30 = arith.truncf %29 : vector<16x32xf32> to vector<16x32xbf16>
    %c0_10 = arith.constant 0 : index
    %c0_11 = arith.constant 0 : index
    %31 = vector.load %arg3[%c0_10, %c0_11] : memref<32x128xbf16, #tpu.memory_space<vmem>>, vector<32x128xbf16>
    %cst_12 = arith.constant dense<0.000000e+00> : vector<16x128xf32>
    %32 = tpu.matmul %30, %31, %cst_12 {dimension_numbers = #tpu.dot_dimension_numbers<[1], [0], [0], [1], [0, 0, 1, 1], [], []>} : vector<16x32xbf16>, vector<32x128xbf16>, vector<16x128xf32> -> vector<16x128xf32>
    %c0_13 = arith.constant 0 : index
    %c0_14 = arith.constant 0 : index
    %33 = vector.load %arg4[%c0_13, %c0_14] : memref<1x128xf32, #tpu.memory_space<vmem>>, vector<1x128xf32>
    %34 = vector.broadcast %33 : vector<1x128xf32> to vector<16x128xf32>
    %35 = arith.addf %32, %34 : vector<16x128xf32>
    %36 = vector.shape_cast %35 : vector<16x128xf32> to vector<1x16x128xf32>
    %c0_15 = arith.constant 0 : index
    %c0_16 = arith.constant 0 : index
    %c0_17 = arith.constant 0 : index
    %37 = vector.load %arg5[%c0_15, %c0_16, %c0_17] : memref<1x16x128xf32, #tpu.memory_space<vmem>>, vector<1x16x128xf32>
    tpu.vector_store %arg5[%c0_15, %c0_16, %c0_17], %36 {strides = array<i32>} : memref<1x16x128xf32, #tpu.memory_space<vmem>>, vector<1x16x128xf32>,
    return
  }
  func.func @transform_0(%arg0: i32) -> (i32, i32, i32) {
    %c0_i32 = arith.constant 0 : i32
    %c0_i32_0 = arith.constant 0 : i32
    %c0_i32_1 = arith.constant 0 : i32
    return %arg0, %c0_i32, %c0_i32_0 : i32, i32, i32
  }
  func.func @transform_1(%arg0: i32) -> (i32, i32, i32) {
    %c0_i32 = arith.constant 0 : i32
    %c0_i32_0 = arith.constant 0 : i32
    %c0_i32_1 = arith.constant 0 : i32
    return %arg0, %c0_i32, %c0_i32_0 : i32, i32, i32
  }
  func.func @transform_2(%arg0: i32) -> (i32, i32) {
    %c0_i32 = arith.constant 0 : i32
    %c0_i32_0 = arith.constant 0 : i32
    %c0_i32_1 = arith.constant 0 : i32
    return %c0_i32, %c0_i32_0 : i32, i32
  }
  func.func @transform_3(%arg0: i32) -> (i32, i32) {
    %c0_i32 = arith.constant 0 : i32
    %c0_i32_0 = arith.constant 0 : i32
    %c0_i32_1 = arith.constant 0 : i32
    return %c0_i32, %c0_i32_0 : i32, i32
  }
  func.func @transform_4(%arg0: i32) -> (i32, i32, i32) {
    %c0_i32 = arith.constant 0 : i32
    %c0_i32_0 = arith.constant 0 : i32
    %c0_i32_1 = arith.constant 0 : i32
    return %arg0, %c0_i32, %c0_i32_0 : i32, i32, i32
  }
}

module attributes {stable_mosaic.version = 11 : i64} {
  func.func @_dit_block_kernel(%arg0: i32, %arg1: memref<1x16x32xf32, #tpu.memory_space<vmem>>, %arg2: memref<1x6x32xf32, #tpu.memory_space<vmem>>, %arg3: memref<32x96xbf16, #tpu.memory_space<vmem>>, %arg4: memref<1x96xf32, #tpu.memory_space<vmem>>, %arg5: memref<32x32xbf16, #tpu.memory_space<vmem>>, %arg6: memref<1x32xf32, #tpu.memory_space<vmem>>, %arg7: memref<32x128xbf16, #tpu.memory_space<vmem>>, %arg8: memref<1x128xf32, #tpu.memory_space<vmem>>, %arg9: memref<128x32xbf16, #tpu.memory_space<vmem>>, %arg10: memref<1x32xf32, #tpu.memory_space<vmem>>, %arg11: memref<1x16x32xf32, #tpu.memory_space<vmem>>) attributes {dimension_semantics = [#tpu.dimension_semantics<parallel>], iteration_bounds = array<i64: 2>, scalar_prefetch = 0 : i64, scratch_operands = 0 : i64, tpu.core_type = #tpu.core_type<tc>, window_params = [{transform_indices = @transform_0, window_bounds = array<i64: 1, 16, 32>}, {transform_indices = @transform_1, window_bounds = array<i64: 1, 6, 32>}, {pipeline_mode = #tpu.pipeline_mode<synchronous>, transform_indices = @transform_2, window_bounds = array<i64: 32, 96>}, {pipeline_mode = #tpu.pipeline_mode<synchronous>, transform_indices = @transform_3, window_bounds = array<i64: 1, 96>}, {pipeline_mode = #tpu.pipeline_mode<synchronous>, transform_indices = @transform_4, window_bounds = array<i64: 32, 32>}, {pipeline_mode = #tpu.pipeline_mode<synchronous>, transform_indices = @transform_5, window_bounds = array<i64: 1, 32>}, {pipeline_mode = #tpu.pipeline_mode<synchronous>, transform_indices = @transform_6, window_bounds = array<i64: 32, 128>}, {pipeline_mode = #tpu.pipeline_mode<synchronous>, transform_indices = @transform_7, window_bounds = array<i64: 1, 128>}, {pipeline_mode = #tpu.pipeline_mode<synchronous>, transform_indices = @transform_8, window_bounds = array<i64: 128, 32>}, {pipeline_mode = #tpu.pipeline_mode<synchronous>, transform_indices = @transform_9, window_bounds = array<i64: 1, 32>}, {transform_indices = @transform_10, window_bounds = array<i64: 1, 16, 32>}]} {
    %c0 = arith.constant 0 : index
    %c0_0 = arith.constant 0 : index
    %c0_1 = arith.constant 0 : index
    %0 = vector.load %arg1[%c0, %c0_0, %c0_1] : memref<1x16x32xf32, #tpu.memory_space<vmem>>, vector<1x16x32xf32>
    %1 = vector.shape_cast %0 : vector<1x16x32xf32> to vector<16x32xf32>
    %c0_2 = arith.constant 0 : index
    %c0_3 = arith.constant 0 : index
    %c0_4 = arith.constant 0 : index
    %2 = vector.load %arg2[%c0_2, %c0_3, %c0_4] : memref<1x6x32xf32, #tpu.memory_space<vmem>>, vector<1x6x32xf32>
    %3 = vector.shape_cast %2 : vector<1x6x32xf32> to vector<6x32xf32>
    %4 = vector.extract_strided_slice %3 {offsets = [0, 0], sizes = [1, 32], strides = [1, 1]} : vector<6x32xf32> to vector<1x32xf32>
    %5 = vector.extract_strided_slice %3 {offsets = [1, 0], sizes = [1, 32], strides = [1, 1]} : vector<6x32xf32> to vector<1x32xf32>
    %6 = vector.extract_strided_slice %3 {offsets = [2, 0], sizes = [1, 32], strides = [1, 1]} : vector<6x32xf32> to vector<1x32xf32>
    %7 = vector.extract_strided_slice %3 {offsets = [3, 0], sizes = [1, 32], strides = [1, 1]} : vector<6x32xf32> to vector<1x32xf32>
    %8 = vector.extract_strided_slice %3 {offsets = [4, 0], sizes = [1, 32], strides = [1, 1]} : vector<6x32xf32> to vector<1x32xf32>
    %9 = vector.extract_strided_slice %3 {offsets = [5, 0], sizes = [1, 32], strides = [1, 1]} : vector<6x32xf32> to vector<1x32xf32>
    %cst = arith.constant dense<0.000000e+00> : vector<16xf32>
    %10 = vector.multi_reduction <add>, %1, %cst [1] : vector<16x32xf32> to vector<16xf32>
    %11 = vector.shape_cast %10 : vector<16xf32> to vector<16x1xf32>
    %cst_5 = arith.constant 3.200000e+01 : f32
    %12 = vector.broadcast %cst_5 : f32 to vector<16x1xf32>
    %13 = arith.divf %11, %12 : vector<16x1xf32>
    %14 = vector.broadcast %13 : vector<16x1xf32> to vector<16x32xf32>
    %15 = arith.subf %1, %14 : vector<16x32xf32>
    %16 = arith.mulf %15, %15 : vector<16x32xf32>
    %cst_6 = arith.constant dense<0.000000e+00> : vector<16xf32>
    %17 = vector.multi_reduction <add>, %16, %cst_6 [1] : vector<16x32xf32> to vector<16xf32>
    %18 = vector.shape_cast %17 : vector<16xf32> to vector<16x1xf32>
    %cst_7 = arith.constant 3.200000e+01 : f32
    %19 = vector.broadcast %cst_7 : f32 to vector<16x1xf32>
    %20 = arith.divf %18, %19 : vector<16x1xf32>
    %21 = vector.broadcast %13 : vector<16x1xf32> to vector<16x32xf32>
    %22 = arith.subf %1, %21 : vector<16x32xf32>
    %cst_8 = arith.constant 9.99999997E-7 : f32
    %23 = vector.broadcast %cst_8 : f32 to vector<16x1xf32>
    %24 = arith.addf %20, %23 : vector<16x1xf32>
    %25 = math.rsqrt %24 : vector<16x1xf32>
    %26 = vector.broadcast %25 : vector<16x1xf32> to vector<16x32xf32>
    %27 = arith.mulf %22, %26 : vector<16x32xf32>
    %cst_9 = arith.constant 1.000000e+00 : f32
    %28 = vector.broadcast %cst_9 : f32 to vector<1x32xf32>
    %29 = arith.addf %28, %4 : vector<1x32xf32>
    %30 = vector.broadcast %29 : vector<1x32xf32> to vector<16x32xf32>
    %31 = arith.mulf %27, %30 : vector<16x32xf32>
    %32 = vector.broadcast %5 : vector<1x32xf32> to vector<16x32xf32>
    %33 = arith.addf %31, %32 : vector<16x32xf32>
    %34 = arith.truncf %33 : vector<16x32xf32> to vector<16x32xbf16>
    %c0_10 = arith.constant 0 : index
    %c0_11 = arith.constant 0 : index
    %35 = vector.load %arg3[%c0_10, %c0_11] : memref<32x96xbf16, #tpu.memory_space<vmem>>, vector<32x96xbf16>
    %cst_12 = arith.constant dense<0.000000e+00> : vector<16x96xf32>
    %36 = tpu.matmul %34, %35, %cst_12 {dimension_numbers = #tpu.dot_dimension_numbers<[1], [0], [0], [1], [0, 0, 1, 1], [], []>} : vector<16x32xbf16>, vector<32x96xbf16>, vector<16x96xf32> -> vector<16x96xf32>
    %c0_13 = arith.constant 0 : index
    %c0_14 = arith.constant 0 : index
    %37 = vector.load %arg4[%c0_13, %c0_14] : memref<1x96xf32, #tpu.memory_space<vmem>>, vector<1x96xf32>
    %38 = vector.broadcast %37 : vector<1x96xf32> to vector<16x96xf32>
    %39 = arith.addf %36, %38 : vector<16x96xf32>
    %40 = vector.extract_strided_slice %39 {offsets = [0, 0], sizes = [16, 8], strides = [1, 1]} : vector<16x96xf32> to vector<16x8xf32>
    %cst_15 = arith.constant 0.353553385 : f32
    %41 = vector.broadcast %cst_15 : f32 to vector<16x8xf32>
    %42 = arith.mulf %40, %41 : vector<16x8xf32>
    %43 = arith.truncf %42 : vector<16x8xf32> to vector<16x8xbf16>
    %44 = vector.extract_strided_slice %39 {offsets = [0, 32], sizes = [16, 8], strides = [1, 1]} : vector<16x96xf32> to vector<16x8xf32>
    %45 = arith.truncf %44 : vector<16x8xf32> to vector<16x8xbf16>
    %46 = vector.extract_strided_slice %39 {offsets = [0, 64], sizes = [16, 8], strides = [1, 1]} : vector<16x96xf32> to vector<16x8xf32>
    %47 = arith.truncf %46 : vector<16x8xf32> to vector<16x8xbf16>
    %cst_16 = arith.constant dense<0.000000e+00> : vector<16x16xf32>
    %48 = tpu.matmul %43, %45, %cst_16 {dimension_numbers = #tpu.dot_dimension_numbers<[1], [1], [0], [0], [0, 0, 1, 0], [], []>} : vector<16x8xbf16>, vector<16x8xbf16>, vector<16x16xf32> -> vector<16x16xf32>
    %cst_17 = arith.constant dense<0xFF800000> : vector<16xf32>
    %49 = vector.multi_reduction <maximumf>, %48, %cst_17 [1] : vector<16x16xf32> to vector<16xf32>
    %50 = vector.shape_cast %49 : vector<16xf32> to vector<16x1xf32>
    %51 = vector.broadcast %50 : vector<16x1xf32> to vector<16x16xf32>
    %52 = arith.subf %48, %51 : vector<16x16xf32>
    %53 = math.exp %52 : vector<16x16xf32>
    %cst_18 = arith.constant dense<0.000000e+00> : vector<16xf32>
    %54 = vector.multi_reduction <add>, %53, %cst_18 [1] : vector<16x16xf32> to vector<16xf32>
    %55 = vector.shape_cast %54 : vector<16xf32> to vector<16x1xf32>
    %56 = tpu.reciprocal %55 {approx = true} : vector<16x1xf32> -> vector<16x1xf32>
    %57 = vector.broadcast %56 : vector<16x1xf32> to vector<16x16xf32>
    %58 = arith.mulf %53, %57 : vector<16x16xf32>
    %59 = arith.truncf %58 : vector<16x16xf32> to vector<16x16xbf16>
    %cst_19 = arith.constant dense<0.000000e+00> : vector<16x8xf32>
    %60 = tpu.matmul %59, %47, %cst_19 {dimension_numbers = #tpu.dot_dimension_numbers<[1], [0], [0], [1], [0, 0, 1, 1], [], []>} : vector<16x16xbf16>, vector<16x8xbf16>, vector<16x8xf32> -> vector<16x8xf32>
    %61 = vector.extract_strided_slice %39 {offsets = [0, 8], sizes = [16, 8], strides = [1, 1]} : vector<16x96xf32> to vector<16x8xf32>
    %cst_20 = arith.constant 0.353553385 : f32
    %62 = vector.broadcast %cst_20 : f32 to vector<16x8xf32>
    %63 = arith.mulf %61, %62 : vector<16x8xf32>
    %64 = arith.truncf %63 : vector<16x8xf32> to vector<16x8xbf16>
    %65 = vector.extract_strided_slice %39 {offsets = [0, 40], sizes = [16, 8], strides = [1, 1]} : vector<16x96xf32> to vector<16x8xf32>
    %66 = arith.truncf %65 : vector<16x8xf32> to vector<16x8xbf16>
    %67 = vector.extract_strided_slice %39 {offsets = [0, 72], sizes = [16, 8], strides = [1, 1]} : vector<16x96xf32> to vector<16x8xf32>
    %68 = arith.truncf %67 : vector<16x8xf32> to vector<16x8xbf16>
    %cst_21 = arith.constant dense<0.000000e+00> : vector<16x16xf32>
    %69 = tpu.matmul %64, %66, %cst_21 {dimension_numbers = #tpu.dot_dimension_numbers<[1], [1], [0], [0], [0, 0, 1, 0], [], []>} : vector<16x8xbf16>, vector<16x8xbf16>, vector<16x16xf32> -> vector<16x16xf32>
    %cst_22 = arith.constant dense<0xFF800000> : vector<16xf32>
    %70 = vector.multi_reduction <maximumf>, %69, %cst_22 [1] : vector<16x16xf32> to vector<16xf32>
    %71 = vector.shape_cast %70 : vector<16xf32> to vector<16x1xf32>
    %72 = vector.broadcast %71 : vector<16x1xf32> to vector<16x16xf32>
    %73 = arith.subf %69, %72 : vector<16x16xf32>
    %74 = math.exp %73 : vector<16x16xf32>
    %cst_23 = arith.constant dense<0.000000e+00> : vector<16xf32>
    %75 = vector.multi_reduction <add>, %74, %cst_23 [1] : vector<16x16xf32> to vector<16xf32>
    %76 = vector.shape_cast %75 : vector<16xf32> to vector<16x1xf32>
    %77 = tpu.reciprocal %76 {approx = true} : vector<16x1xf32> -> vector<16x1xf32>
    %78 = vector.broadcast %77 : vector<16x1xf32> to vector<16x16xf32>
    %79 = arith.mulf %74, %78 : vector<16x16xf32>
    %80 = arith.truncf %79 : vector<16x16xf32> to vector<16x16xbf16>
    %cst_24 = arith.constant dense<0.000000e+00> : vector<16x8xf32>
    %81 = tpu.matmul %80, %68, %cst_24 {dimension_numbers = #tpu.dot_dimension_numbers<[1], [0], [0], [1], [0, 0, 1, 1], [], []>} : vector<16x16xbf16>, vector<16x8xbf16>, vector<16x8xf32> -> vector<16x8xf32>
    %82 = vector.extract_strided_slice %39 {offsets = [0, 16], sizes = [16, 8], strides = [1, 1]} : vector<16x96xf32> to vector<16x8xf32>
    %cst_25 = arith.constant 0.353553385 : f32
    %83 = vector.broadcast %cst_25 : f32 to vector<16x8xf32>
    %84 = arith.mulf %82, %83 : vector<16x8xf32>
    %85 = arith.truncf %84 : vector<16x8xf32> to vector<16x8xbf16>
    %86 = vector.extract_strided_slice %39 {offsets = [0, 48], sizes = [16, 8], strides = [1, 1]} : vector<16x96xf32> to vector<16x8xf32>
    %87 = arith.truncf %86 : vector<16x8xf32> to vector<16x8xbf16>
    %88 = vector.extract_strided_slice %39 {offsets = [0, 80], sizes = [16, 8], strides = [1, 1]} : vector<16x96xf32> to vector<16x8xf32>
    %89 = arith.truncf %88 : vector<16x8xf32> to vector<16x8xbf16>
    %cst_26 = arith.constant dense<0.000000e+00> : vector<16x16xf32>
    %90 = tpu.matmul %85, %87, %cst_26 {dimension_numbers = #tpu.dot_dimension_numbers<[1], [1], [0], [0], [0, 0, 1, 0], [], []>} : vector<16x8xbf16>, vector<16x8xbf16>, vector<16x16xf32> -> vector<16x16xf32>
    %cst_27 = arith.constant dense<0xFF800000> : vector<16xf32>
    %91 = vector.multi_reduction <maximumf>, %90, %cst_27 [1] : vector<16x16xf32> to vector<16xf32>
    %92 = vector.shape_cast %91 : vector<16xf32> to vector<16x1xf32>
    %93 = vector.broadcast %92 : vector<16x1xf32> to vector<16x16xf32>
    %94 = arith.subf %90, %93 : vector<16x16xf32>
    %95 = math.exp %94 : vector<16x16xf32>
    %cst_28 = arith.constant dense<0.000000e+00> : vector<16xf32>
    %96 = vector.multi_reduction <add>, %95, %cst_28 [1] : vector<16x16xf32> to vector<16xf32>
    %97 = vector.shape_cast %96 : vector<16xf32> to vector<16x1xf32>
    %98 = tpu.reciprocal %97 {approx = true} : vector<16x1xf32> -> vector<16x1xf32>
    %99 = vector.broadcast %98 : vector<16x1xf32> to vector<16x16xf32>
    %100 = arith.mulf %95, %99 : vector<16x16xf32>
    %101 = arith.truncf %100 : vector<16x16xf32> to vector<16x16xbf16>
    %cst_29 = arith.constant dense<0.000000e+00> : vector<16x8xf32>
    %102 = tpu.matmul %101, %89, %cst_29 {dimension_numbers = #tpu.dot_dimension_numbers<[1], [0], [0], [1], [0, 0, 1, 1], [], []>} : vector<16x16xbf16>, vector<16x8xbf16>, vector<16x8xf32> -> vector<16x8xf32>
    %103 = vector.extract_strided_slice %39 {offsets = [0, 24], sizes = [16, 8], strides = [1, 1]} : vector<16x96xf32> to vector<16x8xf32>
    %cst_30 = arith.constant 0.353553385 : f32
    %104 = vector.broadcast %cst_30 : f32 to vector<16x8xf32>
    %105 = arith.mulf %103, %104 : vector<16x8xf32>
    %106 = arith.truncf %105 : vector<16x8xf32> to vector<16x8xbf16>
    %107 = vector.extract_strided_slice %39 {offsets = [0, 56], sizes = [16, 8], strides = [1, 1]} : vector<16x96xf32> to vector<16x8xf32>
    %108 = arith.truncf %107 : vector<16x8xf32> to vector<16x8xbf16>
    %109 = vector.extract_strided_slice %39 {offsets = [0, 88], sizes = [16, 8], strides = [1, 1]} : vector<16x96xf32> to vector<16x8xf32>
    %110 = arith.truncf %109 : vector<16x8xf32> to vector<16x8xbf16>
    %cst_31 = arith.constant dense<0.000000e+00> : vector<16x16xf32>
    %111 = tpu.matmul %106, %108, %cst_31 {dimension_numbers = #tpu.dot_dimension_numbers<[1], [1], [0], [0], [0, 0, 1, 0], [], []>} : vector<16x8xbf16>, vector<16x8xbf16>, vector<16x16xf32> -> vector<16x16xf32>
    %cst_32 = arith.constant dense<0xFF800000> : vector<16xf32>
    %112 = vector.multi_reduction <maximumf>, %111, %cst_32 [1] : vector<16x16xf32> to vector<16xf32>
    %113 = vector.shape_cast %112 : vector<16xf32> to vector<16x1xf32>
    %114 = vector.broadcast %113 : vector<16x1xf32> to vector<16x16xf32>
    %115 = arith.subf %111, %114 : vector<16x16xf32>
    %116 = math.exp %115 : vector<16x16xf32>
    %cst_33 = arith.constant dense<0.000000e+00> : vector<16xf32>
    %117 = vector.multi_reduction <add>, %116, %cst_33 [1] : vector<16x16xf32> to vector<16xf32>
    %118 = vector.shape_cast %117 : vector<16xf32> to vector<16x1xf32>
    %119 = tpu.reciprocal %118 {approx = true} : vector<16x1xf32> -> vector<16x1xf32>
    %120 = vector.broadcast %119 : vector<16x1xf32> to vector<16x16xf32>
    %121 = arith.mulf %116, %120 : vector<16x16xf32>
    %122 = arith.truncf %121 : vector<16x16xf32> to vector<16x16xbf16>
    %cst_34 = arith.constant dense<0.000000e+00> : vector<16x8xf32>
    %123 = tpu.matmul %122, %110, %cst_34 {dimension_numbers = #tpu.dot_dimension_numbers<[1], [0], [0], [1], [0, 0, 1, 1], [], []>} : vector<16x16xbf16>, vector<16x8xbf16>, vector<16x8xf32> -> vector<16x8xf32>
    %124 = tpu.concatenate %60, %81, %102, %123 in 1 : vector<16x8xf32>, vector<16x8xf32>, vector<16x8xf32>, vector<16x8xf32> -> vector<16x32xf32>
    %125 = arith.truncf %124 : vector<16x32xf32> to vector<16x32xbf16>
    %c0_35 = arith.constant 0 : index
    %c0_36 = arith.constant 0 : index
    %126 = vector.load %arg5[%c0_35, %c0_36] : memref<32x32xbf16, #tpu.memory_space<vmem>>, vector<32x32xbf16>
    %cst_37 = arith.constant dense<0.000000e+00> : vector<16x32xf32>
    %127 = tpu.matmul %125, %126, %cst_37 {dimension_numbers = #tpu.dot_dimension_numbers<[1], [0], [0], [1], [0, 0, 1, 1], [], []>} : vector<16x32xbf16>, vector<32x32xbf16>, vector<16x32xf32> -> vector<16x32xf32>
    %c0_38 = arith.constant 0 : index
    %c0_39 = arith.constant 0 : index
    %128 = vector.load %arg6[%c0_38, %c0_39] : memref<1x32xf32, #tpu.memory_space<vmem>>, vector<1x32xf32>
    %129 = vector.broadcast %128 : vector<1x32xf32> to vector<16x32xf32>
    %130 = arith.addf %127, %129 : vector<16x32xf32>
    %131 = vector.broadcast %8 : vector<1x32xf32> to vector<16x32xf32>
    %132 = arith.mulf %130, %131 : vector<16x32xf32>
    %133 = arith.addf %1, %132 : vector<16x32xf32>
    %cst_40 = arith.constant dense<0.000000e+00> : vector<16xf32>
    %134 = vector.multi_reduction <add>, %133, %cst_40 [1] : vector<16x32xf32> to vector<16xf32>
    %135 = vector.shape_cast %134 : vector<16xf32> to vector<16x1xf32>
    %cst_41 = arith.constant 3.200000e+01 : f32
    %136 = vector.broadcast %cst_41 : f32 to vector<16x1xf32>
    %137 = arith.divf %135, %136 : vector<16x1xf32>
    %138 = vector.broadcast %137 : vector<16x1xf32> to vector<16x32xf32>
    %139 = arith.subf %133, %138 : vector<16x32xf32>
    %140 = arith.mulf %139, %139 : vector<16x32xf32>
    %cst_42 = arith.constant dense<0.000000e+00> : vector<16xf32>
    %141 = vector.multi_reduction <add>, %140, %cst_42 [1] : vector<16x32xf32> to vector<16xf32>
    %142 = vector.shape_cast %141 : vector<16xf32> to vector<16x1xf32>
    %cst_43 = arith.constant 3.200000e+01 : f32
    %143 = vector.broadcast %cst_43 : f32 to vector<16x1xf32>
    %144 = arith.divf %142, %143 : vector<16x1xf32>
    %145 = vector.broadcast %137 : vector<16x1xf32> to vector<16x32xf32>
    %146 = arith.subf %133, %145 : vector<16x32xf32>
    %cst_44 = arith.constant 9.99999997E-7 : f32
    %147 = vector.broadcast %cst_44 : f32 to vector<16x1xf32>
    %148 = arith.addf %144, %147 : vector<16x1xf32>
    %149 = math.rsqrt %148 : vector<16x1xf32>
    %150 = vector.broadcast %149 : vector<16x1xf32> to vector<16x32xf32>
    %151 = arith.mulf %146, %150 : vector<16x32xf32>
    %cst_45 = arith.constant 1.000000e+00 : f32
    %152 = vector.broadcast %cst_45 : f32 to vector<1x32xf32>
    %153 = arith.addf %152, %6 : vector<1x32xf32>
    %154 = vector.broadcast %153 : vector<1x32xf32> to vector<16x32xf32>
    %155 = arith.mulf %151, %154 : vector<16x32xf32>
    %156 = vector.broadcast %7 : vector<1x32xf32> to vector<16x32xf32>
    %157 = arith.addf %155, %156 : vector<16x32xf32>
    %158 = arith.truncf %157 : vector<16x32xf32> to vector<16x32xbf16>
    %c0_46 = arith.constant 0 : index
    %c0_47 = arith.constant 0 : index
    %159 = vector.load %arg7[%c0_46, %c0_47] : memref<32x128xbf16, #tpu.memory_space<vmem>>, vector<32x128xbf16>
    %cst_48 = arith.constant dense<0.000000e+00> : vector<16x128xf32>
    %160 = tpu.matmul %158, %159, %cst_48 {dimension_numbers = #tpu.dot_dimension_numbers<[1], [0], [0], [1], [0, 0, 1, 1], [], []>} : vector<16x32xbf16>, vector<32x128xbf16>, vector<16x128xf32> -> vector<16x128xf32>
    %c0_49 = arith.constant 0 : index
    %c0_50 = arith.constant 0 : index
    %161 = vector.load %arg8[%c0_49, %c0_50] : memref<1x128xf32, #tpu.memory_space<vmem>>, vector<1x128xf32>
    %162 = vector.broadcast %161 : vector<1x128xf32> to vector<16x128xf32>
    %163 = arith.addf %160, %162 : vector<16x128xf32>
    %cst_51 = arith.constant 5.000000e-01 : f32
    %164 = vector.broadcast %cst_51 : f32 to vector<16x128xf32>
    %165 = arith.mulf %164, %163 : vector<16x128xf32>
    %cst_52 = arith.constant 0.707106769 : f32
    %166 = vector.broadcast %cst_52 : f32 to vector<16x128xf32>
    %167 = arith.mulf %163, %166 : vector<16x128xf32>
    %168 = math.erf %167 : vector<16x128xf32>
    %cst_53 = arith.constant 1.000000e+00 : f32
    %169 = vector.broadcast %cst_53 : f32 to vector<16x128xf32>
    %170 = arith.addf %169, %168 : vector<16x128xf32>
    %171 = arith.mulf %165, %170 : vector<16x128xf32>
    %172 = arith.truncf %171 : vector<16x128xf32> to vector<16x128xbf16>
    %c0_54 = arith.constant 0 : index
    %c0_55 = arith.constant 0 : index
    %173 = vector.load %arg9[%c0_54, %c0_55] : memref<128x32xbf16, #tpu.memory_space<vmem>>, vector<128x32xbf16>
    %cst_56 = arith.constant dense<0.000000e+00> : vector<16x32xf32>
    %174 = tpu.matmul %172, %173, %cst_56 {dimension_numbers = #tpu.dot_dimension_numbers<[1], [0], [0], [1], [0, 0, 1, 1], [], []>} : vector<16x128xbf16>, vector<128x32xbf16>, vector<16x32xf32> -> vector<16x32xf32>
    %c0_57 = arith.constant 0 : index
    %c0_58 = arith.constant 0 : index
    %175 = vector.load %arg10[%c0_57, %c0_58] : memref<1x32xf32, #tpu.memory_space<vmem>>, vector<1x32xf32>
    %176 = vector.broadcast %175 : vector<1x32xf32> to vector<16x32xf32>
    %177 = arith.addf %174, %176 : vector<16x32xf32>
    %178 = vector.broadcast %9 : vector<1x32xf32> to vector<16x32xf32>
    %179 = arith.mulf %177, %178 : vector<16x32xf32>
    %180 = arith.addf %133, %179 : vector<16x32xf32>
    %181 = vector.shape_cast %180 : vector<16x32xf32> to vector<1x16x32xf32>
    %c0_59 = arith.constant 0 : index
    %c0_60 = arith.constant 0 : index
    %c0_61 = arith.constant 0 : index
    %182 = vector.load %arg11[%c0_59, %c0_60, %c0_61] : memref<1x16x32xf32, #tpu.memory_space<vmem>>, vector<1x16x32xf32>
    tpu.vector_store %arg11[%c0_59, %c0_60, %c0_61], %181 {strides = array<i32>} : memref<1x16x32xf32, #tpu.memory_space<vmem>>, vector<1x16x32xf32>,
    return
  }
  func.func @transform_0(%arg0: i32) -> (i32, i32, i32) {
    %c0_i32 = arith.constant 0 : i32
    %c0_i32_0 = arith.constant 0 : i32
    %c0_i32_1 = arith.constant 0 : i32
    return %arg0, %c0_i32, %c0_i32_0 : i32, i32, i32
  }
  func.func @transform_1(%arg0: i32) -> (i32, i32, i32) {
    %c0_i32 = arith.constant 0 : i32
    %c0_i32_0 = arith.constant 0 : i32
    %c0_i32_1 = arith.constant 0 : i32
    return %arg0, %c0_i32, %c0_i32_0 : i32, i32, i32
  }
  func.func @transform_2(%arg0: i32) -> (i32, i32) {
    %c0_i32 = arith.constant 0 : i32
    %c0_i32_0 = arith.constant 0 : i32
    %c0_i32_1 = arith.constant 0 : i32
    return %c0_i32, %c0_i32_0 : i32, i32
  }
  func.func @transform_3(%arg0: i32) -> (i32, i32) {
    %c0_i32 = arith.constant 0 : i32
    %c0_i32_0 = arith.constant 0 : i32
    %c0_i32_1 = arith.constant 0 : i32
    return %c0_i32, %c0_i32_0 : i32, i32
  }
  func.func @transform_4(%arg0: i32) -> (i32, i32) {
    %c0_i32 = arith.constant 0 : i32
    %c0_i32_0 = arith.constant 0 : i32
    %c0_i32_1 = arith.constant 0 : i32
    return %c0_i32, %c0_i32_0 : i32, i32
  }
  func.func @transform_5(%arg0: i32) -> (i32, i32) {
    %c0_i32 = arith.constant 0 : i32
    %c0_i32_0 = arith.constant 0 : i32
    %c0_i32_1 = arith.constant 0 : i32
    return %c0_i32, %c0_i32_0 : i32, i32
  }
  func.func @transform_6(%arg0: i32) -> (i32, i32) {
    %c0_i32 = arith.constant 0 : i32
    %c0_i32_0 = arith.constant 0 : i32
    %c0_i32_1 = arith.constant 0 : i32
    return %c0_i32, %c0_i32_0 : i32, i32
  }
  func.func @transform_7(%arg0: i32) -> (i32, i32) {
    %c0_i32 = arith.constant 0 : i32
    %c0_i32_0 = arith.constant 0 : i32
    %c0_i32_1 = arith.constant 0 : i32
    return %c0_i32, %c0_i32_0 : i32, i32
  }
  func.func @transform_8(%arg0: i32) -> (i32, i32) {
    %c0_i32 = arith.constant 0 : i32
    %c0_i32_0 = arith.constant 0 : i32
    %c0_i32_1 = arith.constant 0 : i32
    return %c0_i32, %c0_i32_0 : i32, i32
  }
  func.func @transform_9(%arg0: i32) -> (i32, i32) {
    %c0_i32 = arith.constant 0 : i32
    %c0_i32_0 = arith.constant 0 : i32
    %c0_i32_1 = arith.constant 0 : i32
    return %c0_i32, %c0_i32_0 : i32, i32
  }
  func.func @transform_10(%arg0: i32) -> (i32, i32, i32) {
    %c0_i32 = arith.constant 0 : i32
    %c0_i32_0 = arith.constant 0 : i32
    %c0_i32_1 = arith.constant 0 : i32
    return %arg0, %c0_i32, %c0_i32_0 : i32, i32, i32
  }
}

module attributes {stable_mosaic.version = 11 : i64} {
  func.func @_patch_embed_kernel(%arg0: i32, %arg1: memref<1x16x48xbf16, #tpu.memory_space<vmem>>, %arg2: memref<48x32xbf16, #tpu.memory_space<vmem>>, %arg3: memref<1x32xf32, #tpu.memory_space<vmem>>, %arg4: memref<16x32xf32, #tpu.memory_space<vmem>>, %arg5: memref<1x16x32xf32, #tpu.memory_space<vmem>>) attributes {dimension_semantics = [#tpu.dimension_semantics<parallel>], iteration_bounds = array<i64: 2>, scalar_prefetch = 0 : i64, scratch_operands = 0 : i64, tpu.core_type = #tpu.core_type<tc>, window_params = [{transform_indices = @transform_0, window_bounds = array<i64: 1, 16, 48>}, {pipeline_mode = #tpu.pipeline_mode<synchronous>, transform_indices = @transform_1, window_bounds = array<i64: 48, 32>}, {pipeline_mode = #tpu.pipeline_mode<synchronous>, transform_indices = @transform_2, window_bounds = array<i64: 1, 32>}, {pipeline_mode = #tpu.pipeline_mode<synchronous>, transform_indices = @transform_3, window_bounds = array<i64: 16, 32>}, {transform_indices = @transform_4, window_bounds = array<i64: 1, 16, 32>}]} {
    %c0 = arith.constant 0 : index
    %c0_0 = arith.constant 0 : index
    %c0_1 = arith.constant 0 : index
    %0 = vector.load %arg1[%c0, %c0_0, %c0_1] : memref<1x16x48xbf16, #tpu.memory_space<vmem>>, vector<1x16x48xbf16>
    %1 = vector.shape_cast %0 : vector<1x16x48xbf16> to vector<16x48xbf16>
    %c0_2 = arith.constant 0 : index
    %c0_3 = arith.constant 0 : index
    %2 = vector.load %arg2[%c0_2, %c0_3] : memref<48x32xbf16, #tpu.memory_space<vmem>>, vector<48x32xbf16>
    %cst = arith.constant dense<0.000000e+00> : vector<16x32xf32>
    %3 = tpu.matmul %1, %2, %cst {dimension_numbers = #tpu.dot_dimension_numbers<[1], [0], [0], [1], [0, 0, 1, 1], [], []>} : vector<16x48xbf16>, vector<48x32xbf16>, vector<16x32xf32> -> vector<16x32xf32>
    %c0_4 = arith.constant 0 : index
    %c0_5 = arith.constant 0 : index
    %4 = vector.load %arg3[%c0_4, %c0_5] : memref<1x32xf32, #tpu.memory_space<vmem>>, vector<1x32xf32>
    %5 = vector.broadcast %4 : vector<1x32xf32> to vector<16x32xf32>
    %6 = arith.addf %3, %5 : vector<16x32xf32>
    %c0_6 = arith.constant 0 : index
    %c0_7 = arith.constant 0 : index
    %7 = vector.load %arg4[%c0_6, %c0_7] : memref<16x32xf32, #tpu.memory_space<vmem>>, vector<16x32xf32>
    %8 = arith.addf %6, %7 : vector<16x32xf32>
    %9 = vector.shape_cast %8 : vector<16x32xf32> to vector<1x16x32xf32>
    %c0_8 = arith.constant 0 : index
    %c0_9 = arith.constant 0 : index
    %c0_10 = arith.constant 0 : index
    %10 = vector.load %arg5[%c0_8, %c0_9, %c0_10] : memref<1x16x32xf32, #tpu.memory_space<vmem>>, vector<1x16x32xf32>
    tpu.vector_store %arg5[%c0_8, %c0_9, %c0_10], %9 {strides = array<i32>} : memref<1x16x32xf32, #tpu.memory_space<vmem>>, vector<1x16x32xf32>,
    return
  }
  func.func @transform_0(%arg0: i32) -> (i32, i32, i32) {
    %c0_i32 = arith.constant 0 : i32
    %c0_i32_0 = arith.constant 0 : i32
    %c0_i32_1 = arith.constant 0 : i32
    return %arg0, %c0_i32, %c0_i32_0 : i32, i32, i32
  }
  func.func @transform_1(%arg0: i32) -> (i32, i32) {
    %c0_i32 = arith.constant 0 : i32
    %c0_i32_0 = arith.constant 0 : i32
    %c0_i32_1 = arith.constant 0 : i32
    return %c0_i32, %c0_i32_0 : i32, i32
  }
  func.func @transform_2(%arg0: i32) -> (i32, i32) {
    %c0_i32 = arith.constant 0 : i32
    %c0_i32_0 = arith.constant 0 : i32
    %c0_i32_1 = arith.constant 0 : i32
    return %c0_i32, %c0_i32_0 : i32, i32
  }
  func.func @transform_3(%arg0: i32) -> (i32, i32) {
    %c0_i32 = arith.constant 0 : i32
    %c0_i32_0 = arith.constant 0 : i32
    %c0_i32_1 = arith.constant 0 : i32
    return %c0_i32, %c0_i32_0 : i32, i32
  }
  func.func @transform_4(%arg0: i32) -> (i32, i32, i32) {
    %c0_i32 = arith.constant 0 : i32
    %c0_i32_0 = arith.constant 0 : i32
    %c0_i32_1 = arith.constant 0 : i32
    return %arg0, %c0_i32, %c0_i32_0 : i32, i32, i32
  }
}

</mosaic_0001>

<llo_original>
// kernel: forward.8
$region0: #{forward.8}
  #allocation0 [shape = 'u32[]', space=smem, size = 0x4, offset = 0x4, fixed_abs, tag = 'smem constant byte address 0x4 - core index']
  #allocation1 [shape = 'u32[144,128]{1,0:T(1,128)}', space=vmem, size = 0x12000, scoped, tag = 'internal scratch']
  %s0 = inlined_call_operand.vmem [shape: f32[2,32], index: 0, kind: input, shape index: {}]
  %s1 = inlined_call_operand.vmem [shape: f32[32,448], index: 1, kind: input, shape index: {}]
  %s2 = inlined_call_operand.vmem [shape: f32[1,448], index: 2, kind: input, shape index: {}]
  %s3 = inlined_call_operand.vmem [shape: f32[2,448], index: 3, kind: output, shape index: {}]
  %s4 = sld [smem:[#allocation0]]
  $region22: #{forward.8} parent=0
    _
  %s6 = ssub.s32 1, %s4
  %s7 = scalar_select 0, %s6, %s4
  // Predicated region
  $region2: #{forward.8} parent=0 // pred_check
    _
  $region3: #{forward.8} parent=0 // pred_check_branch
    %9 = sbr.rel (0) target = $region5
  $region4: #{forward.8} parent=0 // pred_region
    _
  $region5: #{forward.8} parent=0 // pred_fallthru
    _
  // Predicated region
  $region6: #{forward.8} parent=0 // pred_check
    _
  $region7: #{forward.8} parent=0 // pred_check_branch
    %11 = sbr.rel (0) target = $region9
  $region8: #{forward.8} parent=0 // pred_region
    _
  $region9: #{forward.8} parent=0 // pred_fallthru
    _
  // Predicated region
  $region10: #{forward.8} parent=0 // pred_check
    _
  $region11: #{forward.8} parent=0 // pred_check_branch
    %13 = sbr.rel (0) target = $region13
  $region12: #{forward.8} parent=0 // pred_region
    _
  $region13: #{forward.8} parent=0 // pred_fallthru
    _
  %v14 = vld [vmem:[%s0] sm:$0x3]
  %v15 = vxor.u32 %v14, 2147483648
  %v16 = vmul.f32 %v15, 1.442695
  %v17 = vpow.pop %v16
  %v18 = vadd.f32 %v17, 1.0
  %v19 = vrcp.pop %v18
  %v20 = vmul.f32 1.0, %v19
  %v21 = vmul.f32 %v14, %v20
  %v22 = vld [vmem:[%s1] sm:$0xff]
  %v23 = vld [vmem:[%s1 + $0x8] sm:$0xff]
  %v24 = vld [vmem:[%s1 + $0x10] sm:$0xff]
  %v25 = vld [vmem:[%s1 + $0x18] sm:$0xff]
  %v26 = vld [vmem:[%s1 + $0x20] sm:$0xff]
  %v27 = vld [vmem:[%s1 + $0x28] sm:$0xff]
  %v28 = vld [vmem:[%s1 + $0x30] sm:$0xff]
  %v29 = vld [vmem:[%s1 + $0x38] sm:$0xff]
  %v30 = vld [vmem:[%s1 + $0x40] sm:$0xff]
  %v31 = vld [vmem:[%s1 + $0x48] sm:$0xff]
  %v32 = vld [vmem:[%s1 + $0x50] sm:$0xff]
  %v33 = vld [vmem:[%s1 + $0x58] sm:$0xff]
  %v34 = vld [vmem:[%s1 + $0x60] sm:$0xff]
  %v35 = vld [vmem:[%s1 + $0x68] sm:$0xff]
  %v36 = vld [vmem:[%s1 + $0x70] sm:$0xff]
  %v37 = vld [vmem:[%s1 + $0x78] sm:$0xff]
  %v38 = vld [vmem:[%s2] sm:$0xf]
  %v40 = vlaneseq
  %v41 = vshrl.u32 %v40, 7
  %v42 = vsub.s32 0, %v41
  %v43 = vrot.slane %v38, %v42
  %v44 = vlaneseq
  %v45 = vshrl.u32 %v44, 7
  %v46 = vsub.s32 1, %v45
  %v47 = vrot.slane %v38, %v46
  %v48 = vlaneseq
  %v49 = vshrl.u32 %v48, 7
  %v50 = vsub.s32 2, %v49
  %v51 = vrot.slane %v38, %v50
  %v52 = vlaneseq
  %v53 = vshrl.u32 %v52, 7
  %v54 = vsub.s32 3, %v53
  %v55 = vrot.slane %v38, %v54
  %vm60 = vcmask 261120
  %v62 = vsel %vm60, %v21, 0
  %64 = vmatprep.subr.mxu0 0.0
  %65 = vmatpush1.msra.mxu0 0.0
  %66 = vmatprep.subr.mxu0 0.0
  %67 = vmatpush1.msra.mxu0 0.0
  %68 = vmatprep.subr.mxu0 0.0
  %69 = vmatpush1.msra.mxu0 0.0
  %70 = vmatprep.subr.mxu0 0.0
  %71 = vmatpush1.msra.mxu0 0.0
  %72 = vmatprep.subr.mxu0 0.0
  %73 = vmatpush1.msra.mxu0 0.0
  %74 = vmatprep.subr.mxu0 0.0
  %75 = vmatpush1.msra.mxu0 0.0
  %76 = vmatprep.subr.mxu0 0.0
  %77 = vmatpush1.msra.mxu0 0.0
  %78 = vmatprep.subr.mxu0 0.0
  %79 = vmatpush1.msra.mxu0 0.0
  %80 = vmatprep.subr.mxu0 0.0
  %81 = vmatpush1.msra.mxu0 0.0
  %82 = vmatprep.subr.mxu0 0.0
  %83 = vmatpush1.msra.mxu0 0.0
  %84 = vmatprep.subr.mxu0 0.0
  %85 = vmatpush1.msra.mxu0 0.0
  %86 = vmatprep.subr.mxu0 0.0
  %87 = vmatpush1.msra.mxu0 0.0
  %88 = vmatprep.subr.mxu0 %v35
  %89 = vmatpush1.msra.mxu0 %v34
  %90 = vmatprep.subr.mxu0 %v31
  %91 = vmatpush1.msra.mxu0 %v30
  %92 = vmatprep.subr.mxu0 %v27
  %93 = vmatpush1.msra.mxu0 %v26
  %94 = vmatprep.subr.mxu0 %v23
  %95 = vmatpush1.msra.mxu0 %v22
  %96 = vmatprep.subr.mxu0 0.0
  %97 = vmatpush2.msra.mxu0 0.0
  %98 = vmatprep.subr.mxu0 0.0
  %99 = vmatpush2.msra.mxu0 0.0
  %100 = vmatprep.subr.mxu0 0.0
  %101 = vmatpush2.msra.mxu0 0.0
  %102 = vmatprep.subr.mxu0 0.0
  %103 = vmatpush2.msra.mxu0 0.0
  %104 = vmatprep.subr.mxu0 0.0
  %105 = vmatpush2.msra.mxu0 0.0
  %106 = vmatprep.subr.mxu0 0.0
  %107 = vmatpush2.msra.mxu0 0.0
  %108 = vmatprep.subr.mxu0 0.0
  %109 = vmatpush2.msra.mxu0 0.0
  %110 = vmatprep.subr.mxu0 0.0
  %111 = vmatpush2.msra.mxu0 0.0
  %112 = vmatprep.subr.mxu0 0.0
  %113 = vmatpush2.msra.mxu0 0.0
  %114 = vmatprep.subr.mxu0 0.0
  %115 = vmatpush2.msra.mxu0 0.0
  %116 = vmatprep.subr.mxu0 0.0
  %117 = vmatpush2.msra.mxu0 0.0
  %118 = vmatprep.subr.mxu0 0.0
  %119 = vmatpush2.msra.mxu0 0.0
  %120 = vmatprep.subr.mxu0 0.0
  %121 = vmatpush2.msra.mxu0 0.0
  %122 = vmatprep.subr.mxu0 0.0
  %123 = vmatpush2.msra.mxu0 0.0
  %124 = vmatprep.subr.mxu0 0.0
  %125 = vmatpush2.msra.mxu0 0.0
  %126 = vmatprep.subr.mxu0 0.0
  %127 = vmatpush2.msra.mxu0 0.0
  %128 = vmatprep.mubr.f32.mxu0 0.0
  %129 = vmatmul.mubr.f32.gmra.mxu0 %v62
  %v130 = vpop.f32.mrf.mxu0
  %v131 = vadd.f32 %v43, %v130
  %v132 = vpop.f32.mrf.mxu0
  %v133 = vadd.f32 %v47, %v132
  %134 = vdwg.mxu0
  %135 = vmatprep.subr.mxu0 0.0
  %136 = vmatpush1.msra.mxu0 0.0
  %137 = vmatprep.subr.mxu0 0.0
  %138 = vmatpush1.msra.mxu0 0.0
  %139 = vmatprep.subr.mxu0 0.0
  %140 = vmatpush1.msra.mxu0 0.0
  %141 = vmatprep.subr.mxu0 0.0
  %142 = vmatpush1.msra.mxu0 0.0
  %143 = vmatprep.subr.mxu0 0.0
  %144 = vmatpush1.msra.mxu0 0.0
  %145 = vmatprep.subr.mxu0 0.0
  %146 = vmatpush1.msra.mxu0 0.0
  %147 = vmatprep.subr.mxu0 0.0
  %148 = vmatpush1.msra.mxu0 0.0
  %149 = vmatprep.subr.mxu0 0.0
  %150 = vmatpush1.msra.mxu0 0.0
  %151 = vmatprep.subr.mxu0 0.0
  %152 = vmatpush1.msra.mxu0 0.0
  %153 = vmatprep.subr.mxu0 0.0
  %154 = vmatpush1.msra.mxu0 0.0
  %155 = vmatprep.subr.mxu0 0.0
  %156 = vmatpush1.msra.mxu0 0.0
  %157 = vmatprep.subr.mxu0 0.0
  %158 = vmatpush1.msra.mxu0 0.0
  %159 = vmatprep.subr.mxu0 %v37
  %160 = vmatpush1.msra.mxu0 %v36
  %161 = vmatprep.subr.mxu0 %v33
  %162 = vmatpush1.msra.mxu0 %v32
  %163 = vmatprep.subr.mxu0 %v29
  %164 = vmatpush1.msra.mxu0 %v28
  %165 = vmatprep.subr.mxu0 %v25
  %166 = vmatpush1.msra.mxu0 %v24
  %167 = vmatprep.subr.mxu0 0.0
  %168 = vmatpush2.msra.mxu0 0.0
  %169 = vmatprep.subr.mxu0 0.0
  %170 = vmatpush2.msra.mxu0 0.0
  %171 = vmatprep.subr.mxu0 0.0
  %172 = vmatpush2.msra.mxu0 0.0
  %173 = vmatprep.subr.mxu0 0.0
  %174 = vmatpush2.msra.mxu0 0.0
  %175 = vmatprep.subr.mxu0 0.0
  %176 = vmatpush2.msra.mxu0 0.0
  %177 = vmatprep.subr.mxu0 0.0
  %178 = vmatpush2.msra.mxu0 0.0
  %179 = vmatprep.subr.mxu0 0.0
  %180 = vmatpush2.msra.mxu0 0.0
  %181 = vmatprep.subr.mxu0 0.0
  %182 = vmatpush2.msra.mxu0 0.0
  %183 = vmatprep.subr.mxu0 0.0
  %184 = vmatpush2.msra.mxu0 0.0
  %185 = vmatprep.subr.mxu0 0.0
  %186 = vmatpush2.msra.mxu0 0.0
  %187 = vmatprep.subr.mxu0 0.0
  %188 = vmatpush2.msra.mxu0 0.0
  %189 = vmatprep.subr.mxu0 0.0
  %190 = vmatpush2.msra.mxu0 0.0
  %191 = vmatprep.subr.mxu0 0.0
  %192 = vmatpush2.msra.mxu0 0.0
  %193 = vmatprep.subr.mxu0 0.0
  %194 = vmatpush2.msra.mxu0 0.0
  %195 = vmatprep.subr.mxu0 0.0
  %196 = vmatpush2.msra.mxu0 0.0
  %197 = vmatprep.subr.mxu0 0.0
  %198 = vmatpush2.msra.mxu0 0.0
  %199 = vmatprep.mubr.f32.mxu0 0.0
  %200 = vmatmul.mubr.f32.gmra.mxu0 %v62
  %v201 = vpop.f32.mrf.mxu0
  %v202 = vadd.f32 %v51, %v201
  %v203 = vpop.f32.mrf.mxu0
  %v204 = vadd.f32 %v55, %v203
  %205 = vdwg.mxu0
  %v210 = vcombine.low %v131, %v133
  %v211 = vcombine.low %v202, %v204
  %v213 = vunpack.c.l.s4 1983009808
  %v214 = vunpack.c.0.s8 %v213
  %v215 = vlaneseq
  %v216 = vshrl.u32 %v215, 7
  %v217 = vsub.s32 %v214, %v216
  %v218 = vrot.slane %v210, %v217
  %v220 = vunpack.c.l.s4 1983009808
  %v221 = vunpack.c.0.s8 %v220
  %v222 = vlaneseq
  %v223 = vshrl.u32 %v222, 7
  %v224 = vsub.s32 %v221, %v223
  %v225 = vrot.slane %v211, %v224
  %v226 = vcombine.low %v218, %v225
  %vm228 = vcmask 1041408
  %vm229 = vcmask 1043458
  %vm230 = vmor %vm229, %vm228
  %vm231 = vcmask 1045508
  %vm232 = vmor %vm231, %vm230
  %vm233 = vcmask 523270
  %vm234 = vmor %vm233, %vm232
  %235 = vst.msk [vmem:[%s3] sm:$0xff] %vm234, %v226
  // Predicated region
  $region14: #{forward.8} parent=0 // pred_check
    _
  $region15: #{forward.8} parent=0 // pred_check_branch
    %237 = sbr.rel (0) target = $region17
  $region16: #{forward.8} parent=0 // pred_region
    _
  $region17: #{forward.8} parent=0 // pred_fallthru
    _
  // Predicated region
  $region18: #{forward.8} parent=0 // pred_check
    _
  $region19: #{forward.8} parent=0 // pred_check_branch
    %239 = sbr.rel (0) target = $region21
  $region20: #{forward.8} parent=0 // pred_region
    _
  $region21: #{forward.8} parent=0 // pred_fallthru
    _

// kernel: forward.7
$region0: #{forward.7}
  #allocation0 [shape = 'u32[]', space=smem, size = 0x4, offset = 0x4, fixed_abs, tag = 'smem constant byte address 0x4 - core index']
  #allocation1 [shape = 'u32[144,128]{1,0:T(1,128)}', space=vmem, size = 0x12000, scoped, tag = 'internal scratch']
  %s0 = inlined_call_operand.vmem [shape: f32[2,32], index: 0, kind: input, shape index: {}]
  %s1 = inlined_call_operand.vmem [shape: f32[32,128], index: 1, kind: input, shape index: {}]
  %s2 = inlined_call_operand.vmem [shape: f32[1,128], index: 2, kind: input, shape index: {}]
  %s3 = inlined_call_operand.hbm [shape: f32[128,32], index: 3, kind: input, shape index: {}]
  %s4 = inlined_call_operand.vmem [shape: f32[1,32], index: 4, kind: input, shape index: {}]
  %s5 = inlined_call_operand.vmem [shape: f32[2,32], index: 5, kind: output, shape index: {}]
  %s6 = sld [smem:[#allocation0]]
  $region34: #{forward.7} parent=0
    _
  %s8 = ssub.s32 1, %s6
  %s9 = scalar_select 0, %s8, %s6
  $region1: #{forward.7} parent=0
    #allocation2 [shape = 'u8[65536]{0}', space=vmem, size = 0x10000, scoped, tag = 'input window, operand 3, single buffered']
    #allocation3 [shape = 's32[1]{0}', space=sflag, size = 0x4, scoped, tag = 'scoped memory for forward.7']
    %10 = vsyncpa [#allocation3], 0
    // Predicated region
    $region2: #{forward.7} parent=1 // pred_check
      _
    $region3: #{forward.7} parent=1 // pred_check_branch
      %12 = sbr.rel (0) target = $region5
    $region4: #{forward.7} parent=1 // pred_region
      _
    $region5: #{forward.7} parent=1 // pred_fallthru
      _
    // Predicated region
    $region6: #{forward.7} parent=1 // pred_check
      _
    $region7: #{forward.7} parent=1 // pred_check_branch
      %14 = sbr.rel (0) target = $region9
    $region8: #{forward.7} parent=1 // pred_region
      _
    $region9: #{forward.7} parent=1 // pred_fallthru
      _
    // Predicated region
    $region10: #{forward.7} parent=1 // pred_check
      _
    $region11: #{forward.7} parent=1 // pred_check_branch
      %16 = sbr.rel (0) target = $region13
    $region12: #{forward.7} parent=1 // pred_region
      _
    $region13: #{forward.7} parent=1 // pred_fallthru
      _
    // Predicated region
    $region14: #{forward.7} parent=1 // pred_check
      _
    $region15: #{forward.7} parent=1 // pred_check_branch
      %18 = sbr.rel (0) target = $region17
    $region16: #{forward.7} parent=1 // pred_region
      %s20 = ssub.s32 2048, 2048
      %21 = vsyncadd [#allocation3], %s20
      %s22 = sshll.u32 [#allocation2], 4
      %s23 = int_to_ptr.vmem [resolvable:$true] %s22
      %28 = dma.hbm_to_vmem [thread:$0]  %s3, 2048, %s23, [#allocation3], 128, 128, 8
    $region17: #{forward.7} parent=1 // pred_fallthru
      _
    // Predicated region
    $region18: #{forward.7} parent=1 // pred_check
      _
    $region19: #{forward.7} parent=1 // pred_check_branch
      %30 = sbr.rel (0) target = $region21
    $region20: #{forward.7} parent=1 // pred_region
      _
    $region21: #{forward.7} parent=1 // pred_fallthru
      _
    // Predicated region
    $region22: #{forward.7} parent=1 // pred_check
      _
    $region23: #{forward.7} parent=1 // pred_check_branch
      %32 = sbr.rel (0) target = $region25
    $region24: #{forward.7} parent=1 // pred_region
      %33 = dma.done [#allocation3], 2048
    $region25: #{forward.7} parent=1 // pred_fallthru
      _
    %v34 = vld [vmem:[%s0] sm:$0x3]
    %v35 = vld [vmem:[%s1] sm:$0xff]
    %v36 = vld [vmem:[%s1 + $0x8] sm:$0xff]
    %v37 = vld [vmem:[%s1 + $0x10] sm:$0xff]
    %v38 = vld [vmem:[%s1 + $0x18] sm:$0xff]
    %v39 = vld [vmem:[%s2] sm:$0x1]
    %v41 = vlaneseq
    %v42 = vshrl.u32 %v41, 7
    %v43 = vsub.s32 0, %v42
    %v44 = vrot.slane %v39, %v43
    %vm46 = vcmask 261120
    %v48 = vsel %vm46, %v34, 0
    %50 = vmatprep.subr.mxu0 0.0
    %51 = vmatpush1.msra.mxu0 0.0
    %52 = vmatprep.subr.mxu0 0.0
    %53 = vmatpush1.msra.mxu0 0.0
    %54 = vmatprep.subr.mxu0 0.0
    %55 = vmatpush1.msra.mxu0 0.0
    %56 = vmatprep.subr.mxu0 0.0
    %57 = vmatpush1.msra.mxu0 0.0
    %58 = vmatprep.subr.mxu0 0.0
    %59 = vmatpush1.msra.mxu0 0.0
    %60 = vmatprep.subr.mxu0 0.0
    %61 = vmatpush1.msra.mxu0 0.0
    %62 = vmatprep.subr.mxu0 0.0
    %63 = vmatpush1.msra.mxu0 0.0
    %64 = vmatprep.subr.mxu0 0.0
    %65 = vmatpush1.msra.mxu0 0.0
    %66 = vmatprep.subr.mxu0 0.0
    %67 = vmatpush1.msra.mxu0 0.0
    %68 = vmatprep.subr.mxu0 0.0
    %69 = vmatpush1.msra.mxu0 0.0
    %70 = vmatprep.subr.mxu0 0.0
    %71 = vmatpush1.msra.mxu0 0.0
    %72 = vmatprep.subr.mxu0 0.0
    %73 = vmatpush1.msra.mxu0 0.0
    %74 = vmatprep.subr.mxu0 0.0
    %75 = vmatpush1.msra.mxu0 %v38
    %76 = vmatprep.subr.mxu0 0.0
    %77 = vmatpush1.msra.mxu0 %v37
    %78 = vmatprep.subr.mxu0 0.0
    %79 = vmatpush1.msra.mxu0 %v36
    %80 = vmatprep.subr.mxu0 0.0
    %81 = vmatpush1.msra.mxu0 %v35
    %82 = vmatprep.subr.mxu0 0.0
    %83 = vmatpush2.msra.mxu0 0.0
    %84 = vmatprep.subr.mxu0 0.0
    %85 = vmatpush2.msra.mxu0 0.0
    %86 = vmatprep.subr.mxu0 0.0
    %87 = vmatpush2.msra.mxu0 0.0
    %88 = vmatprep.subr.mxu0 0.0
    %89 = vmatpush2.msra.mxu0 0.0
    %90 = vmatprep.subr.mxu0 0.0
    %91 = vmatpush2.msra.mxu0 0.0
    %92 = vmatprep.subr.mxu0 0.0
    %93 = vmatpush2.msra.mxu0 0.0
    %94 = vmatprep.subr.mxu0 0.0
    %95 = vmatpush2.msra.mxu0 0.0
    %96 = vmatprep.subr.mxu0 0.0
    %97 = vmatpush2.msra.mxu0 0.0
    %98 = vmatprep.subr.mxu0 0.0
    %99 = vmatpush2.msra.mxu0 0.0
    %100 = vmatprep.subr.mxu0 0.0
    %101 = vmatpush2.msra.mxu0 0.0
    %102 = vmatprep.subr.mxu0 0.0
    %103 = vmatpush2.msra.mxu0 0.0
    %104 = vmatprep.subr.mxu0 0.0
    %105 = vmatpush2.msra.mxu0 0.0
    %106 = vmatprep.subr.mxu0 0.0
    %107 = vmatpush2.msra.mxu0 0.0
    %108 = vmatprep.subr.mxu0 0.0
    %109 = vmatpush2.msra.mxu0 0.0
    %110 = vmatprep.subr.mxu0 0.0
    %111 = vmatpush2.msra.mxu0 0.0
    %112 = vmatprep.subr.mxu0 0.0
    %113 = vmatpush2.msra.mxu0 0.0
    %114 = vmatprep.mubr.f32.mxu0 0.0
    %115 = vmatmul.mubr.f32.gmra.mxu0 %v48
    %v116 = vpop.f32.mrf.mxu0
    %v117 = vadd.f32 %v44, %v116
    %v118 = vpop.f32.mrf.mxu0
    %119 = vdwg.mxu0
    %v120 = vxor.u32 %v117, 2147483648
    %v121 = vmul.f32 %v120, 1.442695
    %v122 = vpow.pop %v121
    %v123 = vadd.f32 %v122, 1.0
    %v124 = vrcp.pop %v123
    %v125 = vmul.f32 1.0, %v124
    %v126 = vmul.f32 %v117, %v125
    %v127 = vld [vmem:[#allocation2] sm:$0xff]
    %v128 = vld [vmem:[#allocation2 + $0x8] sm:$0xff]
    %v129 = vld [vmem:[#allocation2 + $0x10] sm:$0xff]
    %v130 = vld [vmem:[#allocation2 + $0x18] sm:$0xff]
    %v131 = vld [vmem:[#allocation2 + $0x20] sm:$0xff]
    %v132 = vld [vmem:[#allocation2 + $0x28] sm:$0xff]
    %v133 = vld [vmem:[#allocation2 + $0x30] sm:$0xff]
    %v134 = vld [vmem:[#allocation2 + $0x38] sm:$0xff]
    %v135 = vld [vmem:[#allocation2 + $0x40] sm:$0xff]
    %v136 = vld [vmem:[#allocation2 + $0x48] sm:$0xff]
    %v137 = vld [vmem:[#allocation2 + $0x50] sm:$0xff]
    %v138 = vld [vmem:[#allocation2 + $0x58] sm:$0xff]
    %v139 = vld [vmem:[#allocation2 + $0x60] sm:$0xff]
    %v140 = vld [vmem:[#allocation2 + $0x68] sm:$0xff]
    %v141 = vld [vmem:[#allocation2 + $0x70] sm:$0xff]
    %v142 = vld [vmem:[#allocation2 + $0x78] sm:$0xff]
    %v143 = vld [vmem:[%s4] sm:$0x1]
    %v145 = vlaneseq
    %v146 = vshrl.u32 %v145, 7
    %v147 = vsub.s32 0, %v146
    %v148 = vrot.slane %v143, %v147
    %150 = vmatprep.subr.mxu0 0.0
    %151 = vmatpush1.msra.mxu0 %v142
    %152 = vmatprep.subr.mxu0 0.0
    %153 = vmatpush1.msra.mxu0 %v141
    %154 = vmatprep.subr.mxu0 0.0
    %155 = vmatpush1.msra.mxu0 %v140
    %156 = vmatprep.subr.mxu0 0.0
    %157 = vmatpush1.msra.mxu0 %v139
    %158 = vmatprep.subr.mxu0 0.0
    %159 = vmatpush1.msra.mxu0 %v138
    %160 = vmatprep.subr.mxu0 0.0
    %161 = vmatpush1.msra.mxu0 %v137
    %162 = vmatprep.subr.mxu0 0.0
    %163 = vmatpush1.msra.mxu0 %v136
    %164 = vmatprep.subr.mxu0 0.0
    %165 = vmatpush1.msra.mxu0 %v135
    %166 = vmatprep.subr.mxu0 0.0
    %167 = vmatpush1.msra.mxu0 %v134
    %168 = vmatprep.subr.mxu0 0.0
    %169 = vmatpush1.msra.mxu0 %v133
    %170 = vmatprep.subr.mxu0 0.0
    %171 = vmatpush1.msra.mxu0 %v132
    %172 = vmatprep.subr.mxu0 0.0
    %173 = vmatpush1.msra.mxu0 %v131
    %174 = vmatprep.subr.mxu0 0.0
    %175 = vmatpush1.msra.mxu0 %v130
    %176 = vmatprep.subr.mxu0 0.0
    %177 = vmatpush1.msra.mxu0 %v129
    %178 = vmatprep.subr.mxu0 0.0
    %179 = vmatpush1.msra.mxu0 %v128
    %180 = vmatprep.subr.mxu0 0.0
    %181 = vmatpush1.msra.mxu0 %v127
    %182 = vmatprep.subr.mxu0 0.0
    %183 = vmatpush2.msra.mxu0 0.0
    %184 = vmatprep.subr.mxu0 0.0
    %185 = vmatpush2.msra.mxu0 0.0
    %186 = vmatprep.subr.mxu0 0.0
    %187 = vmatpush2.msra.mxu0 0.0
    %188 = vmatprep.subr.mxu0 0.0
    %189 = vmatpush2.msra.mxu0 0.0
    %190 = vmatprep.subr.mxu0 0.0
    %191 = vmatpush2.msra.mxu0 0.0
    %192 = vmatprep.subr.mxu0 0.0
    %193 = vmatpush2.msra.mxu0 0.0
    %194 = vmatprep.subr.mxu0 0.0
    %195 = vmatpush2.msra.mxu0 0.0
    %196 = vmatprep.subr.mxu0 0.0
    %197 = vmatpush2.msra.mxu0 0.0
    %198 = vmatprep.subr.mxu0 0.0
    %199 = vmatpush2.msra.mxu0 0.0
    %200 = vmatprep.subr.mxu0 0.0
    %201 = vmatpush2.msra.mxu0 0.0
    %202 = vmatprep.subr.mxu0 0.0
    %203 = vmatpush2.msra.mxu0 0.0
    %204 = vmatprep.subr.mxu0 0.0
    %205 = vmatpush2.msra.mxu0 0.0
    %206 = vmatprep.subr.mxu0 0.0
    %207 = vmatpush2.msra.mxu0 0.0
    %208 = vmatprep.subr.mxu0 0.0
    %209 = vmatpush2.msra.mxu0 0.0
    %210 = vmatprep.subr.mxu0 0.0
    %211 = vmatpush2.msra.mxu0 0.0
    %212 = vmatprep.subr.mxu0 0.0
    %213 = vmatpush2.msra.mxu0 0.0
    %214 = vmatprep.mubr.f32.mxu0 0.0
    %215 = vmatmul.mubr.f32.gmra.mxu0 %v126
    %v216 = vpop.f32.mrf.mxu0
    %v217 = vadd.f32 %v148, %v216
    %v218 = vpop.f32.mrf.mxu0
    %219 = vdwg.mxu0
    %vm220 = vcmask 254976
    %221 = vst.msk [vmem:[%s5] sm:$0x3] %vm220, %v217
    // Predicated region
    $region26: #{forward.7} parent=1 // pred_check
      _
    $region27: #{forward.7} parent=1 // pred_check_branch
      %223 = sbr.rel (0) target = $region29
    $region28: #{forward.7} parent=1 // pred_region
      _
    $region29: #{forward.7} parent=1 // pred_fallthru
      _
    // Predicated region
    $region30: #{forward.7} parent=1 // pred_check
      _
    $region31: #{forward.7} parent=1 // pred_check_branch
      %225 = sbr.rel (0) target = $region33
    $region32: #{forward.7} parent=1 // pred_region
      _
    $region33: #{forward.7} parent=1 // pred_fallthru
      _
    %226 = vsyncpa [#allocation3], 1

// kernel: forward.11
$region0: #{forward.11}
  #allocation0 [shape = 'u32[]', space=smem, size = 0x4, offset = 0x4, fixed_abs, tag = 'smem constant byte address 0x4 - core index']
  #allocation1 [shape = 'u32[144,128]{1,0:T(1,128)}', space=vmem, size = 0x12000, scoped, tag = 'internal scratch']
  %s0 = inlined_call_operand.vmem [shape: f32[2,16,32], index: 0, kind: input, shape index: {}]
  %s1 = inlined_call_operand.vmem [shape: f32[2,2,32], index: 1, kind: input, shape index: {}]
  %s2 = inlined_call_operand.vmem [shape: bf16[32,128], index: 2, kind: input, shape index: {}]
  %s3 = inlined_call_operand.vmem [shape: f32[1,128], index: 3, kind: input, shape index: {}]
  %s4 = inlined_call_operand.vmem [shape: f32[2,16,128], index: 4, kind: output, shape index: {}]
  %s5 = sld [smem:[#allocation0]]
  $region49: #{forward.11} parent=0
    _
  %s7 = ssub.s32 1, %s5
  %s8 = scalar_select 0, %s7, %s5
  loop: start=0, step=1, limit=4
  $region2: #{forward.11} parent=0 // loop_pre_header
    _
  $region3: #{forward.11} parent=0 // loop_header
    %s10 = sphi 0, %s14
    %p11 = scmp.ge.s32.totalorder %s10, 4
    %s20 = sphi 0, %s22
    %s23 = sphi 0, %s20
    %s24 = sphi 0, %s23
    %s40 = sphi 0, %s24
    %s46 = sphi 0, %s48
    %s49 = sphi 0, %s46
    %s50 = sphi 0, %s49
    %s66 = sphi 0, %s50
    %s70 = sphi 0, %s70
    %s72 = sphi 0, %s70
    %s73 = sphi 0, %s72
    %s87 = sphi 0, %s73
    %s91 = sphi 0, %s91
    %s93 = sphi 0, %s91
    %s94 = sphi 0, %s93
    %s108 = sphi 0, %s94
    %s114 = sphi 0, %s116
    %s117 = sphi 0, %s114
    %s118 = sphi 0, %s117
    %s134 = sphi 0, %s118
  $region4: #{forward.11} parent=0 // loop_header_branch
    %13 = sbr.rel (%p11) target = $region8
  $region5: #{forward.11} parent=0 // loop_body
    %s15 = ssub.s32 %s10, 1
    %s16 = ssub.s32 %s10, 2
    %s17 = sadd.s32 %s10, 1
    %s18 = ssub.s32 %s10, %s17
    %p19 = scmp.eq.s32.totalorder %s18, 0
    %s21 = sadd.s32 %s20, 1
    %s22 = scalar_select %p19, %s20, %s21
    %p25 = pneg %p19
    %p26 = scmp.eq.s32.totalorder %s10, 1
    %p27 = por %p25, %p26
    %p28 = scmp.ne.s32.totalorder %s20, %s23
    %p29 = scmp.eq.s32.totalorder %s10, 0
    %p30 = por %p28, %p29
    %p31 = scmp.ne.s32.totalorder %s20, %s23
    %p32 = scmp.eq.s32.totalorder %s15, 1
    %p33 = por %p31, %p32
    %p34 = scmp.ne.s32.totalorder %s23, %s24
    %p35 = scmp.eq.s32.totalorder %s15, 0
    %p36 = por %p34, %p35
    %p37 = scmp.ne.s32.totalorder %s23, %s24
    %p38 = scmp.eq.s32.totalorder %s16, 1
    %p39 = por %p37, %p38
    %p41 = scmp.ne.s32.totalorder %s24, %s40
    %p42 = scmp.eq.s32.totalorder %s16, 0
    %p43 = por %p41, %p42
    %s44 = ssub.s32 %s10, %s17
    %p45 = scmp.eq.s32.totalorder %s44, 0
    %s47 = sadd.s32 %s46, 1
    %s48 = scalar_select %p45, %s46, %s47
    %p51 = pneg %p45
    %p52 = scmp.eq.s32.totalorder %s10, 1
    %p53 = por %p51, %p52
    %p54 = scmp.ne.s32.totalorder %s46, %s49
    %p55 = scmp.eq.s32.totalorder %s10, 0
    %p56 = por %p54, %p55
    %p57 = scmp.ne.s32.totalorder %s46, %s49
    %p58 = scmp.eq.s32.totalorder %s15, 1
    %p59 = por %p57, %p58
    %p60 = scmp.ne.s32.totalorder %s49, %s50
    %p61 = scmp.eq.s32.totalorder %s15, 0
    %p62 = por %p60, %p61
    %p63 = scmp.ne.s32.totalorder %s49, %s50
    %p64 = scmp.eq.s32.totalorder %s16, 1
    %p65 = por %p63, %p64
    %p67 = scmp.ne.s32.totalorder %s50, %s66
    %p68 = scmp.eq.s32.totalorder %s16, 0
    %p69 = por %p67, %p68
    %s71 = sadd.s32 %s70, 1
    %p74 = scmp.eq.s32.totalorder %s10, 1
    %p75 = scmp.ne.s32.totalorder %s70, %s72
    %p76 = scmp.eq.s32.totalorder %s10, 0
    %p77 = por %p75, %p76
    %p78 = scmp.ne.s32.totalorder %s70, %s72
    %p79 = scmp.eq.s32.totalorder %s15, 1
    %p80 = por %p78, %p79
    %p81 = scmp.ne.s32.totalorder %s72, %s73
    %p82 = scmp.eq.s32.totalorder %s15, 0
    %p83 = por %p81, %p82
    %p84 = scmp.ne.s32.totalorder %s72, %s73
    %p85 = scmp.eq.s32.totalorder %s16, 1
    %p86 = por %p84, %p85
    %p88 = scmp.ne.s32.totalorder %s73, %s87
    %p89 = scmp.eq.s32.totalorder %s16, 0
    %p90 = por %p88, %p89
    %s92 = sadd.s32 %s91, 1
    %p95 = scmp.eq.s32.totalorder %s10, 1
    %p96 = scmp.ne.s32.totalorder %s91, %s93
    %p97 = scmp.eq.s32.totalorder %s10, 0
    %p98 = por %p96, %p97
    %p99 = scmp.ne.s32.totalorder %s91, %s93
    %p100 = scmp.eq.s32.totalorder %s15, 1
    %p101 = por %p99, %p100
    %p102 = scmp.ne.s32.totalorder %s93, %s94
    %p103 = scmp.eq.s32.totalorder %s15, 0
    %p104 = por %p102, %p103
    %p105 = scmp.ne.s32.totalorder %s93, %s94
    %p106 = scmp.eq.s32.totalorder %s16, 1
    %p107 = por %p105, %p106
    %p109 = scmp.ne.s32.totalorder %s94, %s108
    %p110 = scmp.eq.s32.totalorder %s16, 0
    %p111 = por %p109, %p110
    %s112 = ssub.s32 %s10, %s17
    %p113 = scmp.eq.s32.totalorder %s112, 0
    %s115 = sadd.s32 %s114, 1
    %s116 = scalar_select %p113, %s114, %s115
    %p119 = pneg %p113
    %p120 = scmp.eq.s32.totalorder %s10, 1
    %p121 = por %p119, %p120
    %p122 = scmp.ne.s32.totalorder %s114, %s117
    %p123 = scmp.eq.s32.totalorder %s10, 0
    %p124 = por %p122, %p123
    %p125 = scmp.ne.s32.totalorder %s114, %s117
    %p126 = scmp.eq.s32.totalorder %s15, 1
    %p127 = por %p125, %p126
    %p128 = scmp.ne.s32.totalorder %s117, %s118
    %p129 = scmp.eq.s32.totalorder %s15, 0
    %p130 = por %p128, %p129
    %p131 = scmp.ne.s32.totalorder %s117, %s118
    %p132 = scmp.eq.s32.totalorder %s16, 1
    %p133 = por %p131, %p132
    %p135 = scmp.ne.s32.totalorder %s118, %s134
    %p136 = scmp.eq.s32.totalorder %s16, 0
    %p137 = por %p135, %p136
    %p138 = scmp.le.s32.totalorder 1, %s10
    %p139 = scmp.lt.s32.totalorder %s10, 3
    %p140 = pnand %p138, %p139
    %p141 = pneg %p140
    // Predicated region
    $region9: #{forward.11} parent=5 // pred_check
      _
    $region10: #{forward.11} parent=5 // pred_check_branch
      %143 = sbr.rel (%p140) target = $region12
    $region11: #{forward.11} parent=5 // pred_region
      %s144 = ssub.s32 %s10, 1
      // Predicated region
      $region13: #{forward.11} parent=11 // pred_check
        %p145 = pneg %p83
      $region14: #{forward.11} parent=11 // pred_check_branch
        %147 = sbr.rel (%p145) target = $region16
      $region15: #{forward.11} parent=11 // pred_region
        _
      $region16: #{forward.11} parent=11 // pred_fallthru
        _
      // Predicated region
      $region17: #{forward.11} parent=11 // pred_check
        %p148 = pneg %p104
      $region18: #{forward.11} parent=11 // pred_check_branch
        %150 = sbr.rel (%p148) target = $region20
      $region19: #{forward.11} parent=11 // pred_region
        _
      $region20: #{forward.11} parent=11 // pred_fallthru
        _
    $region12: #{forward.11} parent=5 // pred_fallthru
      _
    %p151 = scmp.lt.s32.totalorder %s10, 2
    // Predicated region
    $region21: #{forward.11} parent=5 // pred_check
      %p152 = pneg %p151
    $region22: #{forward.11} parent=5 // pred_check_branch
      %154 = sbr.rel (%p152) target = $region24
    $region23: #{forward.11} parent=5 // pred_region
      // Predicated region
      $region25: #{forward.11} parent=23 // pred_check
        %p155 = pneg %p30
      $region26: #{forward.11} parent=23 // pred_check_branch
        %157 = sbr.rel (%p155) target = $region28
      $region27: #{forward.11} parent=23 // pred_region
        %p158 = scmp.lt.s32.totalorder %s10, 1
        %s159 = scalar_select %p158, %s10, 1
        %s160 = smul.addr %s159, 2
        %s161 = smul.addr %s160, 8
        %s162 = scalar_lea.vmem %s0, %s161
      $region28: #{forward.11} parent=23 // pred_fallthru
        _
      // Predicated region
      $region29: #{forward.11} parent=23 // pred_check
        %p163 = pneg %p56
      $region30: #{forward.11} parent=23 // pred_check_branch
        %165 = sbr.rel (%p163) target = $region32
      $region31: #{forward.11} parent=23 // pred_region
        %p166 = scmp.lt.s32.totalorder %s10, 1
        %s167 = scalar_select %p166, %s10, 1
        %s168 = smul.addr %s167, 2
        %s169 = scalar_lea.vmem %s1, %s168
      $region32: #{forward.11} parent=23 // pred_fallthru
        _
    $region24: #{forward.11} parent=5 // pred_fallthru
      _
    %p170 = scmp.le.s32.totalorder 1, %s10
    %p171 = scmp.lt.s32.totalorder %s10, 3
    %p172 = pnand %p170, %p171
    %p173 = pneg %p172
    // Predicated region
    $region33: #{forward.11} parent=5 // pred_check
      _
    $region34: #{forward.11} parent=5 // pred_check_branch
      %175 = sbr.rel (%p172) target = $region36
    $region35: #{forward.11} parent=5 // pred_region
      %s176 = ssub.s32 %s10, 1
      %p177 = scmp.lt.s32.totalorder %s15, 1
      %s178 = scalar_select %p177, %s15, 1
      %s179 = smul.addr %s178, 2
      %s180 = smul.addr %s179, 8
      %s181 = scalar_lea.vmem %s0, %s180
      %p182 = pneg %p36
      %p183 = pneg %p33
      %p184 = scmp.lt.s32.totalorder %s15, 1
      %s185 = scalar_select %p184, %s15, 1
      %s186 = smul.addr %s185, 2
      %s187 = scalar_lea.vmem %s1, %s186
      %p188 = pneg %p62
      %p189 = pneg %p59
      %p190 = pneg %p83
      %p191 = pneg %p80
      %p192 = pneg %p104
      %p193 = pneg %p101
      %p194 = pneg %p130
      %p195 = pneg %p127
      %p196 = scmp.lt.s32.totalorder %s15, 1
      %s197 = scalar_select %p196, %s15, 1
      %s198 = smul.addr %s197, 2
      %s199 = smul.addr %s198, 8
      %s200 = scalar_lea.vmem %s4, %s199
      %p201 = scmp.lt.s32.totalorder %s15, 1
      %s202 = scalar_select %p201, %s15, 1
      %s203 = smul.addr %s202, 2
      %s204 = smul.addr %s203, 8
      %s205 = scalar_lea.vmem %s0, %s204
      %p206 = scmp.lt.s32.totalorder %s15, 1
      %s207 = scalar_select %p206, %s15, 1
      %s208 = smul.addr %s207, 2
      %s209 = scalar_lea.vmem %s1, %s208
      %p210 = scmp.lt.s32.totalorder %s15, 1
      %s211 = scalar_select %p210, %s15, 1
      %s212 = smul.addr %s211, 2
      %s213 = smul.addr %s212, 8
      %s214 = scalar_lea.vmem %s4, %s213
      %v216 = vld [vmem:[%s205] sm:$0xff]
      %v217 = vld [vmem:[%s205 + $0x8] sm:$0xff]
      %v218 = vld [vmem:[%s209] sm:$0x3]
      %vm219 = vcmask 261120
      %v220 = vsel %vm219, %v216, 0.0
      %221 = vadd.xlane.f32.xlu0 %v220
      %v222 = vpop.xlane.xlu0 %221
      %v223 = vsel %vm219, %v217, 0.0
      %224 = vadd.xlane.f32.xlu0 %v223
      %v225 = vpop.xlane.xlu0 %224
      %v226 = vrcp.pop 32.0
      %v227 = vmul.f32 %v222, %v226
      %v228 = vmul.f32 %v225, %v226
      %v229 = vsub.f32 %v216, %v227
      %v230 = vsub.f32 %v217, %v228
      %v231 = vmul.f32 %v229, %v229
      %v232 = vmul.f32 %v230, %v230
      %v233 = vsel %vm219, %v231, 0.0
      %234 = vadd.xlane.f32.xlu0 %v233
      %v235 = vpop.xlane.xlu0 %234
      %v236 = vsel %vm219, %v232, 0.0
      %237 = vadd.xlane.f32.xlu0 %v236
      %v238 = vpop.xlane.xlu0 %237
      %v239 = vmul.f32 %v235, %v226
      %v240 = vmul.f32 %v238, %v226
      %v241 = vadd.f32 %v239, 1e-06
      %v242 = vadd.f32 %v240, 1e-06
      %v243 = vrsqrt.pop %v241
      %v244 = vrsqrt.pop %v242
      %v245 = vmul.f32 %v229, %v243
      %v246 = vmul.f32 %v230, %v244
      %v247 = vadd.f32 %v218, 1.0
      %v248 = vlaneseq
      %v249 = vshrl.u32 %v248, 7
      %v250 = vsub.s32 0, %v249
      %v251 = vrot.slane %v247, %v250
      %v252 = vmul.f32 %v245, %v251
      %v253 = vmul.f32 %v246, %v251
      %v254 = vlaneseq
      %v255 = vshrl.u32 %v254, 7
      %v256 = vsub.s32 1, %v255
      %v257 = vrot.slane %v218, %v256
      %v258 = vadd.f32 %v252, %v257
      %v259 = vadd.f32 %v253, %v257
      %v260 = vpack.c.bf16 %v259, %v258
      %v261 = vld [vmem:[%s2] sm:$0xf]
      %v262 = vld [vmem:[%s2 + $0x4] sm:$0xf]
      %v263 = vld [vmem:[%s2 + $0x8] sm:$0xf]
      %v264 = vld [vmem:[%s2 + $0xc] sm:$0xf]
      %v265 = vld [vmem:[%s3] sm:$0x1]
      %v267 = vlaneseq
      %v268 = vshrl.u32 %v267, 7
      %v269 = vsub.s32 0, %v268
      %v270 = vrot.slane %v265, %v269
      %v276 = vunpack.c.l.b16 %v261
      %v277 = vunpack.c.l.b16 %v262
      %v278 = vunpack.c.l.b16 %v263
      %v279 = vunpack.c.l.b16 %v264
      %v280 = vpack.c.b16 %v277, %v276
      %v281 = vpack.c.b16 %v279, %v278
      %v285 = vsel %vm219, %v260, 0
      %287 = vmatprep.subr.bf16.mxu0 0
      %288 = vmatpush1.bf16.msra.mxu0 0
      %289 = vmatprep.subr.bf16.mxu0 0
      %290 = vmatpush1.bf16.msra.mxu0 0
      %291 = vmatprep.subr.bf16.mxu0 0
      %292 = vmatpush1.bf16.msra.mxu0 0
      %293 = vmatprep.subr.bf16.mxu0 0
      %294 = vmatpush1.bf16.msra.mxu0 0
      %295 = vmatprep.subr.bf16.mxu0 0
      %296 = vmatpush1.bf16.msra.mxu0 0
      %297 = vmatprep.subr.bf16.mxu0 0
      %298 = vmatpush1.bf16.msra.mxu0 0
      %299 = vmatprep.subr.bf16.mxu0 0
      %300 = vmatpush1.bf16.msra.mxu0 %v281
      %301 = vmatprep.subr.bf16.mxu0 0
      %302 = vmatpush1.bf16.msra.mxu0 %v280
      %303 = vmatprep.subr.bf16.mxu0 0
      %304 = vmatpush2.bf16.msra.mxu0 0
      %305 = vmatprep.subr.bf16.mxu0 0
      %306 = vmatpush2.bf16.msra.mxu0 0
      %307 = vmatprep.subr.bf16.mxu0 0
      %308 = vmatpush2.bf16.msra.mxu0 0
      %309 = vmatprep.subr.bf16.mxu0 0
      %310 = vmatpush2.bf16.msra.mxu0 0
      %311 = vmatprep.subr.bf16.mxu0 0
      %312 = vmatpush2.bf16.msra.mxu0 0
      %313 = vmatprep.subr.bf16.mxu0 0
      %314 = vmatpush2.bf16.msra.mxu0 0
      %315 = vmatprep.subr.bf16.mxu0 0
      %316 = vmatpush2.bf16.msra.mxu0 0
      %317 = vmatprep.subr.bf16.mxu0 0
      %318 = vmatpush2.bf16.msra.mxu0 0
      %319 = vmatprep.mubr.bf16.mxu0 0
      %320 = vmatmul.mubr.bf16.gmra.mxu0 %v285
      %v321 = vpop.f32.mrf.mxu0
      %v322 = vadd.f32 %v270, %v321
      %v323 = vpop.f32.mrf.mxu0
      %v324 = vpop.f32.mrf.mxu0
      %v325 = vadd.f32 %v270, %v324
      %v326 = vpop.f32.mrf.mxu0
      %327 = vdwg.mxu0
      %328 = vst [vmem:[%s214] sm:$0xff] %v322
      %329 = vst [vmem:[%s214 + $0x8] sm:$0xff] %v325
      %p330 = scmp.lt.s32.totalorder %s15, 1
      %s331 = scalar_select %p330, %s15, 1
      %s332 = smul.addr %s331, 2
      %s333 = smul.addr %s332, 8
      %s334 = scalar_lea.vmem %s4, %s333
      // Predicated region
      $region37: #{forward.11} parent=35 // pred_check
        %p335 = pneg %p127
      $region38: #{forward.11} parent=35 // pred_check_branch
        %337 = sbr.rel (%p335) target = $region40
      $region39: #{forward.11} parent=35 // pred_region
        _
      $region40: #{forward.11} parent=35 // pred_fallthru
        _
    $region36: #{forward.11} parent=5 // pred_fallthru
      _
    %p338 = scmp.le.s32.totalorder 2, %s10
    // Predicated region
    $region41: #{forward.11} parent=5 // pred_check
      %p339 = pneg %p338
    $region42: #{forward.11} parent=5 // pred_check_branch
      %341 = sbr.rel (%p339) target = $region44
    $region43: #{forward.11} parent=5 // pred_region
      %s342 = ssub.s32 %s10, 2
      // Predicated region
      $region45: #{forward.11} parent=43 // pred_check
        %p343 = pneg %p133
      $region46: #{forward.11} parent=43 // pred_check_branch
        %345 = sbr.rel (%p343) target = $region48
      $region47: #{forward.11} parent=43 // pred_region
        %p346 = scmp.lt.s32.totalorder %s16, 1
        %s347 = scalar_select %p346, %s16, 1
        %s348 = smul.addr %s347, 2
        %s349 = smul.addr %s348, 8
        %s350 = scalar_lea.vmem %s4, %s349
      $region48: #{forward.11} parent=43 // pred_fallthru
        _
    $region44: #{forward.11} parent=5 // pred_fallthru
      _
  $region6: #{forward.11} parent=0 // loop_footer
    %s14 = sadd.s32 1, %s10
  $region7: #{forward.11} parent=0 // loop_footer_branch
    %9 = sbr.rel target = $region3
  $region8: #{forward.11} parent=0 // loop_exit
    _

// kernel: forward.6
$region0: #{forward.6}
  #allocation0 [shape = 'u32[]', space=smem, size = 0x4, offset = 0x4, fixed_abs, tag = 'smem constant byte address 0x4 - core index']
  #allocation1 [shape = 'u32[144,128]{1,0:T(1,128)}', space=vmem, size = 0x12000, scoped, tag = 'internal scratch']
  %s0 = inlined_call_operand.vmem [shape: bf16[2,16,48], index: 0, kind: input, shape index: {}]
  %s1 = inlined_call_operand.vmem [shape: bf16[48,32], index: 1, kind: input, shape index: {}]
  %s2 = inlined_call_operand.vmem [shape: f32[1,32], index: 2, kind: input, shape index: {}]
  %s3 = inlined_call_operand.vmem [shape: f32[16,32], index: 3, kind: input, shape index: {}]
  %s4 = inlined_call_operand.vmem [shape: f32[2,16,32], index: 4, kind: output, shape index: {}]
  %s5 = sld [smem:[#allocation0]]
  $region49: #{forward.6} parent=0
    _
  %s7 = ssub.s32 1, %s5
  %s8 = scalar_select 0, %s7, %s5
  loop: start=0, step=1, limit=4
  $region2: #{forward.6} parent=0 // loop_pre_header
    _
  $region3: #{forward.6} parent=0 // loop_header
    %s10 = sphi 0, %s14
    %p11 = scmp.ge.s32.totalorder %s10, 4
    %s20 = sphi 0, %s22
    %s23 = sphi 0, %s20
    %s24 = sphi 0, %s23
    %s40 = sphi 0, %s24
    %s44 = sphi 0, %s44
    %s46 = sphi 0, %s44
    %s47 = sphi 0, %s46
    %s61 = sphi 0, %s47
    %s65 = sphi 0, %s65
    %s67 = sphi 0, %s65
    %s68 = sphi 0, %s67
    %s82 = sphi 0, %s68
    %s86 = sphi 0, %s86
    %s88 = sphi 0, %s86
    %s89 = sphi 0, %s88
    %s103 = sphi 0, %s89
    %s109 = sphi 0, %s111
    %s112 = sphi 0, %s109
    %s113 = sphi 0, %s112
    %s129 = sphi 0, %s113
  $region4: #{forward.6} parent=0 // loop_header_branch
    %13 = sbr.rel (%p11) target = $region8
  $region5: #{forward.6} parent=0 // loop_body
    %s15 = ssub.s32 %s10, 1
    %s16 = ssub.s32 %s10, 2
    %s17 = sadd.s32 %s10, 1
    %s18 = ssub.s32 %s10, %s17
    %p19 = scmp.eq.s32.totalorder %s18, 0
    %s21 = sadd.s32 %s20, 1
    %s22 = scalar_select %p19, %s20, %s21
    %p25 = pneg %p19
    %p26 = scmp.eq.s32.totalorder %s10, 1
    %p27 = por %p25, %p26
    %p28 = scmp.ne.s32.totalorder %s20, %s23
    %p29 = scmp.eq.s32.totalorder %s10, 0
    %p30 = por %p28, %p29
    %p31 = scmp.ne.s32.totalorder %s20, %s23
    %p32 = scmp.eq.s32.totalorder %s15, 1
    %p33 = por %p31, %p32
    %p34 = scmp.ne.s32.totalorder %s23, %s24
    %p35 = scmp.eq.s32.totalorder %s15, 0
    %p36 = por %p34, %p35
    %p37 = scmp.ne.s32.totalorder %s23, %s24
    %p38 = scmp.eq.s32.totalorder %s16, 1
    %p39 = por %p37, %p38
    %p41 = scmp.ne.s32.totalorder %s24, %s40
    %p42 = scmp.eq.s32.totalorder %s16, 0
    %p43 = por %p41, %p42
    %s45 = sadd.s32 %s44, 1
    %p48 = scmp.eq.s32.totalorder %s10, 1
    %p49 = scmp.ne.s32.totalorder %s44, %s46
    %p50 = scmp.eq.s32.totalorder %s10, 0
    %p51 = por %p49, %p50
    %p52 = scmp.ne.s32.totalorder %s44, %s46
    %p53 = scmp.eq.s32.totalorder %s15, 1
    %p54 = por %p52, %p53
    %p55 = scmp.ne.s32.totalorder %s46, %s47
    %p56 = scmp.eq.s32.totalorder %s15, 0
    %p57 = por %p55, %p56
    %p58 = scmp.ne.s32.totalorder %s46, %s47
    %p59 = scmp.eq.s32.totalorder %s16, 1
    %p60 = por %p58, %p59
    %p62 = scmp.ne.s32.totalorder %s47, %s61
    %p63 = scmp.eq.s32.totalorder %s16, 0
    %p64 = por %p62, %p63
    %s66 = sadd.s32 %s65, 1
    %p69 = scmp.eq.s32.totalorder %s10, 1
    %p70 = scmp.ne.s32.totalorder %s65, %s67
    %p71 = scmp.eq.s32.totalorder %s10, 0
    %p72 = por %p70, %p71
    %p73 = scmp.ne.s32.totalorder %s65, %s67
    %p74 = scmp.eq.s32.totalorder %s15, 1
    %p75 = por %p73, %p74
    %p76 = scmp.ne.s32.totalorder %s67, %s68
    %p77 = scmp.eq.s32.totalorder %s15, 0
    %p78 = por %p76, %p77
    %p79 = scmp.ne.s32.totalorder %s67, %s68
    %p80 = scmp.eq.s32.totalorder %s16, 1
    %p81 = por %p79, %p80
    %p83 = scmp.ne.s32.totalorder %s68, %s82
    %p84 = scmp.eq.s32.totalorder %s16, 0
    %p85 = por %p83, %p84
    %s87 = sadd.s32 %s86, 1
    %p90 = scmp.eq.s32.totalorder %s10, 1
    %p91 = scmp.ne.s32.totalorder %s86, %s88
    %p92 = scmp.eq.s32.totalorder %s10, 0
    %p93 = por %p91, %p92
    %p94 = scmp.ne.s32.totalorder %s86, %s88
    %p95 = scmp.eq.s32.totalorder %s15, 1
    %p96 = por %p94, %p95
    %p97 = scmp.ne.s32.totalorder %s88, %s89
    %p98 = scmp.eq.s32.totalorder %s15, 0
    %p99 = por %p97, %p98
    %p100 = scmp.ne.s32.totalorder %s88, %s89
    %p101 = scmp.eq.s32.totalorder %s16, 1
    %p102 = por %p100, %p101
    %p104 = scmp.ne.s32.totalorder %s89, %s103
    %p105 = scmp.eq.s32.totalorder %s16, 0
    %p106 = por %p104, %p105
    %s107 = ssub.s32 %s10, %s17
    %p108 = scmp.eq.s32.totalorder %s107, 0
    %s110 = sadd.s32 %s109, 1
    %s111 = scalar_select %p108, %s109, %s110
    %p114 = pneg %p108
    %p115 = scmp.eq.s32.totalorder %s10, 1
    %p116 = por %p114, %p115
    %p117 = scmp.ne.s32.totalorder %s109, %s112
    %p118 = scmp.eq.s32.totalorder %s10, 0
    %p119 = por %p117, %p118
    %p120 = scmp.ne.s32.totalorder %s109, %s112
    %p121 = scmp.eq.s32.totalorder %s15, 1
    %p122 = por %p120, %p121
    %p123 = scmp.ne.s32.totalorder %s112, %s113
    %p124 = scmp.eq.s32.totalorder %s15, 0
    %p125 = por %p123, %p124
    %p126 = scmp.ne.s32.totalorder %s112, %s113
    %p127 = scmp.eq.s32.totalorder %s16, 1
    %p128 = por %p126, %p127
    %p130 = scmp.ne.s32.totalorder %s113, %s129
    %p131 = scmp.eq.s32.totalorder %s16, 0
    %p132 = por %p130, %p131
    %p133 = scmp.le.s32.totalorder 1, %s10
    %p134 = scmp.lt.s32.totalorder %s10, 3
    %p135 = pnand %p133, %p134
    %p136 = pneg %p135
    // Predicated region
    $region9: #{forward.6} parent=5 // pred_check
      _
    $region10: #{forward.6} parent=5 // pred_check_branch
      %138 = sbr.rel (%p135) target = $region12
    $region11: #{forward.6} parent=5 // pred_region
      %s139 = ssub.s32 %s10, 1
      // Predicated region
      $region13: #{forward.6} parent=11 // pred_check
        %p140 = pneg %p57
      $region14: #{forward.6} parent=11 // pred_check_branch
        %142 = sbr.rel (%p140) target = $region16
      $region15: #{forward.6} parent=11 // pred_region
        _
      $region16: #{forward.6} parent=11 // pred_fallthru
        _
      // Predicated region
      $region17: #{forward.6} parent=11 // pred_check
        %p143 = pneg %p78
      $region18: #{forward.6} parent=11 // pred_check_branch
        %145 = sbr.rel (%p143) target = $region20
      $region19: #{forward.6} parent=11 // pred_region
        _
      $region20: #{forward.6} parent=11 // pred_fallthru
        _
      // Predicated region
      $region21: #{forward.6} parent=11 // pred_check
        %p146 = pneg %p99
      $region22: #{forward.6} parent=11 // pred_check_branch
        %148 = sbr.rel (%p146) target = $region24
      $region23: #{forward.6} parent=11 // pred_region
        _
      $region24: #{forward.6} parent=11 // pred_fallthru
        _
    $region12: #{forward.6} parent=5 // pred_fallthru
      _
    %p149 = scmp.lt.s32.totalorder %s10, 2
    // Predicated region
    $region25: #{forward.6} parent=5 // pred_check
      %p150 = pneg %p149
    $region26: #{forward.6} parent=5 // pred_check_branch
      %152 = sbr.rel (%p150) target = $region28
    $region27: #{forward.6} parent=5 // pred_region
      // Predicated region
      $region29: #{forward.6} parent=27 // pred_check
        %p153 = pneg %p30
      $region30: #{forward.6} parent=27 // pred_check_branch
        %155 = sbr.rel (%p153) target = $region32
      $region31: #{forward.6} parent=27 // pred_region
        %p156 = scmp.lt.s32.totalorder %s10, 1
        %s157 = scalar_select %p156, %s10, 1
        %s158 = smul.addr %s157, 2
        %s159 = smul.addr %s158, 4
        %s160 = scalar_lea.vmem %s0, %s159
      $region32: #{forward.6} parent=27 // pred_fallthru
        _
    $region28: #{forward.6} parent=5 // pred_fallthru
      _
    %p161 = scmp.le.s32.totalorder 1, %s10
    %p162 = scmp.lt.s32.totalorder %s10, 3
    %p163 = pnand %p161, %p162
    %p164 = pneg %p163
    // Predicated region
    $region33: #{forward.6} parent=5 // pred_check
      _
    $region34: #{forward.6} parent=5 // pred_check_branch
      %166 = sbr.rel (%p163) target = $region36
    $region35: #{forward.6} parent=5 // pred_region
      %s167 = ssub.s32 %s10, 1
      %p168 = scmp.lt.s32.totalorder %s15, 1
      %s169 = scalar_select %p168, %s15, 1
      %s170 = smul.addr %s169, 2
      %s171 = smul.addr %s170, 4
      %s172 = scalar_lea.vmem %s0, %s171
      %p173 = pneg %p36
      %p174 = pneg %p33
      %p175 = pneg %p57
      %p176 = pneg %p54
      %p177 = pneg %p78
      %p178 = pneg %p75
      %p179 = pneg %p99
      %p180 = pneg %p96
      %p181 = pneg %p125
      %p182 = pneg %p122
      %p183 = scmp.lt.s32.totalorder %s15, 1
      %s184 = scalar_select %p183, %s15, 1
      %s185 = smul.addr %s184, 2
      %s186 = smul.addr %s185, 8
      %s187 = scalar_lea.vmem %s4, %s186
      %p188 = scmp.lt.s32.totalorder %s15, 1
      %s189 = scalar_select %p188, %s15, 1
      %s190 = smul.addr %s189, 2
      %s191 = smul.addr %s190, 4
      %s192 = scalar_lea.vmem %s0, %s191
      %p193 = scmp.lt.s32.totalorder %s15, 1
      %s194 = scalar_select %p193, %s15, 1
      %s195 = smul.addr %s194, 2
      %s196 = smul.addr %s195, 8
      %s197 = scalar_lea.vmem %s4, %s196
      %v199 = vld [vmem:[%s192] sm:$0xf]
      %v200 = vld [vmem:[%s192 + $0x4] sm:$0xf]
      %v201 = vld [vmem:[%s1] sm:$0xf]
      %v202 = vld [vmem:[%s1 + $0x4] sm:$0xf]
      %v203 = vld [vmem:[%s1 + $0x8] sm:$0xf]
      %v204 = vld [vmem:[%s1 + $0xc] sm:$0xf]
      %v205 = vld [vmem:[%s1 + $0x10] sm:$0xf]
      %v206 = vld [vmem:[%s1 + $0x14] sm:$0xf]
      %v207 = vld [vmem:[%s2] sm:$0x1]
      %v209 = vlaneseq
      %v210 = vshrl.u32 %v209, 7
      %v211 = vsub.s32 0, %v210
      %v212 = vrot.slane %v207, %v211
      %v216 = vunpack.c.l.b16 %v199
      %v217 = vunpack.c.l.b16 %v200
      %v218 = vpack.c.b16 %v217, %v216
      %v225 = vunpack.c.l.b16 %v201
      %v226 = vunpack.c.l.b16 %v202
      %v227 = vunpack.c.l.b16 %v203
      %v228 = vunpack.c.l.b16 %v204
      %v229 = vunpack.c.l.b16 %v205
      %v230 = vunpack.c.l.b16 %v206
      %v231 = vpack.c.b16 %v226, %v225
      %v232 = vpack.c.b16 %v228, %v227
      %v233 = vpack.c.b16 %v230, %v229
      %vm237 = vcmask 392192
      %v239 = vsel %vm237, %v218, 0
      %241 = vmatprep.subr.bf16.mxu0 0
      %242 = vmatpush1.bf16.msra.mxu0 0
      %243 = vmatprep.subr.bf16.mxu0 0
      %244 = vmatpush1.bf16.msra.mxu0 0
      %245 = vmatprep.subr.bf16.mxu0 0
      %246 = vmatpush1.bf16.msra.mxu0 0
      %247 = vmatprep.subr.bf16.mxu0 0
      %248 = vmatpush1.bf16.msra.mxu0 0
      %249 = vmatprep.subr.bf16.mxu0 0
      %250 = vmatpush1.bf16.msra.mxu0 0
      %251 = vmatprep.subr.bf16.mxu0 0
      %252 = vmatpush1.bf16.msra.mxu0 %v233
      %253 = vmatprep.subr.bf16.mxu0 0
      %254 = vmatpush1.bf16.msra.mxu0 %v232
      %255 = vmatprep.subr.bf16.mxu0 0
      %256 = vmatpush1.bf16.msra.mxu0 %v231
      %257 = vmatprep.subr.bf16.mxu0 0
      %258 = vmatpush2.bf16.msra.mxu0 0
      %259 = vmatprep.subr.bf16.mxu0 0
      %260 = vmatpush2.bf16.msra.mxu0 0
      %261 = vmatprep.subr.bf16.mxu0 0
      %262 = vmatpush2.bf16.msra.mxu0 0
      %263 = vmatprep.subr.bf16.mxu0 0
      %264 = vmatpush2.bf16.msra.mxu0 0
      %265 = vmatprep.subr.bf16.mxu0 0
      %266 = vmatpush2.bf16.msra.mxu0 0
      %267 = vmatprep.subr.bf16.mxu0 0
      %268 = vmatpush2.bf16.msra.mxu0 0
      %269 = vmatprep.subr.bf16.mxu0 0
      %270 = vmatpush2.bf16.msra.mxu0 0
      %271 = vmatprep.subr.bf16.mxu0 0
      %272 = vmatpush2.bf16.msra.mxu0 0
      %273 = vmatprep.mubr.bf16.mxu0 0
      %274 = vmatmul.mubr.bf16.gmra.mxu0 %v239
      %v275 = vpop.f32.mrf.mxu0
      %v276 = vadd.f32 %v212, %v275
      %v277 = vpop.f32.mrf.mxu0
      %v278 = vpop.f32.mrf.mxu0
      %v279 = vadd.f32 %v212, %v278
      %v280 = vpop.f32.mrf.mxu0
      %281 = vdwg.mxu0
      %v282 = vld [vmem:[%s3] sm:$0xff]
      %v283 = vld [vmem:[%s3 + $0x8] sm:$0xff]
      %v284 = vadd.f32 %v276, %v282
      %v285 = vadd.f32 %v279, %v283
      %vm286 = vcmask 261120
      %287 = vst.msk [vmem:[%s197] sm:$0xff] %vm286, %v284
      %288 = vst.msk [vmem:[%s197 + $0x8] sm:$0xff] %vm286, %v285
      %p289 = scmp.lt.s32.totalorder %s15, 1
      %s290 = scalar_select %p289, %s15, 1
      %s291 = smul.addr %s290, 2
      %s292 = smul.addr %s291, 8
      %s293 = scalar_lea.vmem %s4, %s292
      // Predicated region
      $region37: #{forward.6} parent=35 // pred_check
        %p294 = pneg %p122
      $region38: #{forward.6} parent=35 // pred_check_branch
        %296 = sbr.rel (%p294) target = $region40
      $region39: #{forward.6} parent=35 // pred_region
        _
      $region40: #{forward.6} parent=35 // pred_fallthru
        _
    $region36: #{forward.6} parent=5 // pred_fallthru
      _
    %p297 = scmp.le.s32.totalorder 2, %s10
    // Predicated region
    $region41: #{forward.6} parent=5 // pred_check
      %p298 = pneg %p297
    $region42: #{forward.6} parent=5 // pred_check_branch
      %300 = sbr.rel (%p298) target = $region44
    $region43: #{forward.6} parent=5 // pred_region
      %s301 = ssub.s32 %s10, 2
      // Predicated region
      $region45: #{forward.6} parent=43 // pred_check
        %p302 = pneg %p128
      $region46: #{forward.6} parent=43 // pred_check_branch
        %304 = sbr.rel (%p302) target = $region48
      $region47: #{forward.6} parent=43 // pred_region
        %p305 = scmp.lt.s32.totalorder %s16, 1
        %s306 = scalar_select %p305, %s16, 1
        %s307 = smul.addr %s306, 2
        %s308 = smul.addr %s307, 8
        %s309 = scalar_lea.vmem %s4, %s308
      $region48: #{forward.6} parent=43 // pred_fallthru
        _
    $region44: #{forward.6} parent=5 // pred_fallthru
      _
  $region6: #{forward.6} parent=0 // loop_footer
    %s14 = sadd.s32 1, %s10
  $region7: #{forward.6} parent=0 // loop_footer_branch
    %9 = sbr.rel target = $region3
  $region8: #{forward.6} parent=0 // loop_exit
    _

// kernel: forward.9
$region0: #{forward.9}
  #allocation0 [shape = 'u32[]', space=smem, size = 0x4, offset = 0x4, fixed_abs, tag = 'smem constant byte address 0x4 - core index']
  #allocation1 [shape = 'u32[144,128]{1,0:T(1,128)}', space=vmem, size = 0x12000, scoped, tag = 'internal scratch']
  %s0 = inlined_call_operand.vmem [shape: f32[2,16,32], index: 0, kind: input, shape index: {}]
  %s1 = inlined_call_operand.vmem [shape: f32[2,6,32], index: 1, kind: input, shape index: {}]
  %s2 = inlined_call_operand.vmem [shape: bf16[32,96], index: 2, kind: input, shape index: {}]
  %s3 = inlined_call_operand.vmem [shape: f32[1,96], index: 3, kind: input, shape index: {}]
  %s4 = inlined_call_operand.vmem [shape: bf16[32,32], index: 4, kind: input, shape index: {}]
  %s5 = inlined_call_operand.vmem [shape: f32[1,32], index: 5, kind: input, shape index: {}]
  %s6 = inlined_call_operand.vmem [shape: bf16[32,128], index: 6, kind: input, shape index: {}]
  %s7 = inlined_call_operand.vmem [shape: f32[1,128], index: 7, kind: input, shape index: {}]
  %s8 = inlined_call_operand.vmem [shape: bf16[128,32], index: 8, kind: input, shape index: {}]
  %s9 = inlined_call_operand.vmem [shape: f32[1,32], index: 9, kind: input, shape index: {}]
  %s10 = inlined_call_operand.vmem [shape: f32[2,16,32], index: 10, kind: output, shape index: {}]
  %s11 = sld [smem:[#allocation0]]
  $region73: #{forward.9} parent=0
    _
  %s13 = ssub.s32 1, %s11
  %s14 = scalar_select 0, %s13, %s11
  loop: start=0, step=1, limit=4
  $region2: #{forward.9} parent=0 // loop_pre_header
    _
  $region3: #{forward.9} parent=0 // loop_header
    %s16 = sphi 0, %s20
    %p17 = scmp.ge.s32.totalorder %s16, 4
    %s26 = sphi 0, %s28
    %s29 = sphi 0, %s26
    %s30 = sphi 0, %s29
    %s46 = sphi 0, %s30
    %s52 = sphi 0, %s54
    %s55 = sphi 0, %s52
    %s56 = sphi 0, %s55
    %s72 = sphi 0, %s56
    %s76 = sphi 0, %s76
    %s78 = sphi 0, %s76
    %s79 = sphi 0, %s78
    %s93 = sphi 0, %s79
    %s97 = sphi 0, %s97
    %s99 = sphi 0, %s97
    %s100 = sphi 0, %s99
    %s114 = sphi 0, %s100
    %s118 = sphi 0, %s118
    %s120 = sphi 0, %s118
    %s121 = sphi 0, %s120
    %s135 = sphi 0, %s121
    %s139 = sphi 0, %s139
    %s141 = sphi 0, %s139
    %s142 = sphi 0, %s141
    %s156 = sphi 0, %s142
    %s160 = sphi 0, %s160
    %s162 = sphi 0, %s160
    %s163 = sphi 0, %s162
    %s177 = sphi 0, %s163
    %s181 = sphi 0, %s181
    %s183 = sphi 0, %s181
    %s184 = sphi 0, %s183
    %s198 = sphi 0, %s184
    %s202 = sphi 0, %s202
    %s204 = sphi 0, %s202
    %s205 = sphi 0, %s204
    %s219 = sphi 0, %s205
    %s223 = sphi 0, %s223
    %s225 = sphi 0, %s223
    %s226 = sphi 0, %s225
    %s240 = sphi 0, %s226
    %s246 = sphi 0, %s248
    %s249 = sphi 0, %s246
    %s250 = sphi 0, %s249
    %s266 = sphi 0, %s250
  $region4: #{forward.9} parent=0 // loop_header_branch
    %19 = sbr.rel (%p17) target = $region8
  $region5: #{forward.9} parent=0 // loop_body
    %s21 = ssub.s32 %s16, 1
    %s22 = ssub.s32 %s16, 2
    %s23 = sadd.s32 %s16, 1
    %s24 = ssub.s32 %s16, %s23
    %p25 = scmp.eq.s32.totalorder %s24, 0
    %s27 = sadd.s32 %s26, 1
    %s28 = scalar_select %p25, %s26, %s27
    %p31 = pneg %p25
    %p32 = scmp.eq.s32.totalorder %s16, 1
    %p33 = por %p31, %p32
    %p34 = scmp.ne.s32.totalorder %s26, %s29
    %p35 = scmp.eq.s32.totalorder %s16, 0
    %p36 = por %p34, %p35
    %p37 = scmp.ne.s32.totalorder %s26, %s29
    %p38 = scmp.eq.s32.totalorder %s21, 1
    %p39 = por %p37, %p38
    %p40 = scmp.ne.s32.totalorder %s29, %s30
    %p41 = scmp.eq.s32.totalorder %s21, 0
    %p42 = por %p40, %p41
    %p43 = scmp.ne.s32.totalorder %s29, %s30
    %p44 = scmp.eq.s32.totalorder %s22, 1
    %p45 = por %p43, %p44
    %p47 = scmp.ne.s32.totalorder %s30, %s46
    %p48 = scmp.eq.s32.totalorder %s22, 0
    %p49 = por %p47, %p48
    %s50 = ssub.s32 %s16, %s23
    %p51 = scmp.eq.s32.totalorder %s50, 0
    %s53 = sadd.s32 %s52, 1
    %s54 = scalar_select %p51, %s52, %s53
    %p57 = pneg %p51
    %p58 = scmp.eq.s32.totalorder %s16, 1
    %p59 = por %p57, %p58
    %p60 = scmp.ne.s32.totalorder %s52, %s55
    %p61 = scmp.eq.s32.totalorder %s16, 0
    %p62 = por %p60, %p61
    %p63 = scmp.ne.s32.totalorder %s52, %s55
    %p64 = scmp.eq.s32.totalorder %s21, 1
    %p65 = por %p63, %p64
    %p66 = scmp.ne.s32.totalorder %s55, %s56
    %p67 = scmp.eq.s32.totalorder %s21, 0
    %p68 = por %p66, %p67
    %p69 = scmp.ne.s32.totalorder %s55, %s56
    %p70 = scmp.eq.s32.totalorder %s22, 1
    %p71 = por %p69, %p70
    %p73 = scmp.ne.s32.totalorder %s56, %s72
    %p74 = scmp.eq.s32.totalorder %s22, 0
    %p75 = por %p73, %p74
    %s77 = sadd.s32 %s76, 1
    %p80 = scmp.eq.s32.totalorder %s16, 1
    %p81 = scmp.ne.s32.totalorder %s76, %s78
    %p82 = scmp.eq.s32.totalorder %s16, 0
    %p83 = por %p81, %p82
    %p84 = scmp.ne.s32.totalorder %s76, %s78
    %p85 = scmp.eq.s32.totalorder %s21, 1
    %p86 = por %p84, %p85
    %p87 = scmp.ne.s32.totalorder %s78, %s79
    %p88 = scmp.eq.s32.totalorder %s21, 0
    %p89 = por %p87, %p88
    %p90 = scmp.ne.s32.totalorder %s78, %s79
    %p91 = scmp.eq.s32.totalorder %s22, 1
    %p92 = por %p90, %p91
    %p94 = scmp.ne.s32.totalorder %s79, %s93
    %p95 = scmp.eq.s32.totalorder %s22, 0
    %p96 = por %p94, %p95
    %s98 = sadd.s32 %s97, 1
    %p101 = scmp.eq.s32.totalorder %s16, 1
    %p102 = scmp.ne.s32.totalorder %s97, %s99
    %p103 = scmp.eq.s32.totalorder %s16, 0
    %p104 = por %p102, %p103
    %p105 = scmp.ne.s32.totalorder %s97, %s99
    %p106 = scmp.eq.s32.totalorder %s21, 1
    %p107 = por %p105, %p106
    %p108 = scmp.ne.s32.totalorder %s99, %s100
    %p109 = scmp.eq.s32.totalorder %s21, 0
    %p110 = por %p108, %p109
    %p111 = scmp.ne.s32.totalorder %s99, %s100
    %p112 = scmp.eq.s32.totalorder %s22, 1
    %p113 = por %p111, %p112
    %p115 = scmp.ne.s32.totalorder %s100, %s114
    %p116 = scmp.eq.s32.totalorder %s22, 0
    %p117 = por %p115, %p116
    %s119 = sadd.s32 %s118, 1
    %p122 = scmp.eq.s32.totalorder %s16, 1
    %p123 = scmp.ne.s32.totalorder %s118, %s120
    %p124 = scmp.eq.s32.totalorder %s16, 0
    %p125 = por %p123, %p124
    %p126 = scmp.ne.s32.totalorder %s118, %s120
    %p127 = scmp.eq.s32.totalorder %s21, 1
    %p128 = por %p126, %p127
    %p129 = scmp.ne.s32.totalorder %s120, %s121
    %p130 = scmp.eq.s32.totalorder %s21, 0
    %p131 = por %p129, %p130
    %p132 = scmp.ne.s32.totalorder %s120, %s121
    %p133 = scmp.eq.s32.totalorder %s22, 1
    %p134 = por %p132, %p133
    %p136 = scmp.ne.s32.totalorder %s121, %s135
    %p137 = scmp.eq.s32.totalorder %s22, 0
    %p138 = por %p136, %p137
    %s140 = sadd.s32 %s139, 1
    %p143 = scmp.eq.s32.totalorder %s16, 1
    %p144 = scmp.ne.s32.totalorder %s139, %s141
    %p145 = scmp.eq.s32.totalorder %s16, 0
    %p146 = por %p144, %p145
    %p147 = scmp.ne.s32.totalorder %s139, %s141
    %p148 = scmp.eq.s32.totalorder %s21, 1
    %p149 = por %p147, %p148
    %p150 = scmp.ne.s32.totalorder %s141, %s142
    %p151 = scmp.eq.s32.totalorder %s21, 0
    %p152 = por %p150, %p151
    %p153 = scmp.ne.s32.totalorder %s141, %s142
    %p154 = scmp.eq.s32.totalorder %s22, 1
    %p155 = por %p153, %p154
    %p157 = scmp.ne.s32.totalorder %s142, %s156
    %p158 = scmp.eq.s32.totalorder %s22, 0
    %p159 = por %p157, %p158
    %s161 = sadd.s32 %s160, 1
    %p164 = scmp.eq.s32.totalorder %s16, 1
    %p165 = scmp.ne.s32.totalorder %s160, %s162
    %p166 = scmp.eq.s32.totalorder %s16, 0
    %p167 = por %p165, %p166
    %p168 = scmp.ne.s32.totalorder %s160, %s162
    %p169 = scmp.eq.s32.totalorder %s21, 1
    %p170 = por %p168, %p169
    %p171 = scmp.ne.s32.totalorder %s162, %s163
    %p172 = scmp.eq.s32.totalorder %s21, 0
    %p173 = por %p171, %p172
    %p174 = scmp.ne.s32.totalorder %s162, %s163
    %p175 = scmp.eq.s32.totalorder %s22, 1
    %p176 = por %p174, %p175
    %p178 = scmp.ne.s32.totalorder %s163, %s177
    %p179 = scmp.eq.s32.totalorder %s22, 0
    %p180 = por %p178, %p179
    %s182 = sadd.s32 %s181, 1
    %p185 = scmp.eq.s32.totalorder %s16, 1
    %p186 = scmp.ne.s32.totalorder %s181, %s183
    %p187 = scmp.eq.s32.totalorder %s16, 0
    %p188 = por %p186, %p187
    %p189 = scmp.ne.s32.totalorder %s181, %s183
    %p190 = scmp.eq.s32.totalorder %s21, 1
    %p191 = por %p189, %p190
    %p192 = scmp.ne.s32.totalorder %s183, %s184
    %p193 = scmp.eq.s32.totalorder %s21, 0
    %p194 = por %p192, %p193
    %p195 = scmp.ne.s32.totalorder %s183, %s184
    %p196 = scmp.eq.s32.totalorder %s22, 1
    %p197 = por %p195, %p196
    %p199 = scmp.ne.s32.totalorder %s184, %s198
    %p200 = scmp.eq.s32.totalorder %s22, 0
    %p201 = por %p199, %p200
    %s203 = sadd.s32 %s202, 1
    %p206 = scmp.eq.s32.totalorder %s16, 1
    %p207 = scmp.ne.s32.totalorder %s202, %s204
    %p208 = scmp.eq.s32.totalorder %s16, 0
    %p209 = por %p207, %p208
    %p210 = scmp.ne.s32.totalorder %s202, %s204
    %p211 = scmp.eq.s32.totalorder %s21, 1
    %p212 = por %p210, %p211
    %p213 = scmp.ne.s32.totalorder %s204, %s205
    %p214 = scmp.eq.s32.totalorder %s21, 0
    %p215 = por %p213, %p214
    %p216 = scmp.ne.s32.totalorder %s204, %s205
    %p217 = scmp.eq.s32.totalorder %s22, 1
    %p218 = por %p216, %p217
    %p220 = scmp.ne.s32.totalorder %s205, %s219
    %p221 = scmp.eq.s32.totalorder %s22, 0
    %p222 = por %p220, %p221
    %s224 = sadd.s32 %s223, 1
    %p227 = scmp.eq.s32.totalorder %s16, 1
    %p228 = scmp.ne.s32.totalorder %s223, %s225
    %p229 = scmp.eq.s32.totalorder %s16, 0
    %p230 = por %p228, %p229
    %p231 = scmp.ne.s32.totalorder %s223, %s225
    %p232 = scmp.eq.s32.totalorder %s21, 1
    %p233 = por %p231, %p232
    %p234 = scmp.ne.s32.totalorder %s225, %s226
    %p235 = scmp.eq.s32.totalorder %s21, 0
    %p236 = por %p234, %p235
    %p237 = scmp.ne.s32.totalorder %s225, %s226
    %p238 = scmp.eq.s32.totalorder %s22, 1
    %p239 = por %p237, %p238
    %p241 = scmp.ne.s32.totalorder %s226, %s240
    %p242 = scmp.eq.s32.totalorder %s22, 0
    %p243 = por %p241, %p242
    %s244 = ssub.s32 %s16, %s23
    %p245 = scmp.eq.s32.totalorder %s244, 0
    %s247 = sadd.s32 %s246, 1
    %s248 = scalar_select %p245, %s246, %s247
    %p251 = pneg %p245
    %p252 = scmp.eq.s32.totalorder %s16, 1
    %p253 = por %p251, %p252
    %p254 = scmp.ne.s32.totalorder %s246, %s249
    %p255 = scmp.eq.s32.totalorder %s16, 0
    %p256 = por %p254, %p255
    %p257 = scmp.ne.s32.totalorder %s246, %s249
    %p258 = scmp.eq.s32.totalorder %s21, 1
    %p259 = por %p257, %p258
    %p260 = scmp.ne.s32.totalorder %s249, %s250
    %p261 = scmp.eq.s32.totalorder %s21, 0
    %p262 = por %p260, %p261
    %p263 = scmp.ne.s32.totalorder %s249, %s250
    %p264 = scmp.eq.s32.totalorder %s22, 1
    %p265 = por %p263, %p264
    %p267 = scmp.ne.s32.totalorder %s250, %s266
    %p268 = scmp.eq.s32.totalorder %s22, 0
    %p269 = por %p267, %p268
    %p270 = scmp.le.s32.totalorder 1, %s16
    %p271 = scmp.lt.s32.totalorder %s16, 3
    %p272 = pnand %p270, %p271
    %p273 = pneg %p272
    // Predicated region
    $region9: #{forward.9} parent=5 // pred_check
      _
    $region10: #{forward.9} parent=5 // pred_check_branch
      %275 = sbr.rel (%p272) target = $region12
    $region11: #{forward.9} parent=5 // pred_region
      %s276 = ssub.s32 %s16, 1
      // Predicated region
      $region13: #{forward.9} parent=11 // pred_check
        %p277 = pneg %p89
      $region14: #{forward.9} parent=11 // pred_check_branch
        %279 = sbr.rel (%p277) target = $region16
      $region15: #{forward.9} parent=11 // pred_region
        _
      $region16: #{forward.9} parent=11 // pred_fallthru
        _
      // Predicated region
      $region17: #{forward.9} parent=11 // pred_check
        %p280 = pneg %p110
      $region18: #{forward.9} parent=11 // pred_check_branch
        %282 = sbr.rel (%p280) target = $region20
      $region19: #{forward.9} parent=11 // pred_region
        _
      $region20: #{forward.9} parent=11 // pred_fallthru
        _
      // Predicated region
      $region21: #{forward.9} parent=11 // pred_check
        %p283 = pneg %p131
      $region22: #{forward.9} parent=11 // pred_check_branch
        %285 = sbr.rel (%p283) target = $region24
      $region23: #{forward.9} parent=11 // pred_region
        _
      $region24: #{forward.9} parent=11 // pred_fallthru
        _
      // Predicated region
      $region25: #{forward.9} parent=11 // pred_check
        %p286 = pneg %p152
      $region26: #{forward.9} parent=11 // pred_check_branch
        %288 = sbr.rel (%p286) target = $region28
      $region27: #{forward.9} parent=11 // pred_region
        _
      $region28: #{forward.9} parent=11 // pred_fallthru
        _
      // Predicated region
      $region29: #{forward.9} parent=11 // pred_check
        %p289 = pneg %p173
      $region30: #{forward.9} parent=11 // pred_check_branch
        %291 = sbr.rel (%p289) target = $region32
      $region31: #{forward.9} parent=11 // pred_region
        _
      $region32: #{forward.9} parent=11 // pred_fallthru
        _
      // Predicated region
      $region33: #{forward.9} parent=11 // pred_check
        %p292 = pneg %p194
      $region34: #{forward.9} parent=11 // pred_check_branch
        %294 = sbr.rel (%p292) target = $region36
      $region35: #{forward.9} parent=11 // pred_region
        _
      $region36: #{forward.9} parent=11 // pred_fallthru
        _
      // Predicated region
      $region37: #{forward.9} parent=11 // pred_check
        %p295 = pneg %p215
      $region38: #{forward.9} parent=11 // pred_check_branch
        %297 = sbr.rel (%p295) target = $region40
      $region39: #{forward.9} parent=11 // pred_region
        _
      $region40: #{forward.9} parent=11 // pred_fallthru
        _
      // Predicated region
      $region41: #{forward.9} parent=11 // pred_check
        %p298 = pneg %p236
      $region42: #{forward.9} parent=11 // pred_check_branch
        %300 = sbr.rel (%p298) target = $region44
      $region43: #{forward.9} parent=11 // pred_region
        _
      $region44: #{forward.9} parent=11 // pred_fallthru
        _
    $region12: #{forward.9} parent=5 // pred_fallthru
      _
    %p301 = scmp.lt.s32.totalorder %s16, 2
    // Predicated region
    $region45: #{forward.9} parent=5 // pred_check
      %p302 = pneg %p301
    $region46: #{forward.9} parent=5 // pred_check_branch
      %304 = sbr.rel (%p302) target = $region48
    $region47: #{forward.9} parent=5 // pred_region
      // Predicated region
      $region49: #{forward.9} parent=47 // pred_check
        %p305 = pneg %p36
      $region50: #{forward.9} parent=47 // pred_check_branch
        %307 = sbr.rel (%p305) target = $region52
      $region51: #{forward.9} parent=47 // pred_region
        %p308 = scmp.lt.s32.totalorder %s16, 1
        %s309 = scalar_select %p308, %s16, 1
        %s310 = smul.addr %s309, 2
        %s311 = smul.addr %s310, 8
        %s312 = scalar_lea.vmem %s0, %s311
      $region52: #{forward.9} parent=47 // pred_fallthru
        _
      // Predicated region
      $region53: #{forward.9} parent=47 // pred_check
        %p313 = pneg %p62
      $region54: #{forward.9} parent=47 // pred_check_branch
        %315 = sbr.rel (%p313) target = $region56
      $region55: #{forward.9} parent=47 // pred_region
        %p316 = scmp.lt.s32.totalorder %s16, 1
        %s317 = scalar_select %p316, %s16, 1
        %s318 = smul.addr %s317, 8
        %s319 = scalar_lea.vmem %s1, %s318
      $region56: #{forward.9} parent=47 // pred_fallthru
        _
    $region48: #{forward.9} parent=5 // pred_fallthru
      _
    %p320 = scmp.le.s32.totalorder 1, %s16
    %p321 = scmp.lt.s32.totalorder %s16, 3
    %p322 = pnand %p320, %p321
    %p323 = pneg %p322
    // Predicated region
    $region57: #{forward.9} parent=5 // pred_check
      _
    $region58: #{forward.9} parent=5 // pred_check_branch
      %325 = sbr.rel (%p322) target = $region60
    $region59: #{forward.9} parent=5 // pred_region
      %s326 = ssub.s32 %s16, 1
      %p327 = scmp.lt.s32.totalorder %s21, 1
      %s328 = scalar_select %p327, %s21, 1
      %s329 = smul.addr %s328, 2
      %s330 = smul.addr %s329, 8
      %s331 = scalar_lea.vmem %s0, %s330
      %p332 = pneg %p42
      %p333 = pneg %p39
      %p334 = scmp.lt.s32.totalorder %s21, 1
      %s335 = scalar_select %p334, %s21, 1
      %s336 = smul.addr %s335, 8
      %s337 = scalar_lea.vmem %s1, %s336
      %p338 = pneg %p68
      %p339 = pneg %p65
      %p340 = pneg %p89
      %p341 = pneg %p86
      %p342 = pneg %p110
      %p343 = pneg %p107
      %p344 = pneg %p131
      %p345 = pneg %p128
      %p346 = pneg %p152
      %p347 = pneg %p149
      %p348 = pneg %p173
      %p349 = pneg %p170
      %p350 = pneg %p194
      %p351 = pneg %p191
      %p352 = pneg %p215
      %p353 = pneg %p212
      %p354 = pneg %p236
      %p355 = pneg %p233
      %p356 = pneg %p262
      %p357 = pneg %p259
      %p358 = scmp.lt.s32.totalorder %s21, 1
      %s359 = scalar_select %p358, %s21, 1
      %s360 = smul.addr %s359, 2
      %s361 = smul.addr %s360, 8
      %s362 = scalar_lea.vmem %s10, %s361
      %p363 = scmp.lt.s32.totalorder %s21, 1
      %s364 = scalar_select %p363, %s21, 1
      %s365 = smul.addr %s364, 2
      %s366 = smul.addr %s365, 8
      %s367 = scalar_lea.vmem %s0, %s366
      %p368 = scmp.lt.s32.totalorder %s21, 1
      %s369 = scalar_select %p368, %s21, 1
      %s370 = smul.addr %s369, 8
      %s371 = scalar_lea.vmem %s1, %s370
      %p372 = scmp.lt.s32.totalorder %s21, 1
      %s373 = scalar_select %p372, %s21, 1
      %s374 = smul.addr %s373, 2
      %s375 = smul.addr %s374, 8
      %s376 = scalar_lea.vmem %s10, %s375
      %v378 = vld [vmem:[%s367] sm:$0xff]
      %v379 = vld [vmem:[%s367 + $0x8] sm:$0xff]
      %v380 = vld [vmem:[%s371] sm:$0x3f]
      %vm381 = vcmask 261120
      %v382 = vsel %vm381, %v378, 0.0
      %383 = vadd.xlane.f32.xlu0 %v382
      %v384 = vpop.xlane.xlu0 %383
      %v385 = vsel %vm381, %v379, 0.0
      %386 = vadd.xlane.f32.xlu0 %v385
      %v387 = vpop.xlane.xlu0 %386
      %v388 = vrcp.pop 32.0
      %v389 = vmul.f32 %v384, %v388
      %v390 = vmul.f32 %v387, %v388
      %v391 = vsub.f32 %v378, %v389
      %v392 = vsub.f32 %v379, %v390
      %v393 = vmul.f32 %v391, %v391
      %v394 = vmul.f32 %v392, %v392
      %v395 = vsel %vm381, %v393, 0.0
      %396 = vadd.xlane.f32.xlu0 %v395
      %v397 = vpop.xlane.xlu0 %396
      %v398 = vsel %vm381, %v394, 0.0
      %399 = vadd.xlane.f32.xlu0 %v398
      %v400 = vpop.xlane.xlu0 %399
      %v401 = vmul.f32 %v397, %v388
      %v402 = vmul.f32 %v400, %v388
      %v403 = vadd.f32 %v401, 1e-06
      %v404 = vadd.f32 %v402, 1e-06
      %v405 = vrsqrt.pop %v403
      %v406 = vrsqrt.pop %v404
      %v407 = vmul.f32 %v391, %v405
      %v408 = vmul.f32 %v392, %v406
      %v409 = vadd.f32 %v380, 1.0
      %v410 = vlaneseq
      %v411 = vshrl.u32 %v410, 7
      %v412 = vsub.s32 0, %v411
      %v413 = vrot.slane %v409, %v412
      %v414 = vmul.f32 %v407, %v413
      %v415 = vmul.f32 %v408, %v413
      %v416 = vlaneseq
      %v417 = vshrl.u32 %v416, 7
      %v418 = vsub.s32 1, %v417
      %v419 = vrot.slane %v380, %v418
      %v420 = vadd.f32 %v414, %v419
      %v421 = vadd.f32 %v415, %v419
      %v422 = vpack.c.bf16 %v421, %v420
      %v423 = vld [vmem:[%s2] sm:$0xf]
      %v424 = vld [vmem:[%s2 + $0x4] sm:$0xf]
      %v425 = vld [vmem:[%s2 + $0x8] sm:$0xf]
      %v426 = vld [vmem:[%s2 + $0xc] sm:$0xf]
      %v427 = vld [vmem:[%s3] sm:$0x1]
      %v429 = vlaneseq
      %v430 = vshrl.u32 %v429, 7
      %v431 = vsub.s32 0, %v430
      %v432 = vrot.slane %v427, %v431
      %v438 = vunpack.c.l.b16 %v423
      %v439 = vunpack.c.l.b16 %v424
      %v440 = vunpack.c.l.b16 %v425
      %v441 = vunpack.c.l.b16 %v426
      %v442 = vpack.c.b16 %v439, %v438
      %v443 = vpack.c.b16 %v441, %v440
      %v447 = vsel %vm381, %v422, 0
      %449 = vmatprep.subr.bf16.mxu0 0
      %450 = vmatpush1.bf16.msra.mxu0 0
      %451 = vmatprep.subr.bf16.mxu0 0
      %452 = vmatpush1.bf16.msra.mxu0 0
      %453 = vmatprep.subr.bf16.mxu0 0
      %454 = vmatpush1.bf16.msra.mxu0 0
      %455 = vmatprep.subr.bf16.mxu0 0
      %456 = vmatpush1.bf16.msra.mxu0 0
      %457 = vmatprep.subr.bf16.mxu0 0
      %458 = vmatpush1.bf16.msra.mxu0 0
      %459 = vmatprep.subr.bf16.mxu0 0
      %460 = vmatpush1.bf16.msra.mxu0 0
      %461 = vmatprep.subr.bf16.mxu0 0
      %462 = vmatpush1.bf16.msra.mxu0 %v443
      %463 = vmatprep.subr.bf16.mxu0 0
      %464 = vmatpush1.bf16.msra.mxu0 %v442
      %465 = vmatprep.subr.bf16.mxu0 0
      %466 = vmatpush2.bf16.msra.mxu0 0
      %467 = vmatprep.subr.bf16.mxu0 0
      %468 = vmatpush2.bf16.msra.mxu0 0
      %469 = vmatprep.subr.bf16.mxu0 0
      %470 = vmatpush2.bf16.msra.mxu0 0
      %471 = vmatprep.subr.bf16.mxu0 0
      %472 = vmatpush2.bf16.msra.mxu0 0
      %473 = vmatprep.subr.bf16.mxu0 0
      %474 = vmatpush2.bf16.msra.mxu0 0
      %475 = vmatprep.subr.bf16.mxu0 0
      %476 = vmatpush2.bf16.msra.mxu0 0
      %477 = vmatprep.subr.bf16.mxu0 0
      %478 = vmatpush2.bf16.msra.mxu0 0
      %479 = vmatprep.subr.bf16.mxu0 0
      %480 = vmatpush2.bf16.msra.mxu0 0
      %481 = vmatprep.mubr.bf16.mxu0 0
      %482 = vmatmul.mubr.bf16.gmra.mxu0 %v447
      %v483 = vpop.f32.mrf.mxu0
      %v484 = vadd.f32 %v432, %v483
      %v485 = vpop.f32.mrf.mxu0
      %v486 = vpop.f32.mrf.mxu0
      %v487 = vadd.f32 %v432, %v486
      %v488 = vpop.f32.mrf.mxu0
      %489 = vdwg.mxu0
      %v490 = vmul.f32 %v484, 0.35355338
      %v491 = vmul.f32 %v487, 0.35355338
      %v492 = vpack.c.bf16 %v491, %v490
      %v493 = vpack.c.bf16 %v487, %v484
      %495 = vrot.lane.b32.xlu0 %v493, 96
      %v496 = vpop.permute.xlu0 %495
      %vm497 = vcmask 64512
      %v499 = vsel %vm497, %v492, 0
      %v502 = vsel %vm497, %v496, 0
      %504 = vmatprep.subr.bf16.mxu0 0
      %505 = vmatpush1.bf16.xpose.msra.mxu0 0
      %506 = vmatprep.subr.bf16.mxu0 0
      %507 = vmatpush1.bf16.xpose.msra.mxu0 0
      %508 = vmatprep.subr.bf16.mxu0 0
      %509 = vmatpush1.bf16.xpose.msra.mxu0 0
      %510 = vmatprep.subr.bf16.mxu0 0
      %511 = vmatpush1.bf16.xpose.msra.mxu0 0
      %512 = vmatprep.subr.bf16.mxu0 0
      %513 = vmatpush1.bf16.xpose.msra.mxu0 0
      %514 = vmatprep.subr.bf16.mxu0 0
      %515 = vmatpush1.bf16.xpose.msra.mxu0 0
      %516 = vmatprep.subr.bf16.mxu0 0
      %517 = vmatpush1.bf16.xpose.msra.mxu0 0
      %518 = vmatprep.subr.bf16.mxu0 0
      %519 = vmatpush1.bf16.xpose.msra.mxu0 %v502
      %520 = vmatprep.subr.bf16.mxu0 0
      %521 = vmatpush2.bf16.xpose.msra.mxu0 0
      %522 = vmatprep.subr.bf16.mxu0 0
      %523 = vmatpush2.bf16.xpose.msra.mxu0 0
      %524 = vmatprep.subr.bf16.mxu0 0
      %525 = vmatpush2.bf16.xpose.msra.mxu0 0
      %526 = vmatprep.subr.bf16.mxu0 0
      %527 = vmatpush2.bf16.xpose.msra.mxu0 0
      %528 = vmatprep.subr.bf16.mxu0 0
      %529 = vmatpush2.bf16.xpose.msra.mxu0 0
      %530 = vmatprep.subr.bf16.mxu0 0
      %531 = vmatpush2.bf16.xpose.msra.mxu0 0
      %532 = vmatprep.subr.bf16.mxu0 0
      %533 = vmatpush2.bf16.xpose.msra.mxu0 0
      %534 = vmatprep.subr.bf16.mxu0 0
      %535 = vmatpush2.bf16.xpose.msra.mxu0 0
      %536 = vmatprep.mubr.bf16.mxu0 0
      %537 = vmatmul.mubr.bf16.gmra.mxu0 %v499
      %v538 = vpop.f32.mrf.mxu0
      %v539 = vadd.f32 0.0, %v538
      %v540 = vpop.f32.mrf.mxu0
      %v541 = vpop.f32.mrf.mxu0
      %v542 = vadd.f32 0.0, %v541
      %v543 = vpop.f32.mrf.mxu0
      %544 = vdwg.mxu0
      %vm545 = vcmask 130048
      %v546 = vsel %vm545, %v539, -inf
      %547 = vmax.xlane.f32.xlu0 %v546
      %v548 = vpop.xlane.xlu0 %547
      %v549 = vsel %vm545, %v542, -inf
      %550 = vmax.xlane.f32.xlu0 %v549
      %v551 = vpop.xlane.xlu0 %550
      %v552 = vsub.f32 %v539, %v548
      %v553 = vsub.f32 %v542, %v551
      %v554 = vmul.f32 %v552, 1.442695
      %v555 = vpow.pop %v554
      %v556 = vmul.f32 %v553, 1.442695
      %v557 = vpow.pop %v556
      %v558 = vsel %vm545, %v555, 0.0
      %559 = vadd.xlane.f32.xlu0 %v558
      %v560 = vpop.xlane.xlu0 %559
      %v561 = vsel %vm545, %v557, 0.0
      %562 = vadd.xlane.f32.xlu0 %v561
      %v563 = vpop.xlane.xlu0 %562
      %v564 = vrcp.pop %v560
      %v565 = vrcp.pop %v563
      %v566 = vmul.f32 %v555, %v564
      %v567 = vmul.f32 %v557, %v565
      %v568 = vpack.c.bf16 %v567, %v566
      %569 = vrot.lane.b32.xlu0 %v493, 64
      %v570 = vpop.permute.xlu0 %569
      %v573 = vsel %vm545, %v568, 0
      %575 = vmatprep.subr.bf16.mxu0 0
      %576 = vmatpush1.bf16.msra.mxu0 0
      %577 = vmatprep.subr.bf16.mxu0 0
      %578 = vmatpush1.bf16.msra.mxu0 0
      %579 = vmatprep.subr.bf16.mxu0 0
      %580 = vmatpush1.bf16.msra.mxu0 0
      %581 = vmatprep.subr.bf16.mxu0 0
      %582 = vmatpush1.bf16.msra.mxu0 0
      %583 = vmatprep.subr.bf16.mxu0 0
      %584 = vmatpush1.bf16.msra.mxu0 0
      %585 = vmatprep.subr.bf16.mxu0 0
      %586 = vmatpush1.bf16.msra.mxu0 0
      %587 = vmatprep.subr.bf16.mxu0 0
      %588 = vmatpush1.bf16.msra.mxu0 0
      %589 = vmatprep.subr.bf16.mxu0 0
      %590 = vmatpush1.bf16.msra.mxu0 %v570
      %591 = vmatprep.subr.bf16.mxu0 0
      %592 = vmatpush2.bf16.msra.mxu0 0
      %593 = vmatprep.subr.bf16.mxu0 0
      %594 = vmatpush2.bf16.msra.mxu0 0
      %595 = vmatprep.subr.bf16.mxu0 0
      %596 = vmatpush2.bf16.msra.mxu0 0
      %597 = vmatprep.subr.bf16.mxu0 0
      %598 = vmatpush2.bf16.msra.mxu0 0
      %599 = vmatprep.subr.bf16.mxu0 0
      %600 = vmatpush2.bf16.msra.mxu0 0
      %601 = vmatprep.subr.bf16.mxu0 0
      %602 = vmatpush2.bf16.msra.mxu0 0
      %603 = vmatprep.subr.bf16.mxu0 0
      %604 = vmatpush2.bf16.msra.mxu0 0
      %605 = vmatprep.subr.bf16.mxu0 0
      %606 = vmatpush2.bf16.msra.mxu0 0
      %607 = vmatprep.mubr.bf16.mxu0 0
      %608 = vmatmul.mubr.bf16.gmra.mxu0 %v573
      %v609 = vpop.f32.mrf.mxu0
      %v610 = vadd.f32 0.0, %v609
      %v611 = vpop.f32.mrf.mxu0
      %v612 = vpop.f32.mrf.mxu0
      %v613 = vadd.f32 0.0, %v612
      %v614 = vpop.f32.mrf.mxu0
      %615 = vdwg.mxu0
      %617 = vrot.lane.b32.xlu0 %v492, 120
      %v618 = vpop.permute.xlu0 %617
      %619 = vrot.lane.b32.xlu0 %v493, 88
      %v620 = vpop.permute.xlu0 %619
      %v622 = vsel %vm497, %v618, 0
      %v625 = vsel %vm497, %v620, 0
      %627 = vmatprep.subr.bf16.mxu0 0
      %628 = vmatpush1.bf16.xpose.msra.mxu0 0
      %629 = vmatprep.subr.bf16.mxu0 0
      %630 = vmatpush1.bf16.xpose.msra.mxu0 0
      %631 = vmatprep.subr.bf16.mxu0 0
      %632 = vmatpush1.bf16.xpose.msra.mxu0 0
      %633 = vmatprep.subr.bf16.mxu0 0
      %634 = vmatpush1.bf16.xpose.msra.mxu0 0
      %635 = vmatprep.subr.bf16.mxu0 0
      %636 = vmatpush1.bf16.xpose.msra.mxu0 0
      %637 = vmatprep.subr.bf16.mxu0 0
      %638 = vmatpush1.bf16.xpose.msra.mxu0 0
      %639 = vmatprep.subr.bf16.mxu0 0
      %640 = vmatpush1.bf16.xpose.msra.mxu0 0
      %641 = vmatprep.subr.bf16.mxu0 0
      %642 = vmatpush1.bf16.xpose.msra.mxu0 %v625
      %643 = vmatprep.subr.bf16.mxu0 0
      %644 = vmatpush2.bf16.xpose.msra.mxu0 0
      %645 = vmatprep.subr.bf16.mxu0 0
      %646 = vmatpush2.bf16.xpose.msra.mxu0 0
      %647 = vmatprep.subr.bf16.mxu0 0
      %648 = vmatpush2.bf16.xpose.msra.mxu0 0
      %649 = vmatprep.subr.bf16.mxu0 0
      %650 = vmatpush2.bf16.xpose.msra.mxu0 0
      %651 = vmatprep.subr.bf16.mxu0 0
      %652 = vmatpush2.bf16.xpose.msra.mxu0 0
      %653 = vmatprep.subr.bf16.mxu0 0
      %654 = vmatpush2.bf16.xpose.msra.mxu0 0
      %655 = vmatprep.subr.bf16.mxu0 0
      %656 = vmatpush2.bf16.xpose.msra.mxu0 0
      %657 = vmatprep.subr.bf16.mxu0 0
      %658 = vmatpush2.bf16.xpose.msra.mxu0 0
      %659 = vmatprep.mubr.bf16.mxu0 0
      %660 = vmatmul.mubr.bf16.gmra.mxu0 %v622
      %v661 = vpop.f32.mrf.mxu0
      %v662 = vadd.f32 0.0, %v661
      %v663 = vpop.f32.mrf.mxu0
      %v664 = vpop.f32.mrf.mxu0
      %v665 = vadd.f32 0.0, %v664
      %v666 = vpop.f32.mrf.mxu0
      %667 = vdwg.mxu0
      %v668 = vsel %vm545, %v662, -inf
      %669 = vmax.xlane.f32.xlu0 %v668
      %v670 = vpop.xlane.xlu0 %669
      %v671 = vsel %vm545, %v665, -inf
      %672 = vmax.xlane.f32.xlu0 %v671
      %v673 = vpop.xlane.xlu0 %672
      %v674 = vsub.f32 %v662, %v670
      %v675 = vsub.f32 %v665, %v673
      %v676 = vmul.f32 %v674, 1.442695
      %v677 = vpow.pop %v676
      %v678 = vmul.f32 %v675, 1.442695
      %v679 = vpow.pop %v678
      %v680 = vsel %vm545, %v677, 0.0
      %681 = vadd.xlane.f32.xlu0 %v680
      %v682 = vpop.xlane.xlu0 %681
      %v683 = vsel %vm545, %v679, 0.0
      %684 = vadd.xlane.f32.xlu0 %v683
      %v685 = vpop.xlane.xlu0 %684
      %v686 = vrcp.pop %v682
      %v687 = vrcp.pop %v685
      %v688 = vmul.f32 %v677, %v686
      %v689 = vmul.f32 %v679, %v687
      %v690 = vpack.c.bf16 %v689, %v688
      %691 = vrot.lane.b32.xlu0 %v493, 56
      %v692 = vpop.permute.xlu0 %691
      %v695 = vsel %vm545, %v690, 0
      %697 = vmatprep.subr.bf16.mxu0 0
      %698 = vmatpush1.bf16.msra.mxu0 0
      %699 = vmatprep.subr.bf16.mxu0 0
      %700 = vmatpush1.bf16.msra.mxu0 0
      %701 = vmatprep.subr.bf16.mxu0 0
      %702 = vmatpush1.bf16.msra.mxu0 0
      %703 = vmatprep.subr.bf16.mxu0 0
      %704 = vmatpush1.bf16.msra.mxu0 0
      %705 = vmatprep.subr.bf16.mxu0 0
      %706 = vmatpush1.bf16.msra.mxu0 0
      %707 = vmatprep.subr.bf16.mxu0 0
      %708 = vmatpush1.bf16.msra.mxu0 0
      %709 = vmatprep.subr.bf16.mxu0 0
      %710 = vmatpush1.bf16.msra.mxu0 0
      %711 = vmatprep.subr.bf16.mxu0 0
      %712 = vmatpush1.bf16.msra.mxu0 %v692
      %713 = vmatprep.subr.bf16.mxu0 0
      %714 = vmatpush2.bf16.msra.mxu0 0
      %715 = vmatprep.subr.bf16.mxu0 0
      %716 = vmatpush2.bf16.msra.mxu0 0
      %717 = vmatprep.subr.bf16.mxu0 0
      %718 = vmatpush2.bf16.msra.mxu0 0
      %719 = vmatprep.subr.bf16.mxu0 0
      %720 = vmatpush2.bf16.msra.mxu0 0
      %721 = vmatprep.subr.bf16.mxu0 0
      %722 = vmatpush2.bf16.msra.mxu0 0
      %723 = vmatprep.subr.bf16.mxu0 0
      %724 = vmatpush2.bf16.msra.mxu0 0
      %725 = vmatprep.subr.bf16.mxu0 0
      %726 = vmatpush2.bf16.msra.mxu0 0
      %727 = vmatprep.subr.bf16.mxu0 0
      %728 = vmatpush2.bf16.msra.mxu0 0
      %729 = vmatprep.mubr.bf16.mxu0 0
      %730 = vmatmul.mubr.bf16.gmra.mxu0 %v695
      %v731 = vpop.f32.mrf.mxu0
      %v732 = vadd.f32 0.0, %v731
      %v733 = vpop.f32.mrf.mxu0
      %v734 = vpop.f32.mrf.mxu0
      %v735 = vadd.f32 0.0, %v734
      %v736 = vpop.f32.mrf.mxu0
      %737 = vdwg.mxu0
      %738 = vrot.lane.b32.xlu0 %v492, 112
      %v739 = vpop.permute.xlu0 %738
      %740 = vrot.lane.b32.xlu0 %v493, 80
      %v741 = vpop.permute.xlu0 %740
      %v743 = vsel %vm497, %v739, 0
      %v746 = vsel %vm497, %v741, 0
      %748 = vmatprep.subr.bf16.mxu0 0
      %749 = vmatpush1.bf16.xpose.msra.mxu0 0
      %750 = vmatprep.subr.bf16.mxu0 0
      %751 = vmatpush1.bf16.xpose.msra.mxu0 0
      %752 = vmatprep.subr.bf16.mxu0 0
      %753 = vmatpush1.bf16.xpose.msra.mxu0 0
      %754 = vmatprep.subr.bf16.mxu0 0
      %755 = vmatpush1.bf16.xpose.msra.mxu0 0
      %756 = vmatprep.subr.bf16.mxu0 0
      %757 = vmatpush1.bf16.xpose.msra.mxu0 0
      %758 = vmatprep.subr.bf16.mxu0 0
      %759 = vmatpush1.bf16.xpose.msra.mxu0 0
      %760 = vmatprep.subr.bf16.mxu0 0
      %761 = vmatpush1.bf16.xpose.msra.mxu0 0
      %762 = vmatprep.subr.bf16.mxu0 0
      %763 = vmatpush1.bf16.xpose.msra.mxu0 %v746
      %764 = vmatprep.subr.bf16.mxu0 0
      %765 = vmatpush2.bf16.xpose.msra.mxu0 0
      %766 = vmatprep.subr.bf16.mxu0 0
      %767 = vmatpush2.bf16.xpose.msra.mxu0 0
      %768 = vmatprep.subr.bf16.mxu0 0
      %769 = vmatpush2.bf16.xpose.msra.mxu0 0
      %770 = vmatprep.subr.bf16.mxu0 0
      %771 = vmatpush2.bf16.xpose.msra.mxu0 0
      %772 = vmatprep.subr.bf16.mxu0 0
      %773 = vmatpush2.bf16.xpose.msra.mxu0 0
      %774 = vmatprep.subr.bf16.mxu0 0
      %775 = vmatpush2.bf16.xpose.msra.mxu0 0
      %776 = vmatprep.subr.bf16.mxu0 0
      %777 = vmatpush2.bf16.xpose.msra.mxu0 0
      %778 = vmatprep.subr.bf16.mxu0 0
      %779 = vmatpush2.bf16.xpose.msra.mxu0 0
      %780 = vmatprep.mubr.bf16.mxu0 0
      %781 = vmatmul.mubr.bf16.gmra.mxu0 %v743
      %v782 = vpop.f32.mrf.mxu0
      %v783 = vadd.f32 0.0, %v782
      %v784 = vpop.f32.mrf.mxu0
      %v785 = vpop.f32.mrf.mxu0
      %v786 = vadd.f32 0.0, %v785
      %v787 = vpop.f32.mrf.mxu0
      %788 = vdwg.mxu0
      %v789 = vsel %vm545, %v783, -inf
      %790 = vmax.xlane.f32.xlu0 %v789
      %v791 = vpop.xlane.xlu0 %790
      %v792 = vsel %vm545, %v786, -inf
      %793 = vmax.xlane.f32.xlu0 %v792
      %v794 = vpop.xlane.xlu0 %793
      %v795 = vsub.f32 %v783, %v791
      %v796 = vsub.f32 %v786, %v794
      %v797 = vmul.f32 %v795, 1.442695
      %v798 = vpow.pop %v797
      %v799 = vmul.f32 %v796, 1.442695
      %v800 = vpow.pop %v799
      %v801 = vsel %vm545, %v798, 0.0
      %802 = vadd.xlane.f32.xlu0 %v801
      %v803 = vpop.xlane.xlu0 %802
      %v804 = vsel %vm545, %v800, 0.0
      %805 = vadd.xlane.f32.xlu0 %v804
      %v806 = vpop.xlane.xlu0 %805
      %v807 = vrcp.pop %v803
      %v808 = vrcp.pop %v806
      %v809 = vmul.f32 %v798, %v807
      %v810 = vmul.f32 %v800, %v808
      %v811 = vpack.c.bf16 %v810, %v809
      %812 = vrot.lane.b32.xlu0 %v493, 48
      %v813 = vpop.permute.xlu0 %812
      %v816 = vsel %vm545, %v811, 0
      %818 = vmatprep.subr.bf16.mxu0 0
      %819 = vmatpush1.bf16.msra.mxu0 0
      %820 = vmatprep.subr.bf16.mxu0 0
      %821 = vmatpush1.bf16.msra.mxu0 0
      %822 = vmatprep.subr.bf16.mxu0 0
      %823 = vmatpush1.bf16.msra.mxu0 0
      %824 = vmatprep.subr.bf16.mxu0 0
      %825 = vmatpush1.bf16.msra.mxu0 0
      %826 = vmatprep.subr.bf16.mxu0 0
      %827 = vmatpush1.bf16.msra.mxu0 0
      %828 = vmatprep.subr.bf16.mxu0 0
      %829 = vmatpush1.bf16.msra.mxu0 0
      %830 = vmatprep.subr.bf16.mxu0 0
      %831 = vmatpush1.bf16.msra.mxu0 0
      %832 = vmatprep.subr.bf16.mxu0 0
      %833 = vmatpush1.bf16.msra.mxu0 %v813
      %834 = vmatprep.subr.bf16.mxu0 0
      %835 = vmatpush2.bf16.msra.mxu0 0
      %836 = vmatprep.subr.bf16.mxu0 0
      %837 = vmatpush2.bf16.msra.mxu0 0
      %838 = vmatprep.subr.bf16.mxu0 0
      %839 = vmatpush2.bf16.msra.mxu0 0
      %840 = vmatprep.subr.bf16.mxu0 0
      %841 = vmatpush2.bf16.msra.mxu0 0
      %842 = vmatprep.subr.bf16.mxu0 0
      %843 = vmatpush2.bf16.msra.mxu0 0
      %844 = vmatprep.subr.bf16.mxu0 0
      %845 = vmatpush2.bf16.msra.mxu0 0
      %846 = vmatprep.subr.bf16.mxu0 0
      %847 = vmatpush2.bf16.msra.mxu0 0
      %848 = vmatprep.subr.bf16.mxu0 0
      %849 = vmatpush2.bf16.msra.mxu0 0
      %850 = vmatprep.mubr.bf16.mxu0 0
      %851 = vmatmul.mubr.bf16.gmra.mxu0 %v816
      %v852 = vpop.f32.mrf.mxu0
      %v853 = vadd.f32 0.0, %v852
      %v854 = vpop.f32.mrf.mxu0
      %v855 = vpop.f32.mrf.mxu0
      %v856 = vadd.f32 0.0, %v855
      %v857 = vpop.f32.mrf.mxu0
      %858 = vdwg.mxu0
      %859 = vrot.lane.b32.xlu0 %v492, 104
      %v860 = vpop.permute.xlu0 %859
      %861 = vrot.lane.b32.xlu0 %v493, 72
      %v862 = vpop.permute.xlu0 %861
      %v864 = vsel %vm497, %v860, 0
      %v867 = vsel %vm497, %v862, 0
      %869 = vmatprep.subr.bf16.mxu0 0
      %870 = vmatpush1.bf16.xpose.msra.mxu0 0
      %871 = vmatprep.subr.bf16.mxu0 0
      %872 = vmatpush1.bf16.xpose.msra.mxu0 0
      %873 = vmatprep.subr.bf16.mxu0 0
      %874 = vmatpush1.bf16.xpose.msra.mxu0 0
      %875 = vmatprep.subr.bf16.mxu0 0
      %876 = vmatpush1.bf16.xpose.msra.mxu0 0
      %877 = vmatprep.subr.bf16.mxu0 0
      %878 = vmatpush1.bf16.xpose.msra.mxu0 0
      %879 = vmatprep.subr.bf16.mxu0 0
      %880 = vmatpush1.bf16.xpose.msra.mxu0 0
      %881 = vmatprep.subr.bf16.mxu0 0
      %882 = vmatpush1.bf16.xpose.msra.mxu0 0
      %883 = vmatprep.subr.bf16.mxu0 0
      %884 = vmatpush1.bf16.xpose.msra.mxu0 %v867
      %885 = vmatprep.subr.bf16.mxu0 0
      %886 = vmatpush2.bf16.xpose.msra.mxu0 0
      %887 = vmatprep.subr.bf16.mxu0 0
      %888 = vmatpush2.bf16.xpose.msra.mxu0 0
      %889 = vmatprep.subr.bf16.mxu0 0
      %890 = vmatpush2.bf16.xpose.msra.mxu0 0
      %891 = vmatprep.subr.bf16.mxu0 0
      %892 = vmatpush2.bf16.xpose.msra.mxu0 0
      %893 = vmatprep.subr.bf16.mxu0 0
      %894 = vmatpush2.bf16.xpose.msra.mxu0 0
      %895 = vmatprep.subr.bf16.mxu0 0
      %896 = vmatpush2.bf16.xpose.msra.mxu0 0
      %897 = vmatprep.subr.bf16.mxu0 0
      %898 = vmatpush2.bf16.xpose.msra.mxu0 0
      %899 = vmatprep.subr.bf16.mxu0 0
      %900 = vmatpush2.bf16.xpose.msra.mxu0 0
      %901 = vmatprep.mubr.bf16.mxu0 0
      %902 = vmatmul.mubr.bf16.gmra.mxu0 %v864
      %v903 = vpop.f32.mrf.mxu0
      %v904 = vadd.f32 0.0, %v903
      %v905 = vpop.f32.mrf.mxu0
      %v906 = vpop.f32.mrf.mxu0
      %v907 = vadd.f32 0.0, %v906
      %v908 = vpop.f32.mrf.mxu0
      %909 = vdwg.mxu0
      %v910 = vsel %vm545, %v904, -inf
      %911 = vmax.xlane.f32.xlu0 %v910
      %v912 = vpop.xlane.xlu0 %911
      %v913 = vsel %vm545, %v907, -inf
      %914 = vmax.xlane.f32.xlu0 %v913
      %v915 = vpop.xlane.xlu0 %914
      %v916 = vsub.f32 %v904, %v912
      %v917 = vsub.f32 %v907, %v915
      %v918 = vmul.f32 %v916, 1.442695
      %v919 = vpow.pop %v918
      %v920 = vmul.f32 %v917, 1.442695
      %v921 = vpow.pop %v920
      %v922 = vsel %vm545, %v919, 0.0
      %923 = vadd.xlane.f32.xlu0 %v922
      %v924 = vpop.xlane.xlu0 %923
      %v925 = vsel %vm545, %v921, 0.0
      %926 = vadd.xlane.f32.xlu0 %v925
      %v927 = vpop.xlane.xlu0 %926
      %v928 = vrcp.pop %v924
      %v929 = vrcp.pop %v927
      %v930 = vmul.f32 %v919, %v928
      %v931 = vmul.f32 %v921, %v929
      %v932 = vpack.c.bf16 %v931, %v930
      %933 = vrot.lane.b32.xlu0 %v493, 40
      %v934 = vpop.permute.xlu0 %933
      %v937 = vsel %vm545, %v932, 0
      %939 = vmatprep.subr.bf16.mxu0 0
      %940 = vmatpush1.bf16.msra.mxu0 0
      %941 = vmatprep.subr.bf16.mxu0 0
      %942 = vmatpush1.bf16.msra.mxu0 0
      %943 = vmatprep.subr.bf16.mxu0 0
      %944 = vmatpush1.bf16.msra.mxu0 0
      %945 = vmatprep.subr.bf16.mxu0 0
      %946 = vmatpush1.bf16.msra.mxu0 0
      %947 = vmatprep.subr.bf16.mxu0 0
      %948 = vmatpush1.bf16.msra.mxu0 0
      %949 = vmatprep.subr.bf16.mxu0 0
      %950 = vmatpush1.bf16.msra.mxu0 0
      %951 = vmatprep.subr.bf16.mxu0 0
      %952 = vmatpush1.bf16.msra.mxu0 0
      %953 = vmatprep.subr.bf16.mxu0 0
      %954 = vmatpush1.bf16.msra.mxu0 %v934
      %955 = vmatprep.subr.bf16.mxu0 0
      %956 = vmatpush2.bf16.msra.mxu0 0
      %957 = vmatprep.subr.bf16.mxu0 0
      %958 = vmatpush2.bf16.msra.mxu0 0
      %959 = vmatprep.subr.bf16.mxu0 0
      %960 = vmatpush2.bf16.msra.mxu0 0
      %961 = vmatprep.subr.bf16.mxu0 0
      %962 = vmatpush2.bf16.msra.mxu0 0
      %963 = vmatprep.subr.bf16.mxu0 0
      %964 = vmatpush2.bf16.msra.mxu0 0
      %965 = vmatprep.subr.bf16.mxu0 0
      %966 = vmatpush2.bf16.msra.mxu0 0
      %967 = vmatprep.subr.bf16.mxu0 0
      %968 = vmatpush2.bf16.msra.mxu0 0
      %969 = vmatprep.subr.bf16.mxu0 0
      %970 = vmatpush2.bf16.msra.mxu0 0
      %971 = vmatprep.mubr.bf16.mxu0 0
      %972 = vmatmul.mubr.bf16.gmra.mxu0 %v937
      %v973 = vpop.f32.mrf.mxu0
      %v974 = vadd.f32 0.0, %v973
      %v975 = vpop.f32.mrf.mxu0
      %v976 = vpop.f32.mrf.mxu0
      %v977 = vadd.f32 0.0, %v976
      %v978 = vpop.f32.mrf.mxu0
      %979 = vdwg.mxu0
      %982 = vrot.lane.b32.xlu0 %v732, 8
      %v983 = vpop.permute.xlu0 %982
      %984 = vrot.lane.b32.xlu0 %v735, 8
      %v985 = vpop.permute.xlu0 %984
      %990 = vrot.lane.b32.xlu0 %v853, 16
      %v991 = vpop.permute.xlu0 %990
      %992 = vrot.lane.b32.xlu0 %v856, 16
      %v993 = vpop.permute.xlu0 %992
      %998 = vrot.lane.b32.xlu0 %v974, 24
      %v999 = vpop.permute.xlu0 %998
      %1000 = vrot.lane.b32.xlu0 %v977, 24
      %v1001 = vpop.permute.xlu0 %1000
      %v1004 = vsel %vm497, %v610, %v983
      %v1005 = vsel %vm497, %v613, %v985
      %v1006 = vsel %vm545, %v1004, %v991
      %v1007 = vsel %vm545, %v1005, %v993
      %vm1008 = vcmask 195584
      %v1009 = vsel %vm1008, %v1006, %v999
      %v1010 = vsel %vm1008, %v1007, %v1001
      %v1011 = vpack.c.bf16 %v1010, %v1009
      %v1012 = vld [vmem:[%s4] sm:$0xf]
      %v1013 = vld [vmem:[%s4 + $0x4] sm:$0xf]
      %v1014 = vld [vmem:[%s4 + $0x8] sm:$0xf]
      %v1015 = vld [vmem:[%s4 + $0xc] sm:$0xf]
      %v1016 = vld [vmem:[%s5] sm:$0x1]
      %v1018 = vlaneseq
      %v1019 = vshrl.u32 %v1018, 7
      %v1020 = vsub.s32 0, %v1019
      %v1021 = vrot.slane %v1016, %v1020
      %v1027 = vunpack.c.l.b16 %v1012
      %v1028 = vunpack.c.l.b16 %v1013
      %v1029 = vunpack.c.l.b16 %v1014
      %v1030 = vunpack.c.l.b16 %v1015
      %v1031 = vpack.c.b16 %v1028, %v1027
      %v1032 = vpack.c.b16 %v1030, %v1029
      %v1036 = vsel %vm381, %v1011, 0
      %1038 = vmatprep.subr.bf16.mxu0 0
      %1039 = vmatpush1.bf16.msra.mxu0 0
      %1040 = vmatprep.subr.bf16.mxu0 0
      %1041 = vmatpush1.bf16.msra.mxu0 0
      %1042 = vmatprep.subr.bf16.mxu0 0
      %1043 = vmatpush1.bf16.msra.mxu0 0
      %1044 = vmatprep.subr.bf16.mxu0 0
      %1045 = vmatpush1.bf16.msra.mxu0 0
      %1046 = vmatprep.subr.bf16.mxu0 0
      %1047 = vmatpush1.bf16.msra.mxu0 0
      %1048 = vmatprep.subr.bf16.mxu0 0
      %1049 = vmatpush1.bf16.msra.mxu0 0
      %1050 = vmatprep.subr.bf16.mxu0 0
      %1051 = vmatpush1.bf16.msra.mxu0 %v1032
      %1052 = vmatprep.subr.bf16.mxu0 0
      %1053 = vmatpush1.bf16.msra.mxu0 %v1031
      %1054 = vmatprep.subr.bf16.mxu0 0
      %1055 = vmatpush2.bf16.msra.mxu0 0
      %1056 = vmatprep.subr.bf16.mxu0 0
      %1057 = vmatpush2.bf16.msra.mxu0 0
      %1058 = vmatprep.subr.bf16.mxu0 0
      %1059 = vmatpush2.bf16.msra.mxu0 0
      %1060 = vmatprep.subr.bf16.mxu0 0
      %1061 = vmatpush2.bf16.msra.mxu0 0
      %1062 = vmatprep.subr.bf16.mxu0 0
      %1063 = vmatpush2.bf16.msra.mxu0 0
      %1064 = vmatprep.subr.bf16.mxu0 0
      %1065 = vmatpush2.bf16.msra.mxu0 0
      %1066 = vmatprep.subr.bf16.mxu0 0
      %1067 = vmatpush2.bf16.msra.mxu0 0
      %1068 = vmatprep.subr.bf16.mxu0 0
      %1069 = vmatpush2.bf16.msra.mxu0 0
      %1070 = vmatprep.mubr.bf16.mxu0 0
      %1071 = vmatmul.mubr.bf16.gmra.mxu0 %v1036
      %v1072 = vpop.f32.mrf.mxu0
      %v1073 = vadd.f32 %v1021, %v1072
      %v1074 = vpop.f32.mrf.mxu0
      %v1075 = vpop.f32.mrf.mxu0
      %v1076 = vadd.f32 %v1021, %v1075
      %v1077 = vpop.f32.mrf.mxu0
      %1078 = vdwg.mxu0
      %v1079 = vlaneseq
      %v1080 = vshrl.u32 %v1079, 7
      %v1081 = vsub.s32 4, %v1080
      %v1082 = vrot.slane %v380, %v1081
      %v1083 = vmul.f32 %v1073, %v1082
      %v1084 = vmul.f32 %v1076, %v1082
      %v1085 = vadd.f32 %v378, %v1083
      %v1086 = vadd.f32 %v379, %v1084
      %v1087 = vsel %vm381, %v1085, 0.0
      %1088 = vadd.xlane.f32.xlu0 %v1087
      %v1089 = vpop.xlane.xlu0 %1088
      %v1090 = vsel %vm381, %v1086, 0.0
      %1091 = vadd.xlane.f32.xlu0 %v1090
      %v1092 = vpop.xlane.xlu0 %1091
      %v1093 = vmul.f32 %v1089, %v388
      %v1094 = vmul.f32 %v1092, %v388
      %v1095 = vsub.f32 %v1085, %v1093
      %v1096 = vsub.f32 %v1086, %v1094
      %v1097 = vmul.f32 %v1095, %v1095
      %v1098 = vmul.f32 %v1096, %v1096
      %v1099 = vsel %vm381, %v1097, 0.0
      %1100 = vadd.xlane.f32.xlu0 %v1099
      %v1101 = vpop.xlane.xlu0 %1100
      %v1102 = vsel %vm381, %v1098, 0.0
      %1103 = vadd.xlane.f32.xlu0 %v1102
      %v1104 = vpop.xlane.xlu0 %1103
      %v1105 = vmul.f32 %v1101, %v388
      %v1106 = vmul.f32 %v1104, %v388
      %v1107 = vadd.f32 %v1105, 1e-06
      %v1108 = vadd.f32 %v1106, 1e-06
      %v1109 = vrsqrt.pop %v1107
      %v1110 = vrsqrt.pop %v1108
      %v1111 = vmul.f32 %v1095, %v1109
      %v1112 = vmul.f32 %v1096, %v1110
      %v1113 = vlaneseq
      %v1114 = vshrl.u32 %v1113, 7
      %v1115 = vsub.s32 2, %v1114
      %v1116 = vrot.slane %v409, %v1115
      %v1117 = vmul.f32 %v1111, %v1116
      %v1118 = vmul.f32 %v1112, %v1116
      %v1119 = vlaneseq
      %v1120 = vshrl.u32 %v1119, 7
      %v1121 = vsub.s32 3, %v1120
      %v1122 = vrot.slane %v380, %v1121
      %v1123 = vadd.f32 %v1117, %v1122
      %v1124 = vadd.f32 %v1118, %v1122
      %v1125 = vpack.c.bf16 %v1124, %v1123
      %v1126 = vld [vmem:[%s6] sm:$0xf]
      %v1127 = vld [vmem:[%s6 + $0x4] sm:$0xf]
      %v1128 = vld [vmem:[%s6 + $0x8] sm:$0xf]
      %v1129 = vld [vmem:[%s6 + $0xc] sm:$0xf]
      %v1130 = vld [vmem:[%s7] sm:$0x1]
      %v1132 = vlaneseq
      %v1133 = vshrl.u32 %v1132, 7
      %v1134 = vsub.s32 0, %v1133
      %v1135 = vrot.slane %v1130, %v1134
      %v1141 = vunpack.c.l.b16 %v1126
      %v1142 = vunpack.c.l.b16 %v1127
      %v1143 = vunpack.c.l.b16 %v1128
      %v1144 = vunpack.c.l.b16 %v1129
      %v1145 = vpack.c.b16 %v1142, %v1141
      %v1146 = vpack.c.b16 %v1144, %v1143
      %v1150 = vsel %vm381, %v1125, 0
      %1152 = vmatprep.subr.bf16.mxu0 0
      %1153 = vmatpush1.bf16.msra.mxu0 0
      %1154 = vmatprep.subr.bf16.mxu0 0
      %1155 = vmatpush1.bf16.msra.mxu0 0
      %1156 = vmatprep.subr.bf16.mxu0 0
      %1157 = vmatpush1.bf16.msra.mxu0 0
      %1158 = vmatprep.subr.bf16.mxu0 0
      %1159 = vmatpush1.bf16.msra.mxu0 0
      %1160 = vmatprep.subr.bf16.mxu0 0
      %1161 = vmatpush1.bf16.msra.mxu0 0
      %1162 = vmatprep.subr.bf16.mxu0 0
      %1163 = vmatpush1.bf16.msra.mxu0 0
      %1164 = vmatprep.subr.bf16.mxu0 0
      %1165 = vmatpush1.bf16.msra.mxu0 %v1146
      %1166 = vmatprep.subr.bf16.mxu0 0
      %1167 = vmatpush1.bf16.msra.mxu0 %v1145
      %1168 = vmatprep.subr.bf16.mxu0 0
      %1169 = vmatpush2.bf16.msra.mxu0 0
      %1170 = vmatprep.subr.bf16.mxu0 0
      %1171 = vmatpush2.bf16.msra.mxu0 0
      %1172 = vmatprep.subr.bf16.mxu0 0
      %1173 = vmatpush2.bf16.msra.mxu0 0
      %1174 = vmatprep.subr.bf16.mxu0 0
      %1175 = vmatpush2.bf16.msra.mxu0 0
      %1176 = vmatprep.subr.bf16.mxu0 0
      %1177 = vmatpush2.bf16.msra.mxu0 0
      %1178 = vmatprep.subr.bf16.mxu0 0
      %1179 = vmatpush2.bf16.msra.mxu0 0
      %1180 = vmatprep.subr.bf16.mxu0 0
      %1181 = vmatpush2.bf16.msra.mxu0 0
      %1182 = vmatprep.subr.bf16.mxu0 0
      %1183 = vmatpush2.bf16.msra.mxu0 0
      %1184 = vmatprep.mubr.bf16.mxu0 0
      %1185 = vmatmul.mubr.bf16.gmra.mxu0 %v1150
      %v1186 = vpop.f32.mrf.mxu0
      %v1187 = vadd.f32 %v1135, %v1186
      %v1188 = vpop.f32.mrf.mxu0
      %v1189 = vpop.f32.mrf.mxu0
      %v1190 = vadd.f32 %v1135, %v1189
      %v1191 = vpop.f32.mrf.mxu0
      %1192 = vdwg.mxu0
      %v1193 = vmul.f32 %v1187, 0.5
      %v1194 = vmul.f32 %v1190, 0.5
      %v1195 = vmul.f32 %v1187, 0.70710677
      %v1196 = vmul.f32 %v1190, 0.70710677
      %v1197 = verf.f32.pop %v1195
      %v1198 = verf.f32.pop %v1196
      %v1199 = vadd.f32 %v1197, 1.0
      %v1200 = vadd.f32 %v1198, 1.0
      %v1201 = vmul.f32 %v1193, %v1199
      %v1202 = vmul.f32 %v1194, %v1200
      %v1203 = vpack.c.bf16 %v1202, %v1201
      %v1204 = vld [vmem:[%s8] sm:$0xf]
      %v1205 = vld [vmem:[%s8 + $0x4] sm:$0xf]
      %v1206 = vld [vmem:[%s8 + $0x8] sm:$0xf]
      %v1207 = vld [vmem:[%s8 + $0xc] sm:$0xf]
      %v1208 = vld [vmem:[%s8 + $0x10] sm:$0xf]
      %v1209 = vld [vmem:[%s8 + $0x14] sm:$0xf]
      %v1210 = vld [vmem:[%s8 + $0x18] sm:$0xf]
      %v1211 = vld [vmem:[%s8 + $0x1c] sm:$0xf]
      %v1212 = vld [vmem:[%s8 + $0x20] sm:$0xf]
      %v1213 = vld [vmem:[%s8 + $0x24] sm:$0xf]
      %v1214 = vld [vmem:[%s8 + $0x28] sm:$0xf]
      %v1215 = vld [vmem:[%s8 + $0x2c] sm:$0xf]
      %v1216 = vld [vmem:[%s8 + $0x30] sm:$0xf]
      %v1217 = vld [vmem:[%s8 + $0x34] sm:$0xf]
      %v1218 = vld [vmem:[%s8 + $0x38] sm:$0xf]
      %v1219 = vld [vmem:[%s8 + $0x3c] sm:$0xf]
      %v1220 = vld [vmem:[%s9] sm:$0x1]
      %v1222 = vlaneseq
      %v1223 = vshrl.u32 %v1222, 7
      %v1224 = vsub.s32 0, %v1223
      %v1225 = vrot.slane %v1220, %v1224
      %v1243 = vunpack.c.l.b16 %v1204
      %v1244 = vunpack.c.l.b16 %v1205
      %v1245 = vunpack.c.l.b16 %v1206
      %v1246 = vunpack.c.l.b16 %v1207
      %v1247 = vunpack.c.l.b16 %v1208
      %v1248 = vunpack.c.l.b16 %v1209
      %v1249 = vunpack.c.l.b16 %v1210
      %v1250 = vunpack.c.l.b16 %v1211
      %v1251 = vunpack.c.l.b16 %v1212
      %v1252 = vunpack.c.l.b16 %v1213
      %v1253 = vunpack.c.l.b16 %v1214
      %v1254 = vunpack.c.l.b16 %v1215
      %v1255 = vunpack.c.l.b16 %v1216
      %v1256 = vunpack.c.l.b16 %v1217
      %v1257 = vunpack.c.l.b16 %v1218
      %v1258 = vunpack.c.l.b16 %v1219
      %v1259 = vpack.c.b16 %v1244, %v1243
      %v1260 = vpack.c.b16 %v1246, %v1245
      %v1261 = vpack.c.b16 %v1248, %v1247
      %v1262 = vpack.c.b16 %v1250, %v1249
      %v1263 = vpack.c.b16 %v1252, %v1251
      %v1264 = vpack.c.b16 %v1254, %v1253
      %v1265 = vpack.c.b16 %v1256, %v1255
      %v1266 = vpack.c.b16 %v1258, %v1257
      %1275 = vmatprep.subr.bf16.mxu0 0
      %1276 = vmatpush1.bf16.msra.mxu0 %v1266
      %1277 = vmatprep.subr.bf16.mxu0 0
      %1278 = vmatpush1.bf16.msra.mxu0 %v1265
      %1279 = vmatprep.subr.bf16.mxu0 0
      %1280 = vmatpush1.bf16.msra.mxu0 %v1264
      %1281 = vmatprep.subr.bf16.mxu0 0
      %1282 = vmatpush1.bf16.msra.mxu0 %v1263
      %1283 = vmatprep.subr.bf16.mxu0 0
      %1284 = vmatpush1.bf16.msra.mxu0 %v1262
      %1285 = vmatprep.subr.bf16.mxu0 0
      %1286 = vmatpush1.bf16.msra.mxu0 %v1261
      %1287 = vmatprep.subr.bf16.mxu0 0
      %1288 = vmatpush1.bf16.msra.mxu0 %v1260
      %1289 = vmatprep.subr.bf16.mxu0 0
      %1290 = vmatpush1.bf16.msra.mxu0 %v1259
      %1291 = vmatprep.subr.bf16.mxu0 0
      %1292 = vmatpush2.bf16.msra.mxu0 0
      %1293 = vmatprep.subr.bf16.mxu0 0
      %1294 = vmatpush2.bf16.msra.mxu0 0
      %1295 = vmatprep.subr.bf16.mxu0 0
      %1296 = vmatpush2.bf16.msra.mxu0 0
      %1297 = vmatprep.subr.bf16.mxu0 0
      %1298 = vmatpush2.bf16.msra.mxu0 0
      %1299 = vmatprep.subr.bf16.mxu0 0
      %1300 = vmatpush2.bf16.msra.mxu0 0
      %1301 = vmatprep.subr.bf16.mxu0 0
      %1302 = vmatpush2.bf16.msra.mxu0 0
      %1303 = vmatprep.subr.bf16.mxu0 0
      %1304 = vmatpush2.bf16.msra.mxu0 0
      %1305 = vmatprep.subr.bf16.mxu0 0
      %1306 = vmatpush2.bf16.msra.mxu0 0
      %1307 = vmatprep.mubr.bf16.mxu0 0
      %1308 = vmatmul.mubr.bf16.gmra.mxu0 %v1203
      %v1309 = vpop.f32.mrf.mxu0
      %v1310 = vadd.f32 %v1225, %v1309
      %v1311 = vpop.f32.mrf.mxu0
      %v1312 = vpop.f32.mrf.mxu0
      %v1313 = vadd.f32 %v1225, %v1312
      %v1314 = vpop.f32.mrf.mxu0
      %1315 = vdwg.mxu0
      %v1316 = vlaneseq
      %v1317 = vshrl.u32 %v1316, 7
      %v1318 = vsub.s32 5, %v1317
      %v1319 = vrot.slane %v380, %v1318
      %v1320 = vmul.f32 %v1310, %v1319
      %v1321 = vmul.f32 %v1313, %v1319
      %v1322 = vadd.f32 %v1085, %v1320
      %v1323 = vadd.f32 %v1086, %v1321
      %1324 = vst.msk [vmem:[%s376] sm:$0xff] %vm381, %v1322
      %1325 = vst.msk [vmem:[%s376 + $0x8] sm:$0xff] %vm381, %v1323
      %p1326 = scmp.lt.s32.totalorder %s21, 1
      %s1327 = scalar_select %p1326, %s21, 1
      %s1328 = smul.addr %s1327, 2
      %s1329 = smul.addr %s1328, 8
      %s1330 = scalar_lea.vmem %s10, %s1329
      // Predicated region
      $region61: #{forward.9} parent=59 // pred_check
        %p1331 = pneg %p259
      $region62: #{forward.9} parent=59 // pred_check_branch
        %1333 = sbr.rel (%p1331) target = $region64
      $region63: #{forward.9} parent=59 // pred_region
        _
      $region64: #{forward.9} parent=59 // pred_fallthru
        _
    $region60: #{forward.9} parent=5 // pred_fallthru
      _
    %p1334 = scmp.le.s32.totalorder 2, %s16
    // Predicated region
    $region65: #{forward.9} parent=5 // pred_check
      %p1335 = pneg %p1334
    $region66: #{forward.9} parent=5 // pred_check_branch
      %1337 = sbr.rel (%p1335) target = $region68
    $region67: #{forward.9} parent=5 // pred_region
      %s1338 = ssub.s32 %s16, 2
      // Predicated region
      $region69: #{forward.9} parent=67 // pred_check
        %p1339 = pneg %p265
      $region70: #{forward.9} parent=67 // pred_check_branch
        %1341 = sbr.rel (%p1339) target = $region72
      $region71: #{forward.9} parent=67 // pred_region
        %p1342 = scmp.lt.s32.totalorder %s22, 1
        %s1343 = scalar_select %p1342, %s22, 1
        %s1344 = smul.addr %s1343, 2
        %s1345 = smul.addr %s1344, 8
        %s1346 = scalar_lea.vmem %s10, %s1345
      $region72: #{forward.9} parent=67 // pred_fallthru
        _
    $region68: #{forward.9} parent=5 // pred_fallthru
      _
  $region6: #{forward.9} parent=0 // loop_footer
    %s20 = sadd.s32 1, %s16
  $region7: #{forward.9} parent=0 // loop_footer_branch
    %15 = sbr.rel target = $region3
  $region8: #{forward.9} parent=0 // loop_exit
    _

</llo_original>
